<compile_context>
chip_gen: v6e
topology: v6e:2x2x1
jax: 0.10.0
libtpu: 0.0.40
codegen_flags: <defaults>
</compile_context>

<pallas_src>
import numpy as np

import jax
import jax.numpy as jnp
from jax.experimental import pallas as pl
from jax.experimental.pallas import tpu as pltpu

LATENT_DIM = 8
N_CHANNELS = 3
EPS = 1e-5

# [output parity][band offset 0..2] -> kernel index of ConvT(k=5, s=2, p=2, op=1)
_KTAP = ((4, 2, 0), (None, 3, 1))

# conv tower: (input spatial S, Cin, Cout);  4x4x32 -> 8x8x16 -> 16x16x8 -> 32x32x3
_CONVS = ((4, 4 * LATENT_DIM, 2 * LATENT_DIM),
          (8, 2 * LATENT_DIM, LATENT_DIM),
          (16, LATENT_DIM, N_CHANNELS))


# ----------------------------- weight packing -----------------------------

def _pack_conv_transpose(wt, bias, S):
    """Pack a torch ConvTranspose2d weight (Cin, Cout, 5, 5) into a banded matrix.

    Row index  = (oa, m, ci): band row oa in {0,1,2} of the 1-zero-padded input,
                 padded column m in [0, S+2), input channel ci.
    Col index  = (p, l, q, co): output row parity p, output column l in [0, S),
                 output column parity q, output channel co.
    For output row 2j+p:  out[l, q, co] = band(j) @ W[:, p-block].
    """
    wt = np.asarray(wt, np.float32)
    bias = np.asarray(bias, np.float32)
    Cin, Cout = wt.shape[0], wt.shape[1]
    Sp = S + 2
    G = 2 * S * Cout
    W = np.zeros((3 * Sp * Cin, 2 * G), np.float32)
    for p in range(2):
        for oa in range(3):
            kh = _KTAP[p][oa]
            if kh is None:
                continue
            for q in range(2):
                for ob in range(3):
                    kw = _KTAP[q][ob]
                    if kw is None:
                        continue
                    for l in range(S):
                        m = l + ob
                        r0 = (oa * Sp + m) * Cin
                        c0 = p * G + (l * 2 + q) * Cout
                        W[r0:r0 + Cin, c0:c0 + Cout] = wt[:, :, kh, kw]
    brow = np.tile(bias[None, :], (1, 4 * S))          # (1, 2*G), channel-innermost
    return W, brow


def _chan_fold_mats(S, Cout):
    """0/1 matrices folding a (l, q, co)-ordered row of width 2*S*Cout to per-channel
    values (R) and broadcasting per-channel values back (Rt)."""
    G = 2 * S * Cout
    R = np.zeros((G, Cout), np.float32)
    R[np.arange(G), np.arange(G) % Cout] = 1.0
    return R, np.ascontiguousarray(R.T)


def _pack_linear(w, b, g, beta, ld):
    """Permute Linear/BatchNorm1d features from torch's NCHW view order (c, j, l)
    into the kernel's row-band order (j, l, c)."""
    C = 4 * ld
    F = 4 * 4 * C
    f = np.arange(F)
    c, j, l = f // 16, (f % 16) // 4, f % 4
    packed_idx = j * (4 * C) + l * C + c
    perm = np.empty(F, np.int64)
    perm[packed_idx] = f
    w = np.asarray(w, np.float32)[perm, :]
    return (np.ascontiguousarray(w.T),
            np.asarray(b, np.float32)[perm][None, :],
            np.asarray(g, np.float32)[perm][None, :],
            np.asarray(beta, np.float32)[perm][None, :])


def pack_params(params):
    """One-time prepacking of the torch-layout params (pure numpy; semantics-preserving)."""
    lw, lb, g0, b0 = _pack_linear(params["lin_w"], params["lin_b"],
                                  params["bn0_g"], params["bn0_b"], LATENT_DIM)
    packed = {"lin_w": jnp.asarray(lw, jnp.float32),
              "lin_b": jnp.asarray(lb, jnp.float32),
              "bn0_g": jnp.asarray(g0, jnp.float32),
              "bn0_b": jnp.asarray(b0, jnp.float32)}
    for i, (S, _cin, cout) in enumerate(_CONVS):
        W, brow = _pack_conv_transpose(params[f"ct{i}_w"], params[f"ct{i}_b"], S)
        packed[f"cw{i}"] = jnp.asarray(W, jnp.bfloat16)      # bf16 weights, f32 accumulate
        packed[f"cb{i}"] = jnp.asarray(brow, jnp.float32)
        if i < 2:
            R, Rt = _chan_fold_mats(S, cout)
            packed[f"R{i}"] = jnp.asarray(R, jnp.float32)
            packed[f"Rt{i}"] = jnp.asarray(Rt, jnp.float32)
            packed[f"bg{i}"] = jnp.asarray(
                np.asarray(params[f"bn{i + 1}_g"], np.float32)[None, :], jnp.float32)
            packed[f"bb{i}"] = jnp.asarray(
                np.asarray(params[f"bn{i + 1}_b"], np.float32)[None, :], jnp.float32)
    return packed


# ------------------------------ fused kernel -------------------------------

def _generator_kernel(z_ref, lw_ref, lb_ref, g0_ref, b0_ref,
                      cw0_ref, cb0_ref, bg0_ref, bb0_ref, R0_ref, Rt0_ref,
                      cw1_ref, cb1_ref, bg1_ref, bb1_ref, R1_ref, Rt1_ref,
                      cw2_ref, cb2_ref,
                      out_ref,
                      xpad0, xpad1, xpad2):
    B = z_ref.shape[0]
    f32 = jnp.float32

    # ---- Linear(latent -> 512) + BatchNorm1d (batch stats) + ReLU ----
    h = jnp.dot(z_ref[...], lw_ref[...], preferred_element_type=f32) + lb_ref[...]
    mean = jnp.mean(h, axis=0, keepdims=True)
    var = jnp.mean(h * h, axis=0, keepdims=True) - mean * mean
    scale = g0_ref[...] * jax.lax.rsqrt(var + EPS)
    shift = b0_ref[...] - mean * scale
    h = jnp.maximum(h * scale + shift, 0.0)

    # ---- scatter the 4x4x32 map (row-band layout: lane = col*Cin + ci) into
    #      the zero-padded input buffer of conv block 0 ----
    S0, Cin0, _ = _CONVS[0]
    row_w = S0 * Cin0                                   # 128
    xpad0[...] = jnp.zeros(xpad0.shape, f32)
    for j in range(S0):
        xpad0[:, 1 + j, Cin0:Cin0 + row_w] = h[:, j * row_w:(j + 1) * row_w]

    def conv_rows(xpad_ref, w_ref, b_ref, S, Cin, Cout):
        # One matmul produces every output row for BOTH row parities.
        lanes = (S + 2) * Cin
        bands = [xpad_ref[:, oa:oa + S, :].reshape(B * S, lanes) for oa in range(3)]
        lhs = jnp.concatenate(bands, axis=-1).astype(jnp.bfloat16)
        acc = jnp.dot(lhs, w_ref[...], preferred_element_type=f32) + b_ref[...]
        G = 2 * S * Cout
        return acc[:, :G], acc[:, G:]                   # parity-0 rows, parity-1 rows

    def bn_relu(A0, A1, g_ref, be_ref, R_ref, Rt_ref, S, Cout):
        # training-mode BatchNorm2d (per channel over batch x 2S x 2S) + ReLU
        n = float(B * (2 * S) * (2 * S))
        s = jnp.sum(A0, axis=0, keepdims=True) + jnp.sum(A1, axis=0, keepdims=True)
        ss = (jnp.sum(A0 * A0, axis=0, keepdims=True)
              + jnp.sum(A1 * A1, axis=0, keepdims=True))
        s_c = jnp.dot(s, R_ref[...], preferred_element_type=jnp.float32) / n
        ss_c = jnp.dot(ss, R_ref[...], preferred_element_type=jnp.float32) / n
        var_c = ss_c - s_c * s_c
        sc_c = g_ref[...] * jax.lax.rsqrt(var_c + EPS)
        sh_c = be_ref[...] - s_c * sc_c
        sc = jnp.dot(sc_c, Rt_ref[...], preferred_element_type=jnp.float32)
        sh = jnp.dot(sh_c, Rt_ref[...], preferred_element_type=jnp.float32)
        return (jnp.maximum(A0 * sc + sh, 0.0), jnp.maximum(A1 * sc + sh, 0.0))

    def scatter(xpad_next_ref, A0, A1, S, Cout):
        # interleave the two row parities directly into the next conv's padded input
        G = 2 * S * Cout
        A0v, A1v = A0.reshape(B, S, G), A1.reshape(B, S, G)
        xpad_next_ref[...] = jnp.zeros(xpad_next_ref.shape, jnp.float32)
        for j in range(S):
            xpad_next_ref[:, 1 + 2 * j, Cout:Cout + G] = A0v[:, j, :]
            xpad_next_ref[:, 2 + 2 * j, Cout:Cout + G] = A1v[:, j, :]

    # block 0: 4x4x32 -> 8x8x16  (ConvT + BN + ReLU)
    S, Cin, Cout = _CONVS[0]
    A0, A1 = conv_rows(xpad0, cw0_ref, cb0_ref, S, Cin, Cout)
    A0, A1 = bn_relu(A0, A1, bg0_ref, bb0_ref, R0_ref, Rt0_ref, S, Cout)
    scatter(xpad1, A0, A1, S, Cout)

    # block 1: 8x8x16 -> 16x16x8  (ConvT + BN + ReLU)
    S, Cin, Cout = _CONVS[1]
    A0, A1 = conv_rows(xpad1, cw1_ref, cb1_ref, S, Cin, Cout)
    A0, A1 = bn_relu(A0, A1, bg1_ref, bb1_ref, R1_ref, Rt1_ref, S, Cout)
    scatter(xpad2, A0, A1, S, Cout)

    # final: 16x16x8 -> 32x32x3  (ConvT + Tanh), stored as two parity slabs
    S, Cin, Cout = _CONVS[2]
    A0, A1 = conv_rows(xpad2, cw2_ref, cb2_ref, S, Cin, Cout)
    G = 2 * S * Cout
    out_ref[0] = jnp.tanh(A0).reshape(B, S, G)
    out_ref[1] = jnp.tanh(A1).reshape(B, S, G)


def generator_forward(packed, z):
    """Generator forward with prepacked weights.  Returns NCHW (B, 3, 32, 32)."""
    B = z.shape[0]
    S_last, C_last = _CONVS[2][0], N_CHANNELS           # 16, 3
    G_last = 2 * S_last * C_last                        # 96

    args = (z.astype(jnp.float32),
            packed["lin_w"], packed["lin_b"], packed["bn0_g"], packed["bn0_b"],
            packed["cw0"], packed["cb0"], packed["bg0"], packed["bb0"],
            packed["R0"], packed["Rt0"],
            packed["cw1"], packed["cb1"], packed["bg1"], packed["bb1"],
            packed["R1"], packed["Rt1"],
            packed["cw2"], packed["cb2"])

    scratch = [pltpu.VMEM((B, S + 2, (S + 2) * cin), jnp.float32)
               for (S, cin, _cout) in _CONVS]

    out = pl.pallas_call(
        _generator_kernel,
        out_shape=jax.ShapeDtypeStruct((2, B, S_last, G_last), jnp.float32),
        grid=(1,),
        in_specs=[pl.BlockSpec(a.shape, lambda i, nd=a.ndim: (0,) * nd) for a in args],
        out_specs=pl.BlockSpec((2, B, S_last, G_last), lambda i: (0, 0, 0, 0)),
        scratch_shapes=scratch,
        compiler_params=pltpu.CompilerParams(dimension_semantics=("arbitrary",)),
    )(*args)

    # (p, b, j, l, q, co) -> (b, co, 2j+p, 2l+q): one tiny (24 KB) relayout outside.
    img = jnp.transpose(out.reshape(2, B, S_last, S_last, 2, C_last),
                        (1, 5, 2, 0, 3, 4)).reshape(B, C_last, 2 * S_last, 2 * S_last)
    return img


# --------------------- parameters + pure-XLA reference ---------------------

def init_params(key, latent_dim=LATENT_DIM, n_channels=N_CHANNELS):
    ks = jax.random.split(key, 8)
    f0 = 4 * 4 * 4 * latent_dim
    chans = [4 * latent_dim, 2 * latent_dim, latent_dim, n_channels]
    p = {"lin_w": 0.05 * jax.random.normal(ks[0], (f0, latent_dim), jnp.float32),
         "lin_b": 0.05 * jax.random.normal(ks[1], (f0,), jnp.float32),
         "bn0_g": jnp.ones((f0,), jnp.float32),
         "bn0_b": jnp.zeros((f0,), jnp.float32)}
    for i in range(3):
        cin, cout = chans[i], chans[i + 1]
        p[f"ct{i}_w"] = 0.05 * jax.random.normal(ks[2 + i], (cin, cout, 5, 5), jnp.float32)
        p[f"ct{i}_b"] = 0.05 * jax.random.normal(ks[5 + i], (cout,), jnp.float32)
        if i < 2:
            p[f"bn{i + 1}_g"] = jnp.ones((cout,), jnp.float32)
            p[f"bn{i + 1}_b"] = jnp.zeros((cout,), jnp.float32)
    return p


def _bn_ref(x, gamma, beta, axes, ch_axis):
    mean = jnp.mean(x, axis=axes, keepdims=True)
    var = jnp.mean(jnp.square(x), axis=axes, keepdims=True) - jnp.square(mean)
    shape = [1] * x.ndim
    shape[ch_axis] = x.shape[ch_axis]
    return (x - mean) * jax.lax.rsqrt(var + EPS) * gamma.reshape(shape) + beta.reshape(shape)


def reference_forward(params, z):
    """Pure-XLA reference (dilate/pad/flip lowering of ConvTranspose2d) for validation."""
    B, ld = z.shape[0], LATENT_DIM
    h = z @ params["lin_w"].T + params["lin_b"]
    h = jnp.maximum(_bn_ref(h, params["bn0_g"], params["bn0_b"], (0,), 1), 0.0)
    x = h.reshape(B, 4 * ld, 4, 4)
    for i in range(3):
        w = params[f"ct{i}_w"]                                    # (Cin, Cout, 5, 5)
        wf = jnp.transpose(w[:, :, ::-1, ::-1], (1, 0, 2, 3))     # flipped, OIHW
        x = jax.lax.conv_general_dilated(
            x, wf, window_strides=(1, 1), padding=((2, 3), (2, 3)),
            lhs_dilation=(2, 2), dimension_numbers=("NCHW", "OIHW", "NCHW"))
        x = x + params[f"ct{i}_b"][None, :, None, None]
        if i < 2:
            x = jnp.maximum(
                _bn_ref(x, params[f"bn{i + 1}_g"], params[f"bn{i + 1}_b"], (0, 2, 3), 1), 0.0)
    return jnp.tanh(x)


if __name__ == "__main__":
    key = jax.random.PRNGKey(0)
    pkey, zkey = jax.random.split(key)
    params = init_params(pkey)
    packed = pack_params(params)                    # one-time weight prepacking
    z = jax.random.normal(zkey, (2, LATENT_DIM), jnp.float32)

    fwd = jax.jit(generator_forward)
    img = jax.block_until_ready(fwd(packed, z))

    assert img.shape == (2, N_CHANNELS, 32, 32), img.shape
    assert bool(jnp.all(jnp.isfinite(img)))
    assert bool(jnp.all(jnp.abs(img) <= 1.0))       # tanh output range

    ref = jax.block_until_ready(jax.jit(reference_forward)(params, z))
    err = float(jnp.max(jnp.abs(img - ref)))
    assert err < 5e-2, f"kernel/reference mismatch: max abs err = {err}"
    print("KERNEL_OK")
</pallas_src>

<mosaic_0001>
module attributes {stable_mosaic.version = 11 : i64} {
  func.func @_generator_kernel(%arg0: i32, %arg1: memref<2x8xf32, #tpu.memory_space<vmem>>, %arg2: memref<8x512xf32, #tpu.memory_space<vmem>>, %arg3: memref<1x512xf32, #tpu.memory_space<vmem>>, %arg4: memref<1x512xf32, #tpu.memory_space<vmem>>, %arg5: memref<1x512xf32, #tpu.memory_space<vmem>>, %arg6: memref<576x256xbf16, #tpu.memory_space<vmem>>, %arg7: memref<1x256xf32, #tpu.memory_space<vmem>>, %arg8: memref<1x16xf32, #tpu.memory_space<vmem>>, %arg9: memref<1x16xf32, #tpu.memory_space<vmem>>, %arg10: memref<128x16xf32, #tpu.memory_space<vmem>>, %arg11: memref<16x128xf32, #tpu.memory_space<vmem>>, %arg12: memref<480x256xbf16, #tpu.memory_space<vmem>>, %arg13: memref<1x256xf32, #tpu.memory_space<vmem>>, %arg14: memref<1x8xf32, #tpu.memory_space<vmem>>, %arg15: memref<1x8xf32, #tpu.memory_space<vmem>>, %arg16: memref<128x8xf32, #tpu.memory_space<vmem>>, %arg17: memref<8x128xf32, #tpu.memory_space<vmem>>, %arg18: memref<432x192xbf16, #tpu.memory_space<vmem>>, %arg19: memref<1x192xf32, #tpu.memory_space<vmem>>, %arg20: memref<2x2x16x96xf32, #tpu.memory_space<vmem>>, %arg21: memref<2x6x192xf32, #tpu.memory_space<vmem>>, %arg22: memref<2x10x160xf32, #tpu.memory_space<vmem>>, %arg23: memref<2x18x144xf32, #tpu.memory_space<vmem>>) attributes {dimension_semantics = [#tpu.dimension_semantics<arbitrary>], iteration_bounds = array<i64: 1>, scalar_prefetch = 0 : i64, scratch_operands = 3 : i64, tpu.core_type = #tpu.core_type<tc>, window_params = [{pipeline_mode = #tpu.pipeline_mode<synchronous>, transform_indices = @transform_0, window_bounds = array<i64: 2, 8>}, {pipeline_mode = #tpu.pipeline_mode<synchronous>, transform_indices = @transform_1, window_bounds = array<i64: 8, 512>}, {pipeline_mode = #tpu.pipeline_mode<synchronous>, transform_indices = @transform_2, window_bounds = array<i64: 1, 512>}, {pipeline_mode = #tpu.pipeline_mode<synchronous>, transform_indices = @transform_3, window_bounds = array<i64: 1, 512>}, {pipeline_mode = #tpu.pipeline_mode<synchronous>, transform_indices = @transform_4, window_bounds = array<i64: 1, 512>}, {pipeline_mode = #tpu.pipeline_mode<synchronous>, transform_indices = @transform_5, window_bounds = array<i64: 576, 256>}, {pipeline_mode = #tpu.pipeline_mode<synchronous>, transform_indices = @transform_6, window_bounds = array<i64: 1, 256>}, {pipeline_mode = #tpu.pipeline_mode<synchronous>, transform_indices = @transform_7, window_bounds = array<i64: 1, 16>}, {pipeline_mode = #tpu.pipeline_mode<synchronous>, transform_indices = @transform_8, window_bounds = array<i64: 1, 16>}, {pipeline_mode = #tpu.pipeline_mode<synchronous>, transform_indices = @transform_9, window_bounds = array<i64: 128, 16>}, {pipeline_mode = #tpu.pipeline_mode<synchronous>, transform_indices = @transform_10, window_bounds = array<i64: 16, 128>}, {pipeline_mode = #tpu.pipeline_mode<synchronous>, transform_indices = @transform_11, window_bounds = array<i64: 480, 256>}, {pipeline_mode = #tpu.pipeline_mode<synchronous>, transform_indices = @transform_12, window_bounds = array<i64: 1, 256>}, {pipeline_mode = #tpu.pipeline_mode<synchronous>, transform_indices = @transform_13, window_bounds = array<i64: 1, 8>}, {pipeline_mode = #tpu.pipeline_mode<synchronous>, transform_indices = @transform_14, window_bounds = array<i64: 1, 8>}, {pipeline_mode = #tpu.pipeline_mode<synchronous>, transform_indices = @transform_15, window_bounds = array<i64: 128, 8>}, {pipeline_mode = #tpu.pipeline_mode<synchronous>, transform_indices = @transform_16, window_bounds = array<i64: 8, 128>}, {pipeline_mode = #tpu.pipeline_mode<synchronous>, transform_indices = @transform_17, window_bounds = array<i64: 432, 192>}, {pipeline_mode = #tpu.pipeline_mode<synchronous>, transform_indices = @transform_18, window_bounds = array<i64: 1, 192>}, {pipeline_mode = #tpu.pipeline_mode<synchronous>, transform_indices = @transform_19, window_bounds = array<i64: 2, 2, 16, 96>}]} {
    %c0 = arith.constant 0 : index
    %c0_0 = arith.constant 0 : index
    %0 = vector.load %arg1[%c0, %c0_0] : memref<2x8xf32, #tpu.memory_space<vmem>>, vector<2x8xf32>
    %c0_1 = arith.constant 0 : index
    %c0_2 = arith.constant 0 : index
    %1 = vector.load %arg2[%c0_1, %c0_2] : memref<8x512xf32, #tpu.memory_space<vmem>>, vector<8x512xf32>
    %cst = arith.constant dense<0.000000e+00> : vector<2x512xf32>
    %2 = tpu.matmul %0, %1, %cst {dimension_numbers = #tpu.dot_dimension_numbers<[1], [0], [0], [1], [0, 0, 1, 1], [], []>} : vector<2x8xf32>, vector<8x512xf32>, vector<2x512xf32> -> vector<2x512xf32>
    %c0_3 = arith.constant 0 : index
    %c0_4 = arith.constant 0 : index
    %3 = vector.load %arg3[%c0_3, %c0_4] : memref<1x512xf32, #tpu.memory_space<vmem>>, vector<1x512xf32>
    %4 = vector.broadcast %3 : vector<1x512xf32> to vector<2x512xf32>
    %5 = arith.addf %2, %4 : vector<2x512xf32>
    %cst_5 = arith.constant dense<0.000000e+00> : vector<512xf32>
    %6 = vector.multi_reduction <add>, %5, %cst_5 [0] : vector<2x512xf32> to vector<512xf32>
    %7 = vector.shape_cast %6 : vector<512xf32> to vector<1x512xf32>
    %cst_6 = arith.constant 2.000000e+00 : f32
    %8 = vector.broadcast %cst_6 : f32 to vector<1x512xf32>
    %9 = arith.divf %7, %8 : vector<1x512xf32>
    %10 = arith.mulf %5, %5 : vector<2x512xf32>
    %cst_7 = arith.constant dense<0.000000e+00> : vector<512xf32>
    %11 = vector.multi_reduction <add>, %10, %cst_7 [0] : vector<2x512xf32> to vector<512xf32>
    %12 = vector.shape_cast %11 : vector<512xf32> to vector<1x512xf32>
    %cst_8 = arith.constant 2.000000e+00 : f32
    %13 = vector.broadcast %cst_8 : f32 to vector<1x512xf32>
    %14 = arith.divf %12, %13 : vector<1x512xf32>
    %15 = arith.mulf %9, %9 : vector<1x512xf32>
    %16 = arith.subf %14, %15 : vector<1x512xf32>
    %c0_9 = arith.constant 0 : index
    %c0_10 = arith.constant 0 : index
    %17 = vector.load %arg4[%c0_9, %c0_10] : memref<1x512xf32, #tpu.memory_space<vmem>>, vector<1x512xf32>
    %cst_11 = arith.constant 9.99999974E-6 : f32
    %18 = vector.broadcast %cst_11 : f32 to vector<1x512xf32>
    %19 = arith.addf %16, %18 : vector<1x512xf32>
    %20 = math.rsqrt %19 : vector<1x512xf32>
    %21 = arith.mulf %17, %20 : vector<1x512xf32>
    %c0_12 = arith.constant 0 : index
    %c0_13 = arith.constant 0 : index
    %22 = vector.load %arg5[%c0_12, %c0_13] : memref<1x512xf32, #tpu.memory_space<vmem>>, vector<1x512xf32>
    %23 = arith.mulf %9, %21 : vector<1x512xf32>
    %24 = arith.subf %22, %23 : vector<1x512xf32>
    %25 = vector.broadcast %21 : vector<1x512xf32> to vector<2x512xf32>
    %26 = arith.mulf %5, %25 : vector<2x512xf32>
    %27 = vector.broadcast %24 : vector<1x512xf32> to vector<2x512xf32>
    %28 = arith.addf %26, %27 : vector<2x512xf32>
    %cst_14 = arith.constant 0.000000e+00 : f32
    %29 = vector.broadcast %cst_14 : f32 to vector<2x512xf32>
    %30 = arith.maximumf %28, %29 : vector<2x512xf32>
    %cst_15 = arith.constant 0.000000e+00 : f32
    %31 = vector.broadcast %cst_15 : f32 to vector<2x6x192xf32>
    %c0_16 = arith.constant 0 : index
    %c0_17 = arith.constant 0 : index
    %c0_18 = arith.constant 0 : index
    %32 = vector.load %arg21[%c0_16, %c0_17, %c0_18] : memref<2x6x192xf32, #tpu.memory_space<vmem>>, vector<2x6x192xf32>
    tpu.vector_store %arg21[%c0_16, %c0_17, %c0_18], %31 {strides = array<i32>} : memref<2x6x192xf32, #tpu.memory_space<vmem>>, vector<2x6x192xf32>,
    %33 = vector.extract_strided_slice %30 {offsets = [0, 0], sizes = [2, 128], strides = [1, 1]} : vector<2x512xf32> to vector<2x128xf32>
    %c0_19 = arith.constant 0 : index
    %c1 = arith.constant 1 : index
    %c32 = arith.constant 32 : index
    %34 = vector.load %arg21[%c0_19, %c1, %c32] : memref<2x6x192xf32, #tpu.memory_space<vmem>>, vector<2x1x128xf32>
    %35 = vector.shape_cast %34 : vector<2x1x128xf32> to vector<2x128xf32>
    %36 = vector.shape_cast %33 : vector<2x128xf32> to vector<2x1x128xf32>
    tpu.vector_store %arg21[%c0_19, %c1, %c32], %36 {strides = array<i32>} : memref<2x6x192xf32, #tpu.memory_space<vmem>>, vector<2x1x128xf32>,
    %37 = vector.extract_strided_slice %30 {offsets = [0, 128], sizes = [2, 128], strides = [1, 1]} : vector<2x512xf32> to vector<2x128xf32>
    %c0_20 = arith.constant 0 : index
    %c2 = arith.constant 2 : index
    %c32_21 = arith.constant 32 : index
    %38 = vector.load %arg21[%c0_20, %c2, %c32_21] : memref<2x6x192xf32, #tpu.memory_space<vmem>>, vector<2x1x128xf32>
    %39 = vector.shape_cast %38 : vector<2x1x128xf32> to vector<2x128xf32>
    %40 = vector.shape_cast %37 : vector<2x128xf32> to vector<2x1x128xf32>
    tpu.vector_store %arg21[%c0_20, %c2, %c32_21], %40 {strides = array<i32>} : memref<2x6x192xf32, #tpu.memory_space<vmem>>, vector<2x1x128xf32>,
    %41 = vector.extract_strided_slice %30 {offsets = [0, 256], sizes = [2, 128], strides = [1, 1]} : vector<2x512xf32> to vector<2x128xf32>
    %c0_22 = arith.constant 0 : index
    %c3 = arith.constant 3 : index
    %c32_23 = arith.constant 32 : index
    %42 = vector.load %arg21[%c0_22, %c3, %c32_23] : memref<2x6x192xf32, #tpu.memory_space<vmem>>, vector<2x1x128xf32>
    %43 = vector.shape_cast %42 : vector<2x1x128xf32> to vector<2x128xf32>
    %44 = vector.shape_cast %41 : vector<2x128xf32> to vector<2x1x128xf32>
    tpu.vector_store %arg21[%c0_22, %c3, %c32_23], %44 {strides = array<i32>} : memref<2x6x192xf32, #tpu.memory_space<vmem>>, vector<2x1x128xf32>,
    %45 = vector.extract_strided_slice %30 {offsets = [0, 384], sizes = [2, 128], strides = [1, 1]} : vector<2x512xf32> to vector<2x128xf32>
    %c0_24 = arith.constant 0 : index
    %c4 = arith.constant 4 : index
    %c32_25 = arith.constant 32 : index
    %46 = vector.load %arg21[%c0_24, %c4, %c32_25] : memref<2x6x192xf32, #tpu.memory_space<vmem>>, vector<2x1x128xf32>
    %47 = vector.shape_cast %46 : vector<2x1x128xf32> to vector<2x128xf32>
    %48 = vector.shape_cast %45 : vector<2x128xf32> to vector<2x1x128xf32>
    tpu.vector_store %arg21[%c0_24, %c4, %c32_25], %48 {strides = array<i32>} : memref<2x6x192xf32, #tpu.memory_space<vmem>>, vector<2x1x128xf32>,
    %c0_26 = arith.constant 0 : index
    %c0_27 = arith.constant 0 : index
    %c0_28 = arith.constant 0 : index
    %49 = vector.load %arg21[%c0_26, %c0_27, %c0_28] : memref<2x6x192xf32, #tpu.memory_space<vmem>>, vector<2x4x192xf32>
    %50 = vector.shape_cast %49 : vector<2x4x192xf32> to vector<8x192xf32>
    %c0_29 = arith.constant 0 : index
    %c1_30 = arith.constant 1 : index
    %c0_31 = arith.constant 0 : index
    %51 = vector.load %arg21[%c0_29, %c1_30, %c0_31] : memref<2x6x192xf32, #tpu.memory_space<vmem>>, vector<2x4x192xf32>
    %52 = vector.shape_cast %51 : vector<2x4x192xf32> to vector<8x192xf32>
    %c0_32 = arith.constant 0 : index
    %c2_33 = arith.constant 2 : index
    %c0_34 = arith.constant 0 : index
    %53 = vector.load %arg21[%c0_32, %c2_33, %c0_34] : memref<2x6x192xf32, #tpu.memory_space<vmem>>, vector<2x4x192xf32>
    %54 = vector.shape_cast %53 : vector<2x4x192xf32> to vector<8x192xf32>
    %55 = tpu.concatenate %50, %52, %54 in 1 : vector<8x192xf32>, vector<8x192xf32>, vector<8x192xf32> -> vector<8x576xf32>
    %56 = arith.truncf %55 : vector<8x576xf32> to vector<8x576xbf16>
    %c0_35 = arith.constant 0 : index
    %c0_36 = arith.constant 0 : index
    %57 = vector.load %arg6[%c0_35, %c0_36] : memref<576x256xbf16, #tpu.memory_space<vmem>>, vector<576x256xbf16>
    %cst_37 = arith.constant dense<0.000000e+00> : vector<8x256xf32>
    %58 = tpu.matmul %56, %57, %cst_37 {dimension_numbers = #tpu.dot_dimension_numbers<[1], [0], [0], [1], [0, 0, 1, 1], [], []>} : vector<8x576xbf16>, vector<576x256xbf16>, vector<8x256xf32> -> vector<8x256xf32>
    %c0_38 = arith.constant 0 : index
    %c0_39 = arith.constant 0 : index
    %59 = vector.load %arg7[%c0_38, %c0_39] : memref<1x256xf32, #tpu.memory_space<vmem>>, vector<1x256xf32>
    %60 = vector.broadcast %59 : vector<1x256xf32> to vector<8x256xf32>
    %61 = arith.addf %58, %60 : vector<8x256xf32>
    %62 = vector.extract_strided_slice %61 {offsets = [0, 0], sizes = [8, 128], strides = [1, 1]} : vector<8x256xf32> to vector<8x128xf32>
    %63 = vector.extract_strided_slice %61 {offsets = [0, 128], sizes = [8, 128], strides = [1, 1]} : vector<8x256xf32> to vector<8x128xf32>
    %cst_40 = arith.constant dense<0.000000e+00> : vector<128xf32>
    %64 = vector.multi_reduction <add>, %62, %cst_40 [0] : vector<8x128xf32> to vector<128xf32>
    %65 = vector.shape_cast %64 : vector<128xf32> to vector<1x128xf32>
    %cst_41 = arith.constant dense<0.000000e+00> : vector<128xf32>
    %66 = vector.multi_reduction <add>, %63, %cst_41 [0] : vector<8x128xf32> to vector<128xf32>
    %67 = vector.shape_cast %66 : vector<128xf32> to vector<1x128xf32>
    %68 = arith.addf %65, %67 : vector<1x128xf32>
    %69 = arith.mulf %62, %62 : vector<8x128xf32>
    %cst_42 = arith.constant dense<0.000000e+00> : vector<128xf32>
    %70 = vector.multi_reduction <add>, %69, %cst_42 [0] : vector<8x128xf32> to vector<128xf32>
    %71 = vector.shape_cast %70 : vector<128xf32> to vector<1x128xf32>
    %72 = arith.mulf %63, %63 : vector<8x128xf32>
    %cst_43 = arith.constant dense<0.000000e+00> : vector<128xf32>
    %73 = vector.multi_reduction <add>, %72, %cst_43 [0] : vector<8x128xf32> to vector<128xf32>
    %74 = vector.shape_cast %73 : vector<128xf32> to vector<1x128xf32>
    %75 = arith.addf %71, %74 : vector<1x128xf32>
    %c0_44 = arith.constant 0 : index
    %c0_45 = arith.constant 0 : index
    %76 = vector.load %arg10[%c0_44, %c0_45] : memref<128x16xf32, #tpu.memory_space<vmem>>, vector<128x16xf32>
    %cst_46 = arith.constant dense<0.000000e+00> : vector<1x16xf32>
    %77 = tpu.matmul %68, %76, %cst_46 {dimension_numbers = #tpu.dot_dimension_numbers<[1], [0], [0], [1], [0, 0, 1, 1], [], []>} : vector<1x128xf32>, vector<128x16xf32>, vector<1x16xf32> -> vector<1x16xf32>
    %cst_47 = arith.constant 1.280000e+02 : f32
    %78 = vector.broadcast %cst_47 : f32 to vector<1x16xf32>
    %79 = arith.divf %77, %78 : vector<1x16xf32>
    %c0_48 = arith.constant 0 : index
    %c0_49 = arith.constant 0 : index
    %80 = vector.load %arg10[%c0_48, %c0_49] : memref<128x16xf32, #tpu.memory_space<vmem>>, vector<128x16xf32>
    %cst_50 = arith.constant dense<0.000000e+00> : vector<1x16xf32>
    %81 = tpu.matmul %75, %80, %cst_50 {dimension_numbers = #tpu.dot_dimension_numbers<[1], [0], [0], [1], [0, 0, 1, 1], [], []>} : vector<1x128xf32>, vector<128x16xf32>, vector<1x16xf32> -> vector<1x16xf32>
    %cst_51 = arith.constant 1.280000e+02 : f32
    %82 = vector.broadcast %cst_51 : f32 to vector<1x16xf32>
    %83 = arith.divf %81, %82 : vector<1x16xf32>
    %84 = arith.mulf %79, %79 : vector<1x16xf32>
    %85 = arith.subf %83, %84 : vector<1x16xf32>
    %c0_52 = arith.constant 0 : index
    %c0_53 = arith.constant 0 : index
    %86 = vector.load %arg8[%c0_52, %c0_53] : memref<1x16xf32, #tpu.memory_space<vmem>>, vector<1x16xf32>
    %cst_54 = arith.constant 9.99999974E-6 : f32
    %87 = vector.broadcast %cst_54 : f32 to vector<1x16xf32>
    %88 = arith.addf %85, %87 : vector<1x16xf32>
    %89 = math.rsqrt %88 : vector<1x16xf32>
    %90 = arith.mulf %86, %89 : vector<1x16xf32>
    %c0_55 = arith.constant 0 : index
    %c0_56 = arith.constant 0 : index
    %91 = vector.load %arg9[%c0_55, %c0_56] : memref<1x16xf32, #tpu.memory_space<vmem>>, vector<1x16xf32>
    %92 = arith.mulf %79, %90 : vector<1x16xf32>
    %93 = arith.subf %91, %92 : vector<1x16xf32>
    %c0_57 = arith.constant 0 : index
    %c0_58 = arith.constant 0 : index
    %94 = vector.load %arg11[%c0_57, %c0_58] : memref<16x128xf32, #tpu.memory_space<vmem>>, vector<16x128xf32>
    %cst_59 = arith.constant dense<0.000000e+00> : vector<1x128xf32>
    %95 = tpu.matmul %90, %94, %cst_59 {dimension_numbers = #tpu.dot_dimension_numbers<[1], [0], [0], [1], [0, 0, 1, 1], [], []>} : vector<1x16xf32>, vector<16x128xf32>, vector<1x128xf32> -> vector<1x128xf32>
    %c0_60 = arith.constant 0 : index
    %c0_61 = arith.constant 0 : index
    %96 = vector.load %arg11[%c0_60, %c0_61] : memref<16x128xf32, #tpu.memory_space<vmem>>, vector<16x128xf32>
    %cst_62 = arith.constant dense<0.000000e+00> : vector<1x128xf32>
    %97 = tpu.matmul %93, %96, %cst_62 {dimension_numbers = #tpu.dot_dimension_numbers<[1], [0], [0], [1], [0, 0, 1, 1], [], []>} : vector<1x16xf32>, vector<16x128xf32>, vector<1x128xf32> -> vector<1x128xf32>
    %98 = vector.broadcast %95 : vector<1x128xf32> to vector<8x128xf32>
    %99 = arith.mulf %62, %98 : vector<8x128xf32>
    %100 = vector.broadcast %97 : vector<1x128xf32> to vector<8x128xf32>
    %101 = arith.addf %99, %100 : vector<8x128xf32>
    %cst_63 = arith.constant 0.000000e+00 : f32
    %102 = vector.broadcast %cst_63 : f32 to vector<8x128xf32>
    %103 = arith.maximumf %101, %102 : vector<8x128xf32>
    %104 = vector.broadcast %95 : vector<1x128xf32> to vector<8x128xf32>
    %105 = arith.mulf %63, %104 : vector<8x128xf32>
    %106 = vector.broadcast %97 : vector<1x128xf32> to vector<8x128xf32>
    %107 = arith.addf %105, %106 : vector<8x128xf32>
    %cst_64 = arith.constant 0.000000e+00 : f32
    %108 = vector.broadcast %cst_64 : f32 to vector<8x128xf32>
    %109 = arith.maximumf %107, %108 : vector<8x128xf32>
    %110 = vector.shape_cast %103 : vector<8x128xf32> to vector<2x4x128xf32>
    %111 = vector.shape_cast %109 : vector<8x128xf32> to vector<2x4x128xf32>
    %cst_65 = arith.constant 0.000000e+00 : f32
    %112 = vector.broadcast %cst_65 : f32 to vector<2x10x160xf32>
    %c0_66 = arith.constant 0 : index
    %c0_67 = arith.constant 0 : index
    %c0_68 = arith.constant 0 : index
    %113 = vector.load %arg22[%c0_66, %c0_67, %c0_68] : memref<2x10x160xf32, #tpu.memory_space<vmem>>, vector<2x10x160xf32>
    tpu.vector_store %arg22[%c0_66, %c0_67, %c0_68], %112 {strides = array<i32>} : memref<2x10x160xf32, #tpu.memory_space<vmem>>, vector<2x10x160xf32>,
    %114 = vector.extract_strided_slice %110 {offsets = [0, 0, 0], sizes = [2, 1, 128], strides = [1, 1, 1]} : vector<2x4x128xf32> to vector<2x1x128xf32>
    %115 = vector.shape_cast %114 : vector<2x1x128xf32> to vector<2x128xf32>
    %c0_69 = arith.constant 0 : index
    %c1_70 = arith.constant 1 : index
    %c16 = arith.constant 16 : index
    %116 = vector.load %arg22[%c0_69, %c1_70, %c16] : memref<2x10x160xf32, #tpu.memory_space<vmem>>, vector<2x1x128xf32>
    %117 = vector.shape_cast %116 : vector<2x1x128xf32> to vector<2x128xf32>
    %118 = vector.shape_cast %115 : vector<2x128xf32> to vector<2x1x128xf32>
    tpu.vector_store %arg22[%c0_69, %c1_70, %c16], %118 {strides = array<i32>} : memref<2x10x160xf32, #tpu.memory_space<vmem>>, vector<2x1x128xf32>,
    %119 = vector.extract_strided_slice %111 {offsets = [0, 0, 0], sizes = [2, 1, 128], strides = [1, 1, 1]} : vector<2x4x128xf32> to vector<2x1x128xf32>
    %120 = vector.shape_cast %119 : vector<2x1x128xf32> to vector<2x128xf32>
    %c0_71 = arith.constant 0 : index
    %c2_72 = arith.constant 2 : index
    %c16_73 = arith.constant 16 : index
    %121 = vector.load %arg22[%c0_71, %c2_72, %c16_73] : memref<2x10x160xf32, #tpu.memory_space<vmem>>, vector<2x1x128xf32>
    %122 = vector.shape_cast %121 : vector<2x1x128xf32> to vector<2x128xf32>
    %123 = vector.shape_cast %120 : vector<2x128xf32> to vector<2x1x128xf32>
    tpu.vector_store %arg22[%c0_71, %c2_72, %c16_73], %123 {strides = array<i32>} : memref<2x10x160xf32, #tpu.memory_space<vmem>>, vector<2x1x128xf32>,
    %124 = vector.extract_strided_slice %110 {offsets = [0, 1, 0], sizes = [2, 1, 128], strides = [1, 1, 1]} : vector<2x4x128xf32> to vector<2x1x128xf32>
    %125 = vector.shape_cast %124 : vector<2x1x128xf32> to vector<2x128xf32>
    %c0_74 = arith.constant 0 : index
    %c3_75 = arith.constant 3 : index
    %c16_76 = arith.constant 16 : index
    %126 = vector.load %arg22[%c0_74, %c3_75, %c16_76] : memref<2x10x160xf32, #tpu.memory_space<vmem>>, vector<2x1x128xf32>
    %127 = vector.shape_cast %126 : vector<2x1x128xf32> to vector<2x128xf32>
    %128 = vector.shape_cast %125 : vector<2x128xf32> to vector<2x1x128xf32>
    tpu.vector_store %arg22[%c0_74, %c3_75, %c16_76], %128 {strides = array<i32>} : memref<2x10x160xf32, #tpu.memory_space<vmem>>, vector<2x1x128xf32>,
    %129 = vector.extract_strided_slice %111 {offsets = [0, 1, 0], sizes = [2, 1, 128], strides = [1, 1, 1]} : vector<2x4x128xf32> to vector<2x1x128xf32>
    %130 = vector.shape_cast %129 : vector<2x1x128xf32> to vector<2x128xf32>
    %c0_77 = arith.constant 0 : index
    %c4_78 = arith.constant 4 : index
    %c16_79 = arith.constant 16 : index
    %131 = vector.load %arg22[%c0_77, %c4_78, %c16_79] : memref<2x10x160xf32, #tpu.memory_space<vmem>>, vector<2x1x128xf32>
    %132 = vector.shape_cast %131 : vector<2x1x128xf32> to vector<2x128xf32>
    %133 = vector.shape_cast %130 : vector<2x128xf32> to vector<2x1x128xf32>
    tpu.vector_store %arg22[%c0_77, %c4_78, %c16_79], %133 {strides = array<i32>} : memref<2x10x160xf32, #tpu.memory_space<vmem>>, vector<2x1x128xf32>,
    %134 = vector.extract_strided_slice %110 {offsets = [0, 2, 0], sizes = [2, 1, 128], strides = [1, 1, 1]} : vector<2x4x128xf32> to vector<2x1x128xf32>
    %135 = vector.shape_cast %134 : vector<2x1x128xf32> to vector<2x128xf32>
    %c0_80 = arith.constant 0 : index
    %c5 = arith.constant 5 : index
    %c16_81 = arith.constant 16 : index
    %136 = vector.load %arg22[%c0_80, %c5, %c16_81] : memref<2x10x160xf32, #tpu.memory_space<vmem>>, vector<2x1x128xf32>
    %137 = vector.shape_cast %136 : vector<2x1x128xf32> to vector<2x128xf32>
    %138 = vector.shape_cast %135 : vector<2x128xf32> to vector<2x1x128xf32>
    tpu.vector_store %arg22[%c0_80, %c5, %c16_81], %138 {strides = array<i32>} : memref<2x10x160xf32, #tpu.memory_space<vmem>>, vector<2x1x128xf32>,
    %139 = vector.extract_strided_slice %111 {offsets = [0, 2, 0], sizes = [2, 1, 128], strides = [1, 1, 1]} : vector<2x4x128xf32> to vector<2x1x128xf32>
    %140 = vector.shape_cast %139 : vector<2x1x128xf32> to vector<2x128xf32>
    %c0_82 = arith.constant 0 : index
    %c6 = arith.constant 6 : index
    %c16_83 = arith.constant 16 : index
    %141 = vector.load %arg22[%c0_82, %c6, %c16_83] : memref<2x10x160xf32, #tpu.memory_space<vmem>>, vector<2x1x128xf32>
    %142 = vector.shape_cast %141 : vector<2x1x128xf32> to vector<2x128xf32>
    %143 = vector.shape_cast %140 : vector<2x128xf32> to vector<2x1x128xf32>
    tpu.vector_store %arg22[%c0_82, %c6, %c16_83], %143 {strides = array<i32>} : memref<2x10x160xf32, #tpu.memory_space<vmem>>, vector<2x1x128xf32>,
    %144 = vector.extract_strided_slice %110 {offsets = [0, 3, 0], sizes = [2, 1, 128], strides = [1, 1, 1]} : vector<2x4x128xf32> to vector<2x1x128xf32>
    %145 = vector.shape_cast %144 : vector<2x1x128xf32> to vector<2x128xf32>
    %c0_84 = arith.constant 0 : index
    %c7 = arith.constant 7 : index
    %c16_85 = arith.constant 16 : index
    %146 = vector.load %arg22[%c0_84, %c7, %c16_85] : memref<2x10x160xf32, #tpu.memory_space<vmem>>, vector<2x1x128xf32>
    %147 = vector.shape_cast %146 : vector<2x1x128xf32> to vector<2x128xf32>
    %148 = vector.shape_cast %145 : vector<2x128xf32> to vector<2x1x128xf32>
    tpu.vector_store %arg22[%c0_84, %c7, %c16_85], %148 {strides = array<i32>} : memref<2x10x160xf32, #tpu.memory_space<vmem>>, vector<2x1x128xf32>,
    %149 = vector.extract_strided_slice %111 {offsets = [0, 3, 0], sizes = [2, 1, 128], strides = [1, 1, 1]} : vector<2x4x128xf32> to vector<2x1x128xf32>
    %150 = vector.shape_cast %149 : vector<2x1x128xf32> to vector<2x128xf32>
    %c0_86 = arith.constant 0 : index
    %c8 = arith.constant 8 : index
    %c16_87 = arith.constant 16 : index
    %151 = vector.load %arg22[%c0_86, %c8, %c16_87] : memref<2x10x160xf32, #tpu.memory_space<vmem>>, vector<2x1x128xf32>
    %152 = vector.shape_cast %151 : vector<2x1x128xf32> to vector<2x128xf32>
    %153 = vector.shape_cast %150 : vector<2x128xf32> to vector<2x1x128xf32>
    tpu.vector_store %arg22[%c0_86, %c8, %c16_87], %153 {strides = array<i32>} : memref<2x10x160xf32, #tpu.memory_space<vmem>>, vector<2x1x128xf32>,
    %c0_88 = arith.constant 0 : index
    %c0_89 = arith.constant 0 : index
    %c0_90 = arith.constant 0 : index
    %154 = vector.load %arg22[%c0_88, %c0_89, %c0_90] : memref<2x10x160xf32, #tpu.memory_space<vmem>>, vector<2x8x160xf32>
    %155 = vector.shape_cast %154 : vector<2x8x160xf32> to vector<16x160xf32>
    %c0_91 = arith.constant 0 : index
    %c1_92 = arith.constant 1 : index
    %c0_93 = arith.constant 0 : index
    %156 = vector.load %arg22[%c0_91, %c1_92, %c0_93] : memref<2x10x160xf32, #tpu.memory_space<vmem>>, vector<2x8x160xf32>
    %157 = vector.shape_cast %156 : vector<2x8x160xf32> to vector<16x160xf32>
    %c0_94 = arith.constant 0 : index
    %c2_95 = arith.constant 2 : index
    %c0_96 = arith.constant 0 : index
    %158 = vector.load %arg22[%c0_94, %c2_95, %c0_96] : memref<2x10x160xf32, #tpu.memory_space<vmem>>, vector<2x8x160xf32>
    %159 = vector.shape_cast %158 : vector<2x8x160xf32> to vector<16x160xf32>
    %160 = tpu.concatenate %155, %157, %159 in 1 : vector<16x160xf32>, vector<16x160xf32>, vector<16x160xf32> -> vector<16x480xf32>
    %161 = arith.truncf %160 : vector<16x480xf32> to vector<16x480xbf16>
    %c0_97 = arith.constant 0 : index
    %c0_98 = arith.constant 0 : index
    %162 = vector.load %arg12[%c0_97, %c0_98] : memref<480x256xbf16, #tpu.memory_space<vmem>>, vector<480x256xbf16>
    %cst_99 = arith.constant dense<0.000000e+00> : vector<16x256xf32>
    %163 = tpu.matmul %161, %162, %cst_99 {dimension_numbers = #tpu.dot_dimension_numbers<[1], [0], [0], [1], [0, 0, 1, 1], [], []>} : vector<16x480xbf16>, vector<480x256xbf16>, vector<16x256xf32> -> vector<16x256xf32>
    %c0_100 = arith.constant 0 : index
    %c0_101 = arith.constant 0 : index
    %164 = vector.load %arg13[%c0_100, %c0_101] : memref<1x256xf32, #tpu.memory_space<vmem>>, vector<1x256xf32>
    %165 = vector.broadcast %164 : vector<1x256xf32> to vector<16x256xf32>
    %166 = arith.addf %163, %165 : vector<16x256xf32>
    %167 = vector.extract_strided_slice %166 {offsets = [0, 0], sizes = [16, 128], strides = [1, 1]} : vector<16x256xf32> to vector<16x128xf32>
    %168 = vector.extract_strided_slice %166 {offsets = [0, 128], sizes = [16, 128], strides = [1, 1]} : vector<16x256xf32> to vector<16x128xf32>
    %cst_102 = arith.constant dense<0.000000e+00> : vector<128xf32>
    %169 = vector.multi_reduction <add>, %167, %cst_102 [0] : vector<16x128xf32> to vector<128xf32>
    %170 = vector.shape_cast %169 : vector<128xf32> to vector<1x128xf32>
    %cst_103 = arith.constant dense<0.000000e+00> : vector<128xf32>
    %171 = vector.multi_reduction <add>, %168, %cst_103 [0] : vector<16x128xf32> to vector<128xf32>
    %172 = vector.shape_cast %171 : vector<128xf32> to vector<1x128xf32>
    %173 = arith.addf %170, %172 : vector<1x128xf32>
    %174 = arith.mulf %167, %167 : vector<16x128xf32>
    %cst_104 = arith.constant dense<0.000000e+00> : vector<128xf32>
    %175 = vector.multi_reduction <add>, %174, %cst_104 [0] : vector<16x128xf32> to vector<128xf32>
    %176 = vector.shape_cast %175 : vector<128xf32> to vector<1x128xf32>
    %177 = arith.mulf %168, %168 : vector<16x128xf32>
    %cst_105 = arith.constant dense<0.000000e+00> : vector<128xf32>
    %178 = vector.multi_reduction <add>, %177, %cst_105 [0] : vector<16x128xf32> to vector<128xf32>
    %179 = vector.shape_cast %178 : vector<128xf32> to vector<1x128xf32>
    %180 = arith.addf %176, %179 : vector<1x128xf32>
    %c0_106 = arith.constant 0 : index
    %c0_107 = arith.constant 0 : index
    %181 = vector.load %arg16[%c0_106, %c0_107] : memref<128x8xf32, #tpu.memory_space<vmem>>, vector<128x8xf32>
    %cst_108 = arith.constant dense<0.000000e+00> : vector<1x8xf32>
    %182 = tpu.matmul %173, %181, %cst_108 {dimension_numbers = #tpu.dot_dimension_numbers<[1], [0], [0], [1], [0, 0, 1, 1], [], []>} : vector<1x128xf32>, vector<128x8xf32>, vector<1x8xf32> -> vector<1x8xf32>
    %cst_109 = arith.constant 5.120000e+02 : f32
    %183 = vector.broadcast %cst_109 : f32 to vector<1x8xf32>
    %184 = arith.divf %182, %183 : vector<1x8xf32>
    %c0_110 = arith.constant 0 : index
    %c0_111 = arith.constant 0 : index
    %185 = vector.load %arg16[%c0_110, %c0_111] : memref<128x8xf32, #tpu.memory_space<vmem>>, vector<128x8xf32>
    %cst_112 = arith.constant dense<0.000000e+00> : vector<1x8xf32>
    %186 = tpu.matmul %180, %185, %cst_112 {dimension_numbers = #tpu.dot_dimension_numbers<[1], [0], [0], [1], [0, 0, 1, 1], [], []>} : vector<1x128xf32>, vector<128x8xf32>, vector<1x8xf32> -> vector<1x8xf32>
    %cst_113 = arith.constant 5.120000e+02 : f32
    %187 = vector.broadcast %cst_113 : f32 to vector<1x8xf32>
    %188 = arith.divf %186, %187 : vector<1x8xf32>
    %189 = arith.mulf %184, %184 : vector<1x8xf32>
    %190 = arith.subf %188, %189 : vector<1x8xf32>
    %c0_114 = arith.constant 0 : index
    %c0_115 = arith.constant 0 : index
    %191 = vector.load %arg14[%c0_114, %c0_115] : memref<1x8xf32, #tpu.memory_space<vmem>>, vector<1x8xf32>
    %cst_116 = arith.constant 9.99999974E-6 : f32
    %192 = vector.broadcast %cst_116 : f32 to vector<1x8xf32>
    %193 = arith.addf %190, %192 : vector<1x8xf32>
    %194 = math.rsqrt %193 : vector<1x8xf32>
    %195 = arith.mulf %191, %194 : vector<1x8xf32>
    %c0_117 = arith.constant 0 : index
    %c0_118 = arith.constant 0 : index
    %196 = vector.load %arg15[%c0_117, %c0_118] : memref<1x8xf32, #tpu.memory_space<vmem>>, vector<1x8xf32>
    %197 = arith.mulf %184, %195 : vector<1x8xf32>
    %198 = arith.subf %196, %197 : vector<1x8xf32>
    %c0_119 = arith.constant 0 : index
    %c0_120 = arith.constant 0 : index
    %199 = vector.load %arg17[%c0_119, %c0_120] : memref<8x128xf32, #tpu.memory_space<vmem>>, vector<8x128xf32>
    %cst_121 = arith.constant dense<0.000000e+00> : vector<1x128xf32>
    %200 = tpu.matmul %195, %199, %cst_121 {dimension_numbers = #tpu.dot_dimension_numbers<[1], [0], [0], [1], [0, 0, 1, 1], [], []>} : vector<1x8xf32>, vector<8x128xf32>, vector<1x128xf32> -> vector<1x128xf32>
    %c0_122 = arith.constant 0 : index
    %c0_123 = arith.constant 0 : index
    %201 = vector.load %arg17[%c0_122, %c0_123] : memref<8x128xf32, #tpu.memory_space<vmem>>, vector<8x128xf32>
    %cst_124 = arith.constant dense<0.000000e+00> : vector<1x128xf32>
    %202 = tpu.matmul %198, %201, %cst_124 {dimension_numbers = #tpu.dot_dimension_numbers<[1], [0], [0], [1], [0, 0, 1, 1], [], []>} : vector<1x8xf32>, vector<8x128xf32>, vector<1x128xf32> -> vector<1x128xf32>
    %203 = vector.broadcast %200 : vector<1x128xf32> to vector<16x128xf32>
    %204 = arith.mulf %167, %203 : vector<16x128xf32>
    %205 = vector.broadcast %202 : vector<1x128xf32> to vector<16x128xf32>
    %206 = arith.addf %204, %205 : vector<16x128xf32>
    %cst_125 = arith.constant 0.000000e+00 : f32
    %207 = vector.broadcast %cst_125 : f32 to vector<16x128xf32>
    %208 = arith.maximumf %206, %207 : vector<16x128xf32>
    %209 = vector.broadcast %200 : vector<1x128xf32> to vector<16x128xf32>
    %210 = arith.mulf %168, %209 : vector<16x128xf32>
    %211 = vector.broadcast %202 : vector<1x128xf32> to vector<16x128xf32>
    %212 = arith.addf %210, %211 : vector<16x128xf32>
    %cst_126 = arith.constant 0.000000e+00 : f32
    %213 = vector.broadcast %cst_126 : f32 to vector<16x128xf32>
    %214 = arith.maximumf %212, %213 : vector<16x128xf32>
    %215 = vector.shape_cast %208 : vector<16x128xf32> to vector<2x8x128xf32>
    %216 = vector.shape_cast %214 : vector<16x128xf32> to vector<2x8x128xf32>
    %cst_127 = arith.constant 0.000000e+00 : f32
    %217 = vector.broadcast %cst_127 : f32 to vector<2x18x144xf32>
    %c0_128 = arith.constant 0 : index
    %c0_129 = arith.constant 0 : index
    %c0_130 = arith.constant 0 : index
    %218 = vector.load %arg23[%c0_128, %c0_129, %c0_130] : memref<2x18x144xf32, #tpu.memory_space<vmem>>, vector<2x18x144xf32>
    tpu.vector_store %arg23[%c0_128, %c0_129, %c0_130], %217 {strides = array<i32>} : memref<2x18x144xf32, #tpu.memory_space<vmem>>, vector<2x18x144xf32>,
    %219 = vector.extract_strided_slice %215 {offsets = [0, 0, 0], sizes = [2, 1, 128], strides = [1, 1, 1]} : vector<2x8x128xf32> to vector<2x1x128xf32>
    %220 = vector.shape_cast %219 : vector<2x1x128xf32> to vector<2x128xf32>
    %c0_131 = arith.constant 0 : index
    %c1_132 = arith.constant 1 : index
    %c8_133 = arith.constant 8 : index
    %221 = vector.load %arg23[%c0_131, %c1_132, %c8_133] : memref<2x18x144xf32, #tpu.memory_space<vmem>>, vector<2x1x128xf32>
    %222 = vector.shape_cast %221 : vector<2x1x128xf32> to vector<2x128xf32>
    %223 = vector.shape_cast %220 : vector<2x128xf32> to vector<2x1x128xf32>
    tpu.vector_store %arg23[%c0_131, %c1_132, %c8_133], %223 {strides = array<i32>} : memref<2x18x144xf32, #tpu.memory_space<vmem>>, vector<2x1x128xf32>,
    %224 = vector.extract_strided_slice %216 {offsets = [0, 0, 0], sizes = [2, 1, 128], strides = [1, 1, 1]} : vector<2x8x128xf32> to vector<2x1x128xf32>
    %225 = vector.shape_cast %224 : vector<2x1x128xf32> to vector<2x128xf32>
    %c0_134 = arith.constant 0 : index
    %c2_135 = arith.constant 2 : index
    %c8_136 = arith.constant 8 : index
    %226 = vector.load %arg23[%c0_134, %c2_135, %c8_136] : memref<2x18x144xf32, #tpu.memory_space<vmem>>, vector<2x1x128xf32>
    %227 = vector.shape_cast %226 : vector<2x1x128xf32> to vector<2x128xf32>
    %228 = vector.shape_cast %225 : vector<2x128xf32> to vector<2x1x128xf32>
    tpu.vector_store %arg23[%c0_134, %c2_135, %c8_136], %228 {strides = array<i32>} : memref<2x18x144xf32, #tpu.memory_space<vmem>>, vector<2x1x128xf32>,
    %229 = vector.extract_strided_slice %215 {offsets = [0, 1, 0], sizes = [2, 1, 128], strides = [1, 1, 1]} : vector<2x8x128xf32> to vector<2x1x128xf32>
    %230 = vector.shape_cast %229 : vector<2x1x128xf32> to vector<2x128xf32>
    %c0_137 = arith.constant 0 : index
    %c3_138 = arith.constant 3 : index
    %c8_139 = arith.constant 8 : index
    %231 = vector.load %arg23[%c0_137, %c3_138, %c8_139] : memref<2x18x144xf32, #tpu.memory_space<vmem>>, vector<2x1x128xf32>
    %232 = vector.shape_cast %231 : vector<2x1x128xf32> to vector<2x128xf32>
    %233 = vector.shape_cast %230 : vector<2x128xf32> to vector<2x1x128xf32>
    tpu.vector_store %arg23[%c0_137, %c3_138, %c8_139], %233 {strides = array<i32>} : memref<2x18x144xf32, #tpu.memory_space<vmem>>, vector<2x1x128xf32>,
    %234 = vector.extract_strided_slice %216 {offsets = [0, 1, 0], sizes = [2, 1, 128], strides = [1, 1, 1]} : vector<2x8x128xf32> to vector<2x1x128xf32>
    %235 = vector.shape_cast %234 : vector<2x1x128xf32> to vector<2x128xf32>
    %c0_140 = arith.constant 0 : index
    %c4_141 = arith.constant 4 : index
    %c8_142 = arith.constant 8 : index
    %236 = vector.load %arg23[%c0_140, %c4_141, %c8_142] : memref<2x18x144xf32, #tpu.memory_space<vmem>>, vector<2x1x128xf32>
    %237 = vector.shape_cast %236 : vector<2x1x128xf32> to vector<2x128xf32>
    %238 = vector.shape_cast %235 : vector<2x128xf32> to vector<2x1x128xf32>
    tpu.vector_store %arg23[%c0_140, %c4_141, %c8_142], %238 {strides = array<i32>} : memref<2x18x144xf32, #tpu.memory_space<vmem>>, vector<2x1x128xf32>,
    %239 = vector.extract_strided_slice %215 {offsets = [0, 2, 0], sizes = [2, 1, 128], strides = [1, 1, 1]} : vector<2x8x128xf32> to vector<2x1x128xf32>
    %240 = vector.shape_cast %239 : vector<2x1x128xf32> to vector<2x128xf32>
    %c0_143 = arith.constant 0 : index
    %c5_144 = arith.constant 5 : index
    %c8_145 = arith.constant 8 : index
    %241 = vector.load %arg23[%c0_143, %c5_144, %c8_145] : memref<2x18x144xf32, #tpu.memory_space<vmem>>, vector<2x1x128xf32>
    %242 = vector.shape_cast %241 : vector<2x1x128xf32> to vector<2x128xf32>
    %243 = vector.shape_cast %240 : vector<2x128xf32> to vector<2x1x128xf32>
    tpu.vector_store %arg23[%c0_143, %c5_144, %c8_145], %243 {strides = array<i32>} : memref<2x18x144xf32, #tpu.memory_space<vmem>>, vector<2x1x128xf32>,
    %244 = vector.extract_strided_slice %216 {offsets = [0, 2, 0], sizes = [2, 1, 128], strides = [1, 1, 1]} : vector<2x8x128xf32> to vector<2x1x128xf32>
    %245 = vector.shape_cast %244 : vector<2x1x128xf32> to vector<2x128xf32>
    %c0_146 = arith.constant 0 : index
    %c6_147 = arith.constant 6 : index
    %c8_148 = arith.constant 8 : index
    %246 = vector.load %arg23[%c0_146, %c6_147, %c8_148] : memref<2x18x144xf32, #tpu.memory_space<vmem>>, vector<2x1x128xf32>
    %247 = vector.shape_cast %246 : vector<2x1x128xf32> to vector<2x128xf32>
    %248 = vector.shape_cast %245 : vector<2x128xf32> to vector<2x1x128xf32>
    tpu.vector_store %arg23[%c0_146, %c6_147, %c8_148], %248 {strides = array<i32>} : memref<2x18x144xf32, #tpu.memory_space<vmem>>, vector<2x1x128xf32>,
    %249 = vector.extract_strided_slice %215 {offsets = [0, 3, 0], sizes = [2, 1, 128], strides = [1, 1, 1]} : vector<2x8x128xf32> to vector<2x1x128xf32>
    %250 = vector.shape_cast %249 : vector<2x1x128xf32> to vector<2x128xf32>
    %c0_149 = arith.constant 0 : index
    %c7_150 = arith.constant 7 : index
    %c8_151 = arith.constant 8 : index
    %251 = vector.load %arg23[%c0_149, %c7_150, %c8_151] : memref<2x18x144xf32, #tpu.memory_space<vmem>>, vector<2x1x128xf32>
    %252 = vector.shape_cast %251 : vector<2x1x128xf32> to vector<2x128xf32>
    %253 = vector.shape_cast %250 : vector<2x128xf32> to vector<2x1x128xf32>
    tpu.vector_store %arg23[%c0_149, %c7_150, %c8_151], %253 {strides = array<i32>} : memref<2x18x144xf32, #tpu.memory_space<vmem>>, vector<2x1x128xf32>,
    %254 = vector.extract_strided_slice %216 {offsets = [0, 3, 0], sizes = [2, 1, 128], strides = [1, 1, 1]} : vector<2x8x128xf32> to vector<2x1x128xf32>
    %255 = vector.shape_cast %254 : vector<2x1x128xf32> to vector<2x128xf32>
    %c0_152 = arith.constant 0 : index
    %c8_153 = arith.constant 8 : index
    %c8_154 = arith.constant 8 : index
    %256 = vector.load %arg23[%c0_152, %c8_153, %c8_154] : memref<2x18x144xf32, #tpu.memory_space<vmem>>, vector<2x1x128xf32>
    %257 = vector.shape_cast %256 : vector<2x1x128xf32> to vector<2x128xf32>
    %258 = vector.shape_cast %255 : vector<2x128xf32> to vector<2x1x128xf32>
    tpu.vector_store %arg23[%c0_152, %c8_153, %c8_154], %258 {strides = array<i32>} : memref<2x18x144xf32, #tpu.memory_space<vmem>>, vector<2x1x128xf32>,
    %259 = vector.extract_strided_slice %215 {offsets = [0, 4, 0], sizes = [2, 1, 128], strides = [1, 1, 1]} : vector<2x8x128xf32> to vector<2x1x128xf32>
    %260 = vector.shape_cast %259 : vector<2x1x128xf32> to vector<2x128xf32>
    %c0_155 = arith.constant 0 : index
    %c9 = arith.constant 9 : index
    %c8_156 = arith.constant 8 : index
    %261 = vector.load %arg23[%c0_155, %c9, %c8_156] : memref<2x18x144xf32, #tpu.memory_space<vmem>>, vector<2x1x128xf32>
    %262 = vector.shape_cast %261 : vector<2x1x128xf32> to vector<2x128xf32>
    %263 = vector.shape_cast %260 : vector<2x128xf32> to vector<2x1x128xf32>
    tpu.vector_store %arg23[%c0_155, %c9, %c8_156], %263 {strides = array<i32>} : memref<2x18x144xf32, #tpu.memory_space<vmem>>, vector<2x1x128xf32>,
    %264 = vector.extract_strided_slice %216 {offsets = [0, 4, 0], sizes = [2, 1, 128], strides = [1, 1, 1]} : vector<2x8x128xf32> to vector<2x1x128xf32>
    %265 = vector.shape_cast %264 : vector<2x1x128xf32> to vector<2x128xf32>
    %c0_157 = arith.constant 0 : index
    %c10 = arith.constant 10 : index
    %c8_158 = arith.constant 8 : index
    %266 = vector.load %arg23[%c0_157, %c10, %c8_158] : memref<2x18x144xf32, #tpu.memory_space<vmem>>, vector<2x1x128xf32>
    %267 = vector.shape_cast %266 : vector<2x1x128xf32> to vector<2x128xf32>
    %268 = vector.shape_cast %265 : vector<2x128xf32> to vector<2x1x128xf32>
    tpu.vector_store %arg23[%c0_157, %c10, %c8_158], %268 {strides = array<i32>} : memref<2x18x144xf32, #tpu.memory_space<vmem>>, vector<2x1x128xf32>,
    %269 = vector.extract_strided_slice %215 {offsets = [0, 5, 0], sizes = [2, 1, 128], strides = [1, 1, 1]} : vector<2x8x128xf32> to vector<2x1x128xf32>
    %270 = vector.shape_cast %269 : vector<2x1x128xf32> to vector<2x128xf32>
    %c0_159 = arith.constant 0 : index
    %c11 = arith.constant 11 : index
    %c8_160 = arith.constant 8 : index
    %271 = vector.load %arg23[%c0_159, %c11, %c8_160] : memref<2x18x144xf32, #tpu.memory_space<vmem>>, vector<2x1x128xf32>
    %272 = vector.shape_cast %271 : vector<2x1x128xf32> to vector<2x128xf32>
    %273 = vector.shape_cast %270 : vector<2x128xf32> to vector<2x1x128xf32>
    tpu.vector_store %arg23[%c0_159, %c11, %c8_160], %273 {strides = array<i32>} : memref<2x18x144xf32, #tpu.memory_space<vmem>>, vector<2x1x128xf32>,
    %274 = vector.extract_strided_slice %216 {offsets = [0, 5, 0], sizes = [2, 1, 128], strides = [1, 1, 1]} : vector<2x8x128xf32> to vector<2x1x128xf32>
    %275 = vector.shape_cast %274 : vector<2x1x128xf32> to vector<2x128xf32>
    %c0_161 = arith.constant 0 : index
    %c12 = arith.constant 12 : index
    %c8_162 = arith.constant 8 : index
    %276 = vector.load %arg23[%c0_161, %c12, %c8_162] : memref<2x18x144xf32, #tpu.memory_space<vmem>>, vector<2x1x128xf32>
    %277 = vector.shape_cast %276 : vector<2x1x128xf32> to vector<2x128xf32>
    %278 = vector.shape_cast %275 : vector<2x128xf32> to vector<2x1x128xf32>
    tpu.vector_store %arg23[%c0_161, %c12, %c8_162], %278 {strides = array<i32>} : memref<2x18x144xf32, #tpu.memory_space<vmem>>, vector<2x1x128xf32>,
    %279 = vector.extract_strided_slice %215 {offsets = [0, 6, 0], sizes = [2, 1, 128], strides = [1, 1, 1]} : vector<2x8x128xf32> to vector<2x1x128xf32>
    %280 = vector.shape_cast %279 : vector<2x1x128xf32> to vector<2x128xf32>
    %c0_163 = arith.constant 0 : index
    %c13 = arith.constant 13 : index
    %c8_164 = arith.constant 8 : index
    %281 = vector.load %arg23[%c0_163, %c13, %c8_164] : memref<2x18x144xf32, #tpu.memory_space<vmem>>, vector<2x1x128xf32>
    %282 = vector.shape_cast %281 : vector<2x1x128xf32> to vector<2x128xf32>
    %283 = vector.shape_cast %280 : vector<2x128xf32> to vector<2x1x128xf32>
    tpu.vector_store %arg23[%c0_163, %c13, %c8_164], %283 {strides = array<i32>} : memref<2x18x144xf32, #tpu.memory_space<vmem>>, vector<2x1x128xf32>,
    %284 = vector.extract_strided_slice %216 {offsets = [0, 6, 0], sizes = [2, 1, 128], strides = [1, 1, 1]} : vector<2x8x128xf32> to vector<2x1x128xf32>
    %285 = vector.shape_cast %284 : vector<2x1x128xf32> to vector<2x128xf32>
    %c0_165 = arith.constant 0 : index
    %c14 = arith.constant 14 : index
    %c8_166 = arith.constant 8 : index
    %286 = vector.load %arg23[%c0_165, %c14, %c8_166] : memref<2x18x144xf32, #tpu.memory_space<vmem>>, vector<2x1x128xf32>
    %287 = vector.shape_cast %286 : vector<2x1x128xf32> to vector<2x128xf32>
    %288 = vector.shape_cast %285 : vector<2x128xf32> to vector<2x1x128xf32>
    tpu.vector_store %arg23[%c0_165, %c14, %c8_166], %288 {strides = array<i32>} : memref<2x18x144xf32, #tpu.memory_space<vmem>>, vector<2x1x128xf32>,
    %289 = vector.extract_strided_slice %215 {offsets = [0, 7, 0], sizes = [2, 1, 128], strides = [1, 1, 1]} : vector<2x8x128xf32> to vector<2x1x128xf32>
    %290 = vector.shape_cast %289 : vector<2x1x128xf32> to vector<2x128xf32>
    %c0_167 = arith.constant 0 : index
    %c15 = arith.constant 15 : index
    %c8_168 = arith.constant 8 : index
    %291 = vector.load %arg23[%c0_167, %c15, %c8_168] : memref<2x18x144xf32, #tpu.memory_space<vmem>>, vector<2x1x128xf32>
    %292 = vector.shape_cast %291 : vector<2x1x128xf32> to vector<2x128xf32>
    %293 = vector.shape_cast %290 : vector<2x128xf32> to vector<2x1x128xf32>
    tpu.vector_store %arg23[%c0_167, %c15, %c8_168], %293 {strides = array<i32>} : memref<2x18x144xf32, #tpu.memory_space<vmem>>, vector<2x1x128xf32>,
    %294 = vector.extract_strided_slice %216 {offsets = [0, 7, 0], sizes = [2, 1, 128], strides = [1, 1, 1]} : vector<2x8x128xf32> to vector<2x1x128xf32>
    %295 = vector.shape_cast %294 : vector<2x1x128xf32> to vector<2x128xf32>
    %c0_169 = arith.constant 0 : index
    %c16_170 = arith.constant 16 : index
    %c8_171 = arith.constant 8 : index
    %296 = vector.load %arg23[%c0_169, %c16_170, %c8_171] : memref<2x18x144xf32, #tpu.memory_space<vmem>>, vector<2x1x128xf32>
    %297 = vector.shape_cast %296 : vector<2x1x128xf32> to vector<2x128xf32>
    %298 = vector.shape_cast %295 : vector<2x128xf32> to vector<2x1x128xf32>
    tpu.vector_store %arg23[%c0_169, %c16_170, %c8_171], %298 {strides = array<i32>} : memref<2x18x144xf32, #tpu.memory_space<vmem>>, vector<2x1x128xf32>,
    %c0_172 = arith.constant 0 : index
    %c0_173 = arith.constant 0 : index
    %c0_174 = arith.constant 0 : index
    %299 = vector.load %arg23[%c0_172, %c0_173, %c0_174] : memref<2x18x144xf32, #tpu.memory_space<vmem>>, vector<2x16x144xf32>
    %300 = vector.shape_cast %299 : vector<2x16x144xf32> to vector<32x144xf32>
    %c0_175 = arith.constant 0 : index
    %c1_176 = arith.constant 1 : index
    %c0_177 = arith.constant 0 : index
    %301 = vector.load %arg23[%c0_175, %c1_176, %c0_177] : memref<2x18x144xf32, #tpu.memory_space<vmem>>, vector<2x16x144xf32>
    %302 = vector.shape_cast %301 : vector<2x16x144xf32> to vector<32x144xf32>
    %c0_178 = arith.constant 0 : index
    %c2_179 = arith.constant 2 : index
    %c0_180 = arith.constant 0 : index
    %303 = vector.load %arg23[%c0_178, %c2_179, %c0_180] : memref<2x18x144xf32, #tpu.memory_space<vmem>>, vector<2x16x144xf32>
    %304 = vector.shape_cast %303 : vector<2x16x144xf32> to vector<32x144xf32>
    %305 = tpu.concatenate %300, %302, %304 in 1 : vector<32x144xf32>, vector<32x144xf32>, vector<32x144xf32> -> vector<32x432xf32>
    %306 = arith.truncf %305 : vector<32x432xf32> to vector<32x432xbf16>
    %c0_181 = arith.constant 0 : index
    %c0_182 = arith.constant 0 : index
    %307 = vector.load %arg18[%c0_181, %c0_182] : memref<432x192xbf16, #tpu.memory_space<vmem>>, vector<432x192xbf16>
    %cst_183 = arith.constant dense<0.000000e+00> : vector<32x192xf32>
    %308 = tpu.matmul %306, %307, %cst_183 {dimension_numbers = #tpu.dot_dimension_numbers<[1], [0], [0], [1], [0, 0, 1, 1], [], []>} : vector<32x432xbf16>, vector<432x192xbf16>, vector<32x192xf32> -> vector<32x192xf32>
    %c0_184 = arith.constant 0 : index
    %c0_185 = arith.constant 0 : index
    %309 = vector.load %arg19[%c0_184, %c0_185] : memref<1x192xf32, #tpu.memory_space<vmem>>, vector<1x192xf32>
    %310 = vector.broadcast %309 : vector<1x192xf32> to vector<32x192xf32>
    %311 = arith.addf %308, %310 : vector<32x192xf32>
    %312 = vector.extract_strided_slice %311 {offsets = [0, 0], sizes = [32, 96], strides = [1, 1]} : vector<32x192xf32> to vector<32x96xf32>
    %313 = vector.extract_strided_slice %311 {offsets = [0, 96], sizes = [32, 96], strides = [1, 1]} : vector<32x192xf32> to vector<32x96xf32>
    %314 = math.tanh %312 : vector<32x96xf32>
    %315 = vector.shape_cast %314 : vector<32x96xf32> to vector<2x16x96xf32>
    %c0_186 = arith.constant 0 : index
    %c0_187 = arith.constant 0 : index
    %c0_188 = arith.constant 0 : index
    %c0_189 = arith.constant 0 : index
    %316 = vector.load %arg20[%c0_186, %c0_187, %c0_188, %c0_189] : memref<2x2x16x96xf32, #tpu.memory_space<vmem>>, vector<1x2x16x96xf32>
    %317 = vector.shape_cast %316 : vector<1x2x16x96xf32> to vector<2x16x96xf32>
    %318 = vector.shape_cast %315 : vector<2x16x96xf32> to vector<1x2x16x96xf32>
    tpu.vector_store %arg20[%c0_186, %c0_187, %c0_188, %c0_189], %318 {strides = array<i32>} : memref<2x2x16x96xf32, #tpu.memory_space<vmem>>, vector<1x2x16x96xf32>,
    %319 = math.tanh %313 : vector<32x96xf32>
    %320 = vector.shape_cast %319 : vector<32x96xf32> to vector<2x16x96xf32>
    %c1_190 = arith.constant 1 : index
    %c0_191 = arith.constant 0 : index
    %c0_192 = arith.constant 0 : index
    %c0_193 = arith.constant 0 : index
    %321 = vector.load %arg20[%c1_190, %c0_191, %c0_192, %c0_193] : memref<2x2x16x96xf32, #tpu.memory_space<vmem>>, vector<1x2x16x96xf32>
    %322 = vector.shape_cast %321 : vector<1x2x16x96xf32> to vector<2x16x96xf32>
    %323 = vector.shape_cast %320 : vector<2x16x96xf32> to vector<1x2x16x96xf32>
    tpu.vector_store %arg20[%c1_190, %c0_191, %c0_192, %c0_193], %323 {strides = array<i32>} : memref<2x2x16x96xf32, #tpu.memory_space<vmem>>, vector<1x2x16x96xf32>,
    return
  }
  func.func @transform_0(%arg0: i32) -> (i32, i32) {
    %c0_i32 = arith.constant 0 : i32
    %c0_i32_0 = arith.constant 0 : i32
    %c0_i32_1 = arith.constant 0 : i32
    return %c0_i32, %c0_i32_0 : i32, i32
  }
  func.func @transform_1(%arg0: i32) -> (i32, i32) {
    %c0_i32 = arith.constant 0 : i32
    %c0_i32_0 = arith.constant 0 : i32
    %c0_i32_1 = arith.constant 0 : i32
    return %c0_i32, %c0_i32_0 : i32, i32
  }
  func.func @transform_2(%arg0: i32) -> (i32, i32) {
    %c0_i32 = arith.constant 0 : i32
    %c0_i32_0 = arith.constant 0 : i32
    %c0_i32_1 = arith.constant 0 : i32
    return %c0_i32, %c0_i32_0 : i32, i32
  }
  func.func @transform_3(%arg0: i32) -> (i32, i32) {
    %c0_i32 = arith.constant 0 : i32
    %c0_i32_0 = arith.constant 0 : i32
    %c0_i32_1 = arith.constant 0 : i32
    return %c0_i32, %c0_i32_0 : i32, i32
  }
  func.func @transform_4(%arg0: i32) -> (i32, i32) {
    %c0_i32 = arith.constant 0 : i32
    %c0_i32_0 = arith.constant 0 : i32
    %c0_i32_1 = arith.constant 0 : i32
    return %c0_i32, %c0_i32_0 : i32, i32
  }
  func.func @transform_5(%arg0: i32) -> (i32, i32) {
    %c0_i32 = arith.constant 0 : i32
    %c0_i32_0 = arith.constant 0 : i32
    %c0_i32_1 = arith.constant 0 : i32
    return %c0_i32, %c0_i32_0 : i32, i32
  }
  func.func @transform_6(%arg0: i32) -> (i32, i32) {
    %c0_i32 = arith.constant 0 : i32
    %c0_i32_0 = arith.constant 0 : i32
    %c0_i32_1 = arith.constant 0 : i32
    return %c0_i32, %c0_i32_0 : i32, i32
  }
  func.func @transform_7(%arg0: i32) -> (i32, i32) {
    %c0_i32 = arith.constant 0 : i32
    %c0_i32_0 = arith.constant 0 : i32
    %c0_i32_1 = arith.constant 0 : i32
    return %c0_i32, %c0_i32_0 : i32, i32
  }
  func.func @transform_8(%arg0: i32) -> (i32, i32) {
    %c0_i32 = arith.constant 0 : i32
    %c0_i32_0 = arith.constant 0 : i32
    %c0_i32_1 = arith.constant 0 : i32
    return %c0_i32, %c0_i32_0 : i32, i32
  }
  func.func @transform_9(%arg0: i32) -> (i32, i32) {
    %c0_i32 = arith.constant 0 : i32
    %c0_i32_0 = arith.constant 0 : i32
    %c0_i32_1 = arith.constant 0 : i32
    return %c0_i32, %c0_i32_0 : i32, i32
  }
  func.func @transform_10(%arg0: i32) -> (i32, i32) {
    %c0_i32 = arith.constant 0 : i32
    %c0_i32_0 = arith.constant 0 : i32
    %c0_i32_1 = arith.constant 0 : i32
    return %c0_i32, %c0_i32_0 : i32, i32
  }
  func.func @transform_11(%arg0: i32) -> (i32, i32) {
    %c0_i32 = arith.constant 0 : i32
    %c0_i32_0 = arith.constant 0 : i32
    %c0_i32_1 = arith.constant 0 : i32
    return %c0_i32, %c0_i32_0 : i32, i32
  }
  func.func @transform_12(%arg0: i32) -> (i32, i32) {
    %c0_i32 = arith.constant 0 : i32
    %c0_i32_0 = arith.constant 0 : i32
    %c0_i32_1 = arith.constant 0 : i32
    return %c0_i32, %c0_i32_0 : i32, i32
  }
  func.func @transform_13(%arg0: i32) -> (i32, i32) {
    %c0_i32 = arith.constant 0 : i32
    %c0_i32_0 = arith.constant 0 : i32
    %c0_i32_1 = arith.constant 0 : i32
    return %c0_i32, %c0_i32_0 : i32, i32
  }
  func.func @transform_14(%arg0: i32) -> (i32, i32) {
    %c0_i32 = arith.constant 0 : i32
    %c0_i32_0 = arith.constant 0 : i32
    %c0_i32_1 = arith.constant 0 : i32
    return %c0_i32, %c0_i32_0 : i32, i32
  }
  func.func @transform_15(%arg0: i32) -> (i32, i32) {
    %c0_i32 = arith.constant 0 : i32
    %c0_i32_0 = arith.constant 0 : i32
    %c0_i32_1 = arith.constant 0 : i32
    return %c0_i32, %c0_i32_0 : i32, i32
  }
  func.func @transform_16(%arg0: i32) -> (i32, i32) {
    %c0_i32 = arith.constant 0 : i32
    %c0_i32_0 = arith.constant 0 : i32
    %c0_i32_1 = arith.constant 0 : i32
    return %c0_i32, %c0_i32_0 : i32, i32
  }
  func.func @transform_17(%arg0: i32) -> (i32, i32) {
    %c0_i32 = arith.constant 0 : i32
    %c0_i32_0 = arith.constant 0 : i32
    %c0_i32_1 = arith.constant 0 : i32
    return %c0_i32, %c0_i32_0 : i32, i32
  }
  func.func @transform_18(%arg0: i32) -> (i32, i32) {
    %c0_i32 = arith.constant 0 : i32
    %c0_i32_0 = arith.constant 0 : i32
    %c0_i32_1 = arith.constant 0 : i32
    return %c0_i32, %c0_i32_0 : i32, i32
  }
  func.func @transform_19(%arg0: i32) -> (i32, i32, i32, i32) {
    %c0_i32 = arith.constant 0 : i32
    %c0_i32_0 = arith.constant 0 : i32
    %c0_i32_1 = arith.constant 0 : i32
    %c0_i32_2 = arith.constant 0 : i32
    %c0_i32_3 = arith.constant 0 : i32
    return %c0_i32, %c0_i32_0, %c0_i32_1, %c0_i32_2 : i32, i32, i32, i32
  }
}

</mosaic_0001>

<llo_original>
// kernel: generator_forward.1
$region0: #{generator_forward.1}
  #allocation0 [shape = 'u32[]', space=smem, size = 0x4, offset = 0x4, fixed_abs, tag = 'smem constant byte address 0x4 - core index']
  #allocation1 [shape = 'u32[144,128]{1,0:T(1,128)}', space=vmem, size = 0x12000, scoped, tag = 'internal scratch']
  #allocation2 [shape = 'f32[2,6,192]{2,1,0:T(8,128)}', space=vmem, size = 0x4000, scoped, tag = 'scratch operand']
  #allocation3 [shape = 'f32[2,10,160]{2,1,0:T(8,128)}', space=vmem, size = 0x8000, scoped, tag = 'scratch operand']
  #allocation4 [shape = 'f32[2,18,144]{2,1,0:T(8,128)}', space=vmem, size = 0xc000, scoped, tag = 'scratch operand']
  %s0 = inlined_call_operand.hbm [shape: f32[2,8], index: 0, kind: input, shape index: {}]
  %s1 = inlined_call_operand.hbm [shape: f32[8,512], index: 1, kind: input, shape index: {}]
  %s2 = inlined_call_operand.hbm [shape: f32[1,512], index: 2, kind: input, shape index: {}]
  %s3 = inlined_call_operand.hbm [shape: f32[1,512], index: 3, kind: input, shape index: {}]
  %s4 = inlined_call_operand.hbm [shape: f32[1,512], index: 4, kind: input, shape index: {}]
  %s5 = inlined_call_operand.hbm [shape: bf16[576,256], index: 5, kind: input, shape index: {}]
  %s6 = inlined_call_operand.hbm [shape: f32[1,256], index: 6, kind: input, shape index: {}]
  %s7 = inlined_call_operand.hbm [shape: f32[1,16], index: 7, kind: input, shape index: {}]
  %s8 = inlined_call_operand.hbm [shape: f32[1,16], index: 8, kind: input, shape index: {}]
  %s9 = inlined_call_operand.vmem [shape: f32[128,16], index: 9, kind: input, shape index: {}]
  %s10 = inlined_call_operand.hbm [shape: f32[16,128], index: 10, kind: input, shape index: {}]
  %s11 = inlined_call_operand.hbm [shape: bf16[480,256], index: 11, kind: input, shape index: {}]
  %s12 = inlined_call_operand.hbm [shape: f32[1,256], index: 12, kind: input, shape index: {}]
  %s13 = inlined_call_operand.hbm [shape: f32[1,8], index: 13, kind: input, shape index: {}]
  %s14 = inlined_call_operand.hbm [shape: f32[1,8], index: 14, kind: input, shape index: {}]
  %s15 = inlined_call_operand.vmem [shape: f32[128,8], index: 15, kind: input, shape index: {}]
  %s16 = inlined_call_operand.hbm [shape: f32[8,128], index: 16, kind: input, shape index: {}]
  %s17 = inlined_call_operand.vmem [shape: bf16[432,192], index: 17, kind: input, shape index: {}]
  %s18 = inlined_call_operand.hbm [shape: f32[1,192], index: 18, kind: input, shape index: {}]
  %s19 = inlined_call_operand.vmem [shape: f32[2,2,16,96], index: 19, kind: output, shape index: {}]
  %s20 = sld [smem:[#allocation0]]
  $region150: #{generator_forward.1} parent=0
    _
  %s22 = ssub.s32 1, %s20
  %s23 = scalar_select 0, %s22, %s20
  $region1: #{generator_forward.1} parent=0
    #allocation5 [shape = 'u8[1024]{0}', space=vmem, size = 0x400, scoped, tag = 'input window, operand 0, single buffered']
    #allocation6 [shape = 's32[1]{0}', space=sflag, size = 0x4, scoped, tag = 'scoped memory for generator_forward.1']
    #allocation7 [shape = 'u8[16384]{0}', space=vmem, size = 0x4000, scoped, tag = 'input window, operand 1, single buffered']
    #allocation8 [shape = 's32[1]{0}', space=sflag, size = 0x4, scoped, tag = 'scoped memory for generator_forward.1']
    #allocation9 [shape = 'u8[2048]{0}', space=vmem, size = 0x800, scoped, tag = 'input window, operand 2, single buffered']
    #allocation10 [shape = 'u8[2048]{0}', space=vmem, size = 0x800, scoped, tag = 'input window, operand 3, single buffered']
    #allocation11 [shape = 's32[1]{0}', space=sflag, size = 0x4, scoped, tag = 'scoped memory for generator_forward.1']
    #allocation12 [shape = 'u8[2048]{0}', space=vmem, size = 0x800, scoped, tag = 'input window, operand 4, single buffered']
    #allocation13 [shape = 'u8[294912]{0}', space=vmem, size = 0x48000, scoped, tag = 'input window, operand 5, single buffered']
    #allocation14 [shape = 's32[1]{0}', space=sflag, size = 0x4, scoped, tag = 'scoped memory for generator_forward.1']
    #allocation15 [shape = 'u8[1024]{0}', space=vmem, size = 0x400, scoped, tag = 'input window, operand 6, single buffered']
    #allocation16 [shape = 'u8[512]{0}', space=vmem, size = 0x400, scoped, tag = 'input window, operand 7, single buffered']
    #allocation17 [shape = 's32[1]{0}', space=sflag, size = 0x4, scoped, tag = 'scoped memory for generator_forward.1']
    #allocation18 [shape = 'u8[512]{0}', space=vmem, size = 0x400, scoped, tag = 'input window, operand 8, single buffered']
    #allocation19 [shape = 'u8[8192]{0}', space=vmem, size = 0x2000, scoped, tag = 'input window, operand 10, single buffered']
    #allocation20 [shape = 's32[1]{0}', space=sflag, size = 0x4, scoped, tag = 'scoped memory for generator_forward.1']
    #allocation21 [shape = 'u8[245760]{0}', space=vmem, size = 0x3c000, scoped, tag = 'input window, operand 11, single buffered']
    #allocation22 [shape = 'u8[1024]{0}', space=vmem, size = 0x400, scoped, tag = 'input window, operand 12, single buffered']
    #allocation23 [shape = 's32[1]{0}', space=sflag, size = 0x4, scoped, tag = 'scoped memory for generator_forward.1']
    #allocation24 [shape = 'u8[512]{0}', space=vmem, size = 0x400, scoped, tag = 'input window, operand 13, single buffered']
    #allocation25 [shape = 'u8[512]{0}', space=vmem, size = 0x400, scoped, tag = 'input window, operand 14, single buffered']
    #allocation26 [shape = 's32[1]{0}', space=sflag, size = 0x4, scoped, tag = 'scoped memory for generator_forward.1']
    #allocation27 [shape = 'u8[4096]{0}', space=vmem, size = 0x1000, scoped, tag = 'input window, operand 16, single buffered']
    #allocation28 [shape = 'u8[1024]{0}', space=vmem, size = 0x400, scoped, tag = 'input window, operand 18, single buffered']
    #allocation29 [shape = 's32[1]{0}', space=sflag, size = 0x4, scoped, tag = 'scoped memory for generator_forward.1']
    %24 = vsyncpa [#allocation6], 0
    %25 = vsyncpa [#allocation8], 0
    %26 = vsyncpa [#allocation11], 0
    %27 = vsyncpa [#allocation14], 0
    %28 = vsyncpa [#allocation17], 0
    %29 = vsyncpa [#allocation20], 0
    %30 = vsyncpa [#allocation23], 0
    %31 = vsyncpa [#allocation26], 0
    %32 = vsyncpa [#allocation29], 0
    // Predicated region
    $region2: #{generator_forward.1} parent=1 // pred_check
      _
    $region3: #{generator_forward.1} parent=1 // pred_check_branch
      %34 = sbr.rel (0) target = $region5
    $region4: #{generator_forward.1} parent=1 // pred_region
      %s36 = ssub.s32 32, 32
      %37 = vsyncadd [#allocation6], %s36
      %s39 = sshll.u32 [#allocation5], 4
      %s40 = int_to_ptr.vmem [resolvable:$true] %s39
      %42 = dma.hbm_to_vmem [thread:$0]  %s0, 32, %s40, [#allocation6]
    $region5: #{generator_forward.1} parent=1 // pred_fallthru
      _
    // Predicated region
    $region6: #{generator_forward.1} parent=1 // pred_check
      _
    $region7: #{generator_forward.1} parent=1 // pred_check_branch
      %44 = sbr.rel (0) target = $region9
    $region8: #{generator_forward.1} parent=1 // pred_region
      %s46 = ssub.s32 512, 512
      %47 = vsyncadd [#allocation8], %s46
      %s49 = sshll.u32 [#allocation7], 4
      %s50 = int_to_ptr.vmem [resolvable:$true] %s49
      %52 = dma.hbm_to_vmem [thread:$0]  %s1, 512, %s50, [#allocation8]
    $region9: #{generator_forward.1} parent=1 // pred_fallthru
      _
    // Predicated region
    $region10: #{generator_forward.1} parent=1 // pred_check
      _
    $region11: #{generator_forward.1} parent=1 // pred_check_branch
      %54 = sbr.rel (0) target = $region13
    $region12: #{generator_forward.1} parent=1 // pred_region
      %s56 = ssub.s32 64, 64
      %57 = vsyncadd [#allocation8], %s56
      %s59 = sshll.u32 [#allocation9], 4
      %s60 = int_to_ptr.vmem [resolvable:$true] %s59
      %62 = dma.hbm_to_vmem [thread:$0]  %s2, 64, %s60, [#allocation8]
    $region13: #{generator_forward.1} parent=1 // pred_fallthru
      _
    // Predicated region
    $region14: #{generator_forward.1} parent=1 // pred_check
      _
    $region15: #{generator_forward.1} parent=1 // pred_check_branch
      %64 = sbr.rel (0) target = $region17
    $region16: #{generator_forward.1} parent=1 // pred_region
      %s66 = ssub.s32 64, 64
      %67 = vsyncadd [#allocation11], %s66
      %s69 = sshll.u32 [#allocation10], 4
      %s70 = int_to_ptr.vmem [resolvable:$true] %s69
      %72 = dma.hbm_to_vmem [thread:$0]  %s3, 64, %s70, [#allocation11]
    $region17: #{generator_forward.1} parent=1 // pred_fallthru
      _
    // Predicated region
    $region18: #{generator_forward.1} parent=1 // pred_check
      _
    $region19: #{generator_forward.1} parent=1 // pred_check_branch
      %74 = sbr.rel (0) target = $region21
    $region20: #{generator_forward.1} parent=1 // pred_region
      %s76 = ssub.s32 64, 64
      %77 = vsyncadd [#allocation11], %s76
      %s79 = sshll.u32 [#allocation12], 4
      %s80 = int_to_ptr.vmem [resolvable:$true] %s79
      %82 = dma.hbm_to_vmem [thread:$0]  %s4, 64, %s80, [#allocation11]
    $region21: #{generator_forward.1} parent=1 // pred_fallthru
      _
    // Predicated region
    $region22: #{generator_forward.1} parent=1 // pred_check
      _
    $region23: #{generator_forward.1} parent=1 // pred_check_branch
      %84 = sbr.rel (0) target = $region25
    $region24: #{generator_forward.1} parent=1 // pred_region
      %s86 = ssub.s32 9216, 9216
      %87 = vsyncadd [#allocation14], %s86
      %s88 = sshll.u32 [#allocation13], 4
      %s89 = int_to_ptr.vmem [resolvable:$true] %s88
      %94 = dma.hbm_to_vmem [thread:$0]  %s5, 9216, %s89, [#allocation14], 128, 128, 8
    $region25: #{generator_forward.1} parent=1 // pred_fallthru
      _
    // Predicated region
    $region26: #{generator_forward.1} parent=1 // pred_check
      _
    $region27: #{generator_forward.1} parent=1 // pred_check_branch
      %96 = sbr.rel (0) target = $region29
    $region28: #{generator_forward.1} parent=1 // pred_region
      %s98 = ssub.s32 32, 32
      %99 = vsyncadd [#allocation14], %s98
      %s101 = sshll.u32 [#allocation15], 4
      %s102 = int_to_ptr.vmem [resolvable:$true] %s101
      %104 = dma.hbm_to_vmem [thread:$0]  %s6, 32, %s102, [#allocation14]
    $region29: #{generator_forward.1} parent=1 // pred_fallthru
      _
    // Predicated region
    $region30: #{generator_forward.1} parent=1 // pred_check
      _
    $region31: #{generator_forward.1} parent=1 // pred_check_branch
      %106 = sbr.rel (0) target = $region33
    $region32: #{generator_forward.1} parent=1 // pred_region
      %s108 = ssub.s32 16, 16
      %109 = vsyncadd [#allocation17], %s108
      %s111 = sshll.u32 [#allocation16], 4
      %s112 = int_to_ptr.vmem [resolvable:$true] %s111
      %114 = dma.hbm_to_vmem [thread:$0]  %s7, 16, %s112, [#allocation17]
    $region33: #{generator_forward.1} parent=1 // pred_fallthru
      _
    // Predicated region
    $region34: #{generator_forward.1} parent=1 // pred_check
      _
    $region35: #{generator_forward.1} parent=1 // pred_check_branch
      %116 = sbr.rel (0) target = $region37
    $region36: #{generator_forward.1} parent=1 // pred_region
      %s118 = ssub.s32 16, 16
      %119 = vsyncadd [#allocation17], %s118
      %s121 = sshll.u32 [#allocation18], 4
      %s122 = int_to_ptr.vmem [resolvable:$true] %s121
      %124 = dma.hbm_to_vmem [thread:$0]  %s8, 16, %s122, [#allocation17]
    $region37: #{generator_forward.1} parent=1 // pred_fallthru
      _
    // Predicated region
    $region38: #{generator_forward.1} parent=1 // pred_check
      _
    $region39: #{generator_forward.1} parent=1 // pred_check_branch
      %126 = sbr.rel (0) target = $region41
    $region40: #{generator_forward.1} parent=1 // pred_region
      _
    $region41: #{generator_forward.1} parent=1 // pred_fallthru
      _
    // Predicated region
    $region42: #{generator_forward.1} parent=1 // pred_check
      _
    $region43: #{generator_forward.1} parent=1 // pred_check_branch
      %128 = sbr.rel (0) target = $region45
    $region44: #{generator_forward.1} parent=1 // pred_region
      %s130 = ssub.s32 256, 256
      %131 = vsyncadd [#allocation20], %s130
      %s132 = sshll.u32 [#allocation19], 4
      %s133 = int_to_ptr.vmem [resolvable:$true] %s132
      %138 = dma.hbm_to_vmem [thread:$0]  %s10, 256, %s133, [#allocation20], 128, 128, 8
    $region45: #{generator_forward.1} parent=1 // pred_fallthru
      _
    // Predicated region
    $region46: #{generator_forward.1} parent=1 // pred_check
      _
    $region47: #{generator_forward.1} parent=1 // pred_check_branch
      %140 = sbr.rel (0) target = $region49
    $region48: #{generator_forward.1} parent=1 // pred_region
      %s142 = ssub.s32 7680, 7680
      %143 = vsyncadd [#allocation20], %s142
      %s144 = sshll.u32 [#allocation21], 4
      %s145 = int_to_ptr.vmem [resolvable:$true] %s144
      %150 = dma.hbm_to_vmem [thread:$0]  %s11, 7680, %s145, [#allocation20], 128, 128, 8
    $region49: #{generator_forward.1} parent=1 // pred_fallthru
      _
    // Predicated region
    $region50: #{generator_forward.1} parent=1 // pred_check
      _
    $region51: #{generator_forward.1} parent=1 // pred_check_branch
      %152 = sbr.rel (0) target = $region53
    $region52: #{generator_forward.1} parent=1 // pred_region
      %s154 = ssub.s32 32, 32
      %155 = vsyncadd [#allocation23], %s154
      %s157 = sshll.u32 [#allocation22], 4
      %s158 = int_to_ptr.vmem [resolvable:$true] %s157
      %160 = dma.hbm_to_vmem [thread:$0]  %s12, 32, %s158, [#allocation23]
    $region53: #{generator_forward.1} parent=1 // pred_fallthru
      _
    // Predicated region
    $region54: #{generator_forward.1} parent=1 // pred_check
      _
    $region55: #{generator_forward.1} parent=1 // pred_check_branch
      %162 = sbr.rel (0) target = $region57
    $region56: #{generator_forward.1} parent=1 // pred_region
      %s164 = ssub.s32 16, 16
      %165 = vsyncadd [#allocation23], %s164
      %s167 = sshll.u32 [#allocation24], 4
      %s168 = int_to_ptr.vmem [resolvable:$true] %s167
      %170 = dma.hbm_to_vmem [thread:$0]  %s13, 16, %s168, [#allocation23]
    $region57: #{generator_forward.1} parent=1 // pred_fallthru
      _
    // Predicated region
    $region58: #{generator_forward.1} parent=1 // pred_check
      _
    $region59: #{generator_forward.1} parent=1 // pred_check_branch
      %172 = sbr.rel (0) target = $region61
    $region60: #{generator_forward.1} parent=1 // pred_region
      %s174 = ssub.s32 16, 16
      %175 = vsyncadd [#allocation26], %s174
      %s177 = sshll.u32 [#allocation25], 4
      %s178 = int_to_ptr.vmem [resolvable:$true] %s177
      %180 = dma.hbm_to_vmem [thread:$0]  %s14, 16, %s178, [#allocation26]
    $region61: #{generator_forward.1} parent=1 // pred_fallthru
      _
    // Predicated region
    $region62: #{generator_forward.1} parent=1 // pred_check
      _
    $region63: #{generator_forward.1} parent=1 // pred_check_branch
      %182 = sbr.rel (0) target = $region65
    $region64: #{generator_forward.1} parent=1 // pred_region
      _
    $region65: #{generator_forward.1} parent=1 // pred_fallthru
      _
    // Predicated region
    $region66: #{generator_forward.1} parent=1 // pred_check
      _
    $region67: #{generator_forward.1} parent=1 // pred_check_branch
      %184 = sbr.rel (0) target = $region69
    $region68: #{generator_forward.1} parent=1 // pred_region
      %s186 = ssub.s32 128, 128
      %187 = vsyncadd [#allocation26], %s186
      %s189 = sshll.u32 [#allocation27], 4
      %s190 = int_to_ptr.vmem [resolvable:$true] %s189
      %192 = dma.hbm_to_vmem [thread:$0]  %s16, 128, %s190, [#allocation26]
    $region69: #{generator_forward.1} parent=1 // pred_fallthru
      _
    // Predicated region
    $region70: #{generator_forward.1} parent=1 // pred_check
      _
    $region71: #{generator_forward.1} parent=1 // pred_check_branch
      %194 = sbr.rel (0) target = $region73
    $region72: #{generator_forward.1} parent=1 // pred_region
      _
    $region73: #{generator_forward.1} parent=1 // pred_fallthru
      _
    // Predicated region
    $region74: #{generator_forward.1} parent=1 // pred_check
      _
    $region75: #{generator_forward.1} parent=1 // pred_check_branch
      %196 = sbr.rel (0) target = $region77
    $region76: #{generator_forward.1} parent=1 // pred_region
      %s198 = ssub.s32 32, 32
      %199 = vsyncadd [#allocation29], %s198
      %s201 = sshll.u32 [#allocation28], 4
      %s202 = int_to_ptr.vmem [resolvable:$true] %s201
      %204 = dma.hbm_to_vmem [thread:$0]  %s18, 32, %s202, [#allocation29]
    $region77: #{generator_forward.1} parent=1 // pred_fallthru
      _
    // Predicated region
    $region78: #{generator_forward.1} parent=1 // pred_check
      _
    $region79: #{generator_forward.1} parent=1 // pred_check_branch
      %206 = sbr.rel (0) target = $region81
    $region80: #{generator_forward.1} parent=1 // pred_region
      %207 = dma.done [#allocation6], 32
    $region81: #{generator_forward.1} parent=1 // pred_fallthru
      _
    // Predicated region
    $region82: #{generator_forward.1} parent=1 // pred_check
      _
    $region83: #{generator_forward.1} parent=1 // pred_check_branch
      %209 = sbr.rel (0) target = $region85
    $region84: #{generator_forward.1} parent=1 // pred_region
      %210 = dma.done [#allocation8], 512
    $region85: #{generator_forward.1} parent=1 // pred_fallthru
      _
    // Predicated region
    $region86: #{generator_forward.1} parent=1 // pred_check
      _
    $region87: #{generator_forward.1} parent=1 // pred_check_branch
      %212 = sbr.rel (0) target = $region89
    $region88: #{generator_forward.1} parent=1 // pred_region
      %213 = dma.done [#allocation8], 64
    $region89: #{generator_forward.1} parent=1 // pred_fallthru
      _
    // Predicated region
    $region90: #{generator_forward.1} parent=1 // pred_check
      _
    $region91: #{generator_forward.1} parent=1 // pred_check_branch
      %215 = sbr.rel (0) target = $region93
    $region92: #{generator_forward.1} parent=1 // pred_region
      %216 = dma.done [#allocation11], 64
    $region93: #{generator_forward.1} parent=1 // pred_fallthru
      _
    // Predicated region
    $region94: #{generator_forward.1} parent=1 // pred_check
      _
    $region95: #{generator_forward.1} parent=1 // pred_check_branch
      %218 = sbr.rel (0) target = $region97
    $region96: #{generator_forward.1} parent=1 // pred_region
      %219 = dma.done [#allocation11], 64
    $region97: #{generator_forward.1} parent=1 // pred_fallthru
      _
    // Predicated region
    $region98: #{generator_forward.1} parent=1 // pred_check
      _
    $region99: #{generator_forward.1} parent=1 // pred_check_branch
      %221 = sbr.rel (0) target = $region101
    $region100: #{generator_forward.1} parent=1 // pred_region
      %222 = dma.done [#allocation14], 9216
    $region101: #{generator_forward.1} parent=1 // pred_fallthru
      _
    // Predicated region
    $region102: #{generator_forward.1} parent=1 // pred_check
      _
    $region103: #{generator_forward.1} parent=1 // pred_check_branch
      %224 = sbr.rel (0) target = $region105
    $region104: #{generator_forward.1} parent=1 // pred_region
      %225 = dma.done [#allocation14], 32
    $region105: #{generator_forward.1} parent=1 // pred_fallthru
      _
    // Predicated region
    $region106: #{generator_forward.1} parent=1 // pred_check
      _
    $region107: #{generator_forward.1} parent=1 // pred_check_branch
      %227 = sbr.rel (0) target = $region109
    $region108: #{generator_forward.1} parent=1 // pred_region
      %228 = dma.done [#allocation17], 16
    $region109: #{generator_forward.1} parent=1 // pred_fallthru
      _
    // Predicated region
    $region110: #{generator_forward.1} parent=1 // pred_check
      _
    $region111: #{generator_forward.1} parent=1 // pred_check_branch
      %230 = sbr.rel (0) target = $region113
    $region112: #{generator_forward.1} parent=1 // pred_region
      %231 = dma.done [#allocation17], 16
    $region113: #{generator_forward.1} parent=1 // pred_fallthru
      _
    // Predicated region
    $region114: #{generator_forward.1} parent=1 // pred_check
      _
    $region115: #{generator_forward.1} parent=1 // pred_check_branch
      %233 = sbr.rel (0) target = $region117
    $region116: #{generator_forward.1} parent=1 // pred_region
      %234 = dma.done [#allocation20], 256
    $region117: #{generator_forward.1} parent=1 // pred_fallthru
      _
    // Predicated region
    $region118: #{generator_forward.1} parent=1 // pred_check
      _
    $region119: #{generator_forward.1} parent=1 // pred_check_branch
      %236 = sbr.rel (0) target = $region121
    $region120: #{generator_forward.1} parent=1 // pred_region
      %237 = dma.done [#allocation20], 7680
    $region121: #{generator_forward.1} parent=1 // pred_fallthru
      _
    // Predicated region
    $region122: #{generator_forward.1} parent=1 // pred_check
      _
    $region123: #{generator_forward.1} parent=1 // pred_check_branch
      %239 = sbr.rel (0) target = $region125
    $region124: #{generator_forward.1} parent=1 // pred_region
      %240 = dma.done [#allocation23], 32
    $region125: #{generator_forward.1} parent=1 // pred_fallthru
      _
    // Predicated region
    $region126: #{generator_forward.1} parent=1 // pred_check
      _
    $region127: #{generator_forward.1} parent=1 // pred_check_branch
      %242 = sbr.rel (0) target = $region129
    $region128: #{generator_forward.1} parent=1 // pred_region
      %243 = dma.done [#allocation23], 16
    $region129: #{generator_forward.1} parent=1 // pred_fallthru
      _
    // Predicated region
    $region130: #{generator_forward.1} parent=1 // pred_check
      _
    $region131: #{generator_forward.1} parent=1 // pred_check_branch
      %245 = sbr.rel (0) target = $region133
    $region132: #{generator_forward.1} parent=1 // pred_region
      %246 = dma.done [#allocation26], 16
    $region133: #{generator_forward.1} parent=1 // pred_fallthru
      _
    // Predicated region
    $region134: #{generator_forward.1} parent=1 // pred_check
      _
    $region135: #{generator_forward.1} parent=1 // pred_check_branch
      %248 = sbr.rel (0) target = $region137
    $region136: #{generator_forward.1} parent=1 // pred_region
      %249 = dma.done [#allocation26], 128
    $region137: #{generator_forward.1} parent=1 // pred_fallthru
      _
    // Predicated region
    $region138: #{generator_forward.1} parent=1 // pred_check
      _
    $region139: #{generator_forward.1} parent=1 // pred_check_branch
      %251 = sbr.rel (0) target = $region141
    $region140: #{generator_forward.1} parent=1 // pred_region
      %252 = dma.done [#allocation29], 32
    $region141: #{generator_forward.1} parent=1 // pred_fallthru
      _
    %v254 = vld [vmem:[#allocation5] sm:$0x3]
    %v255 = vld [vmem:[#allocation7] sm:$0xff]
    %v256 = vld [vmem:[#allocation7 + $0x8] sm:$0xff]
    %v257 = vld [vmem:[#allocation7 + $0x10] sm:$0xff]
    %v258 = vld [vmem:[#allocation7 + $0x18] sm:$0xff]
    %v259 = vld [vmem:[#allocation9] sm:$0xf]
    %v261 = vlaneseq
    %v262 = vshrl.u32 %v261, 7
    %v263 = vsub.s32 0, %v262
    %v264 = vrot.slane %v259, %v263
    %v265 = vlaneseq
    %v266 = vshrl.u32 %v265, 7
    %v267 = vsub.s32 1, %v266
    %v268 = vrot.slane %v259, %v267
    %v269 = vlaneseq
    %v270 = vshrl.u32 %v269, 7
    %v271 = vsub.s32 2, %v270
    %v272 = vrot.slane %v259, %v271
    %v273 = vlaneseq
    %v274 = vshrl.u32 %v273, 7
    %v275 = vsub.s32 3, %v274
    %v276 = vrot.slane %v259, %v275
    %vm281 = vcmask 64512
    %v283 = vsel %vm281, %v254, 0
    %285 = vmatprep.subr.mxu0 0.0
    %286 = vmatpush1.msra.mxu0 0.0
    %287 = vmatprep.subr.mxu0 0.0
    %288 = vmatpush1.msra.mxu0 0.0
    %289 = vmatprep.subr.mxu0 0.0
    %290 = vmatpush1.msra.mxu0 0.0
    %291 = vmatprep.subr.mxu0 0.0
    %292 = vmatpush1.msra.mxu0 0.0
    %293 = vmatprep.subr.mxu0 0.0
    %294 = vmatpush1.msra.mxu0 0.0
    %295 = vmatprep.subr.mxu0 0.0
    %296 = vmatpush1.msra.mxu0 0.0
    %297 = vmatprep.subr.mxu0 0.0
    %298 = vmatpush1.msra.mxu0 0.0
    %299 = vmatprep.subr.mxu0 0.0
    %300 = vmatpush1.msra.mxu0 0.0
    %301 = vmatprep.subr.mxu0 0.0
    %302 = vmatpush1.msra.mxu0 0.0
    %303 = vmatprep.subr.mxu0 0.0
    %304 = vmatpush1.msra.mxu0 0.0
    %305 = vmatprep.subr.mxu0 0.0
    %306 = vmatpush1.msra.mxu0 0.0
    %307 = vmatprep.subr.mxu0 0.0
    %308 = vmatpush1.msra.mxu0 0.0
    %309 = vmatprep.subr.mxu0 0.0
    %310 = vmatpush1.msra.mxu0 0.0
    %311 = vmatprep.subr.mxu0 0.0
    %312 = vmatpush1.msra.mxu0 0.0
    %313 = vmatprep.subr.mxu0 0.0
    %314 = vmatpush1.msra.mxu0 0.0
    %315 = vmatprep.subr.mxu0 %v256
    %316 = vmatpush1.msra.mxu0 %v255
    %317 = vmatprep.subr.mxu0 0.0
    %318 = vmatpush2.msra.mxu0 0.0
    %319 = vmatprep.subr.mxu0 0.0
    %320 = vmatpush2.msra.mxu0 0.0
    %321 = vmatprep.subr.mxu0 0.0
    %322 = vmatpush2.msra.mxu0 0.0
    %323 = vmatprep.subr.mxu0 0.0
    %324 = vmatpush2.msra.mxu0 0.0
    %325 = vmatprep.subr.mxu0 0.0
    %326 = vmatpush2.msra.mxu0 0.0
    %327 = vmatprep.subr.mxu0 0.0
    %328 = vmatpush2.msra.mxu0 0.0
    %329 = vmatprep.subr.mxu0 0.0
    %330 = vmatpush2.msra.mxu0 0.0
    %331 = vmatprep.subr.mxu0 0.0
    %332 = vmatpush2.msra.mxu0 0.0
    %333 = vmatprep.subr.mxu0 0.0
    %334 = vmatpush2.msra.mxu0 0.0
    %335 = vmatprep.subr.mxu0 0.0
    %336 = vmatpush2.msra.mxu0 0.0
    %337 = vmatprep.subr.mxu0 0.0
    %338 = vmatpush2.msra.mxu0 0.0
    %339 = vmatprep.subr.mxu0 0.0
    %340 = vmatpush2.msra.mxu0 0.0
    %341 = vmatprep.subr.mxu0 0.0
    %342 = vmatpush2.msra.mxu0 0.0
    %343 = vmatprep.subr.mxu0 0.0
    %344 = vmatpush2.msra.mxu0 0.0
    %345 = vmatprep.subr.mxu0 0.0
    %346 = vmatpush2.msra.mxu0 0.0
    %347 = vmatprep.subr.mxu0 0.0
    %348 = vmatpush2.msra.mxu0 0.0
    %349 = vmatprep.mubr.f32.mxu0 0.0
    %350 = vmatmul.mubr.f32.gmra.mxu0 %v283
    %v351 = vpop.f32.mrf.mxu0
    %v352 = vadd.f32 %v264, %v351
    %v353 = vpop.f32.mrf.mxu0
    %v354 = vadd.f32 %v268, %v353
    %355 = vdwg.mxu0
    %356 = vmatprep.subr.mxu0 0.0
    %357 = vmatpush1.msra.mxu0 0.0
    %358 = vmatprep.subr.mxu0 0.0
    %359 = vmatpush1.msra.mxu0 0.0
    %360 = vmatprep.subr.mxu0 0.0
    %361 = vmatpush1.msra.mxu0 0.0
    %362 = vmatprep.subr.mxu0 0.0
    %363 = vmatpush1.msra.mxu0 0.0
    %364 = vmatprep.subr.mxu0 0.0
    %365 = vmatpush1.msra.mxu0 0.0
    %366 = vmatprep.subr.mxu0 0.0
    %367 = vmatpush1.msra.mxu0 0.0
    %368 = vmatprep.subr.mxu0 0.0
    %369 = vmatpush1.msra.mxu0 0.0
    %370 = vmatprep.subr.mxu0 0.0
    %371 = vmatpush1.msra.mxu0 0.0
    %372 = vmatprep.subr.mxu0 0.0
    %373 = vmatpush1.msra.mxu0 0.0
    %374 = vmatprep.subr.mxu0 0.0
    %375 = vmatpush1.msra.mxu0 0.0
    %376 = vmatprep.subr.mxu0 0.0
    %377 = vmatpush1.msra.mxu0 0.0
    %378 = vmatprep.subr.mxu0 0.0
    %379 = vmatpush1.msra.mxu0 0.0
    %380 = vmatprep.subr.mxu0 0.0
    %381 = vmatpush1.msra.mxu0 0.0
    %382 = vmatprep.subr.mxu0 0.0
    %383 = vmatpush1.msra.mxu0 0.0
    %384 = vmatprep.subr.mxu0 0.0
    %385 = vmatpush1.msra.mxu0 0.0
    %386 = vmatprep.subr.mxu0 %v258
    %387 = vmatpush1.msra.mxu0 %v257
    %388 = vmatprep.subr.mxu0 0.0
    %389 = vmatpush2.msra.mxu0 0.0
    %390 = vmatprep.subr.mxu0 0.0
    %391 = vmatpush2.msra.mxu0 0.0
    %392 = vmatprep.subr.mxu0 0.0
    %393 = vmatpush2.msra.mxu0 0.0
    %394 = vmatprep.subr.mxu0 0.0
    %395 = vmatpush2.msra.mxu0 0.0
    %396 = vmatprep.subr.mxu0 0.0
    %397 = vmatpush2.msra.mxu0 0.0
    %398 = vmatprep.subr.mxu0 0.0
    %399 = vmatpush2.msra.mxu0 0.0
    %400 = vmatprep.subr.mxu0 0.0
    %401 = vmatpush2.msra.mxu0 0.0
    %402 = vmatprep.subr.mxu0 0.0
    %403 = vmatpush2.msra.mxu0 0.0
    %404 = vmatprep.subr.mxu0 0.0
    %405 = vmatpush2.msra.mxu0 0.0
    %406 = vmatprep.subr.mxu0 0.0
    %407 = vmatpush2.msra.mxu0 0.0
    %408 = vmatprep.subr.mxu0 0.0
    %409 = vmatpush2.msra.mxu0 0.0
    %410 = vmatprep.subr.mxu0 0.0
    %411 = vmatpush2.msra.mxu0 0.0
    %412 = vmatprep.subr.mxu0 0.0
    %413 = vmatpush2.msra.mxu0 0.0
    %414 = vmatprep.subr.mxu0 0.0
    %415 = vmatpush2.msra.mxu0 0.0
    %416 = vmatprep.subr.mxu0 0.0
    %417 = vmatpush2.msra.mxu0 0.0
    %418 = vmatprep.subr.mxu0 0.0
    %419 = vmatpush2.msra.mxu0 0.0
    %420 = vmatprep.mubr.f32.mxu0 0.0
    %421 = vmatmul.mubr.f32.gmra.mxu0 %v283
    %v422 = vpop.f32.mrf.mxu0
    %v423 = vadd.f32 %v272, %v422
    %v424 = vpop.f32.mrf.mxu0
    %v425 = vadd.f32 %v276, %v424
    %426 = vdwg.mxu0
    %vm427 = vcmask 1041408
    %v428 = vsel %vm427, %v352, 0.0
    %v429 = vrot.slane %v428, 4
    %v430 = vadd.f32 %v428, %v429
    %v431 = vrot.slane %v430, 2
    %v432 = vadd.f32 %v430, %v431
    %v433 = vrot.slane %v432, 1
    %v434 = vadd.f32 %v432, %v433
    %v435 = vsel %vm427, %v354, 0.0
    %v436 = vrot.slane %v435, 4
    %v437 = vadd.f32 %v435, %v436
    %v438 = vrot.slane %v437, 2
    %v439 = vadd.f32 %v437, %v438
    %v440 = vrot.slane %v439, 1
    %v441 = vadd.f32 %v439, %v440
    %v442 = vsel %vm427, %v423, 0.0
    %v443 = vrot.slane %v442, 4
    %v444 = vadd.f32 %v442, %v443
    %v445 = vrot.slane %v444, 2
    %v446 = vadd.f32 %v444, %v445
    %v447 = vrot.slane %v446, 1
    %v448 = vadd.f32 %v446, %v447
    %v449 = vsel %vm427, %v425, 0.0
    %v450 = vrot.slane %v449, 4
    %v451 = vadd.f32 %v449, %v450
    %v452 = vrot.slane %v451, 2
    %v453 = vadd.f32 %v451, %v452
    %v454 = vrot.slane %v453, 1
    %v455 = vadd.f32 %v453, %v454
    %v456 = vrcp.pop 2.0
    %v457 = vmul.f32 %v434, %v456
    %v458 = vmul.f32 %v441, %v456
    %v459 = vmul.f32 %v448, %v456
    %v460 = vmul.f32 %v455, %v456
    %v461 = vmul.f32 %v352, %v352
    %v462 = vmul.f32 %v354, %v354
    %v463 = vmul.f32 %v423, %v423
    %v464 = vmul.f32 %v425, %v425
    %v465 = vsel %vm427, %v461, 0.0
    %v466 = vrot.slane %v465, 4
    %v467 = vadd.f32 %v465, %v466
    %v468 = vrot.slane %v467, 2
    %v469 = vadd.f32 %v467, %v468
    %v470 = vrot.slane %v469, 1
    %v471 = vadd.f32 %v469, %v470
    %v472 = vsel %vm427, %v462, 0.0
    %v473 = vrot.slane %v472, 4
    %v474 = vadd.f32 %v472, %v473
    %v475 = vrot.slane %v474, 2
    %v476 = vadd.f32 %v474, %v475
    %v477 = vrot.slane %v476, 1
    %v478 = vadd.f32 %v476, %v477
    %v479 = vsel %vm427, %v463, 0.0
    %v480 = vrot.slane %v479, 4
    %v481 = vadd.f32 %v479, %v480
    %v482 = vrot.slane %v481, 2
    %v483 = vadd.f32 %v481, %v482
    %v484 = vrot.slane %v483, 1
    %v485 = vadd.f32 %v483, %v484
    %v486 = vsel %vm427, %v464, 0.0
    %v487 = vrot.slane %v486, 4
    %v488 = vadd.f32 %v486, %v487
    %v489 = vrot.slane %v488, 2
    %v490 = vadd.f32 %v488, %v489
    %v491 = vrot.slane %v490, 1
    %v492 = vadd.f32 %v490, %v491
    %v493 = vmul.f32 %v471, %v456
    %v494 = vmul.f32 %v478, %v456
    %v495 = vmul.f32 %v485, %v456
    %v496 = vmul.f32 %v492, %v456
    %v497 = vmul.f32 %v457, %v457
    %v498 = vmul.f32 %v458, %v458
    %v499 = vmul.f32 %v459, %v459
    %v500 = vmul.f32 %v460, %v460
    %v501 = vsub.f32 %v493, %v497
    %v502 = vsub.f32 %v494, %v498
    %v503 = vsub.f32 %v495, %v499
    %v504 = vsub.f32 %v496, %v500
    %v505 = vld [vmem:[#allocation10] sm:$0xf]
    %v506 = vadd.f32 %v501, 1e-05
    %v507 = vadd.f32 %v502, 1e-05
    %v508 = vadd.f32 %v503, 1e-05
    %v509 = vadd.f32 %v504, 1e-05
    %v510 = vrsqrt.pop %v506
    %v511 = vrsqrt.pop %v507
    %v512 = vrsqrt.pop %v508
    %v513 = vrsqrt.pop %v509
    %v518 = vcombine.low %v510, %v511
    %v519 = vcombine.low %v512, %v513
    %v521 = vunpack.c.l.s4 1966171168
    %v522 = vunpack.c.0.s8 %v521
    %v523 = vlaneseq
    %v524 = vshrl.u32 %v523, 7
    %v525 = vsub.s32 %v522, %v524
    %v526 = vrot.slane %v518, %v525
    %v528 = vunpack.c.l.s4 1966171168
    %v529 = vunpack.c.0.s8 %v528
    %v530 = vlaneseq
    %v531 = vshrl.u32 %v530, 7
    %v532 = vsub.s32 %v529, %v531
    %v533 = vrot.slane %v519, %v532
    %v534 = vcombine.low %v526, %v533
    %v536 = vunpack.c.l.s4 1966171168
    %v537 = vunpack.c.0.s8 %v536
    %v538 = vlaneseq
    %v539 = vshrl.u32 %v538, 7
    %v540 = vsub.s32 %v537, %v539
    %v541 = vrot.slane %v534, %v540
    %v543 = vmul.f32 %v505, %v541
    %v544 = vld [vmem:[#allocation12] sm:$0xf]
    %v546 = vlaneseq
    %v547 = vshrl.u32 %v546, 7
    %v548 = vsub.s32 0, %v547
    %v549 = vrot.slane %v543, %v548
    %v550 = vlaneseq
    %v551 = vshrl.u32 %v550, 7
    %v552 = vsub.s32 1, %v551
    %v553 = vrot.slane %v543, %v552
    %v554 = vlaneseq
    %v555 = vshrl.u32 %v554, 7
    %v556 = vsub.s32 2, %v555
    %v557 = vrot.slane %v543, %v556
    %v558 = vlaneseq
    %v559 = vshrl.u32 %v558, 7
    %v560 = vsub.s32 3, %v559
    %v561 = vrot.slane %v543, %v560
    %v566 = vmul.f32 %v457, %v549
    %v567 = vmul.f32 %v458, %v553
    %v568 = vmul.f32 %v459, %v557
    %v569 = vmul.f32 %v460, %v561
    %v574 = vcombine.low %v566, %v567
    %v575 = vcombine.low %v568, %v569
    %v577 = vunpack.c.l.s4 1966171168
    %v578 = vunpack.c.0.s8 %v577
    %v579 = vlaneseq
    %v580 = vshrl.u32 %v579, 7
    %v581 = vsub.s32 %v578, %v580
    %v582 = vrot.slane %v574, %v581
    %v584 = vunpack.c.l.s4 1966171168
    %v585 = vunpack.c.0.s8 %v584
    %v586 = vlaneseq
    %v587 = vshrl.u32 %v586, 7
    %v588 = vsub.s32 %v585, %v587
    %v589 = vrot.slane %v575, %v588
    %v590 = vcombine.low %v582, %v589
    %v592 = vunpack.c.l.s4 1966171168
    %v593 = vunpack.c.0.s8 %v592
    %v594 = vlaneseq
    %v595 = vshrl.u32 %v594, 7
    %v596 = vsub.s32 %v593, %v595
    %v597 = vrot.slane %v590, %v596
    %v599 = vsub.f32 %v544, %v597
    %v600 = vmul.f32 %v352, %v549
    %v601 = vmul.f32 %v354, %v553
    %v602 = vmul.f32 %v423, %v557
    %v603 = vmul.f32 %v425, %v561
    %v605 = vlaneseq
    %v606 = vshrl.u32 %v605, 7
    %v607 = vsub.s32 0, %v606
    %v608 = vrot.slane %v599, %v607
    %v609 = vlaneseq
    %v610 = vshrl.u32 %v609, 7
    %v611 = vsub.s32 1, %v610
    %v612 = vrot.slane %v599, %v611
    %v613 = vlaneseq
    %v614 = vshrl.u32 %v613, 7
    %v615 = vsub.s32 2, %v614
    %v616 = vrot.slane %v599, %v615
    %v617 = vlaneseq
    %v618 = vshrl.u32 %v617, 7
    %v619 = vsub.s32 3, %v618
    %v620 = vrot.slane %v599, %v619
    %v625 = vadd.f32 %v600, %v608
    %v626 = vadd.f32 %v601, %v612
    %v627 = vadd.f32 %v602, %v616
    %v628 = vadd.f32 %v603, %v620
    %v629 = vmax.f32 %v625, 0.0
    %v630 = vmax.f32 %v626, 0.0
    %v631 = vmax.f32 %v627, 0.0
    %v632 = vmax.f32 %v628, 0.0
    %633 = vst [vmem:[#allocation2] sm:$0x3f] 0.0
    %vm634 = vcmask 521216
    %635 = vst.msk [vmem:[#allocation2 + $0x8] sm:$0x3f] %vm634, 0.0
    %636 = vst [vmem:[#allocation2 + $0x10] sm:$0x3f] 0.0
    %637 = vst.msk [vmem:[#allocation2 + $0x18] sm:$0x3f] %vm634, 0.0
    %v640 = vunpack.c.l.s4 1966171168
    %v641 = vunpack.c.0.s8 %v640
    %v642 = vlaneseq
    %v643 = vshrl.u32 %v642, 7
    %v644 = vsub.s32 %v641, %v643
    %v645 = vrot.slane %v629, %v644
    %v646 = vcombine.high %v645, %v645
    %v648 = vunpack.c.l.s4 1966171168
    %v649 = vunpack.c.0.s8 %v648
    %v650 = vlaneseq
    %v651 = vshrl.u32 %v650, 7
    %v652 = vsub.s32 %v649, %v651
    %v653 = vrot.slane %v645, %v652
    %v655 = vunpack.c.l.s4 1966171168
    %v656 = vunpack.c.0.s8 %v655
    %v657 = vlaneseq
    %v658 = vshrl.u32 %v657, 7
    %v659 = vsub.s32 %v656, %v658
    %v660 = vrot.slane %v646, %v659
    %v661 = vlaneseq
    %v662 = vshrl.u32 %v661, 7
    %v663 = vsub.s32 0, %v662
    %v664 = vrot.slane %v653, %v663
    %v665 = vlaneseq
    %v666 = vshrl.u32 %v665, 7
    %v667 = vsub.s32 0, %v666
    %v668 = vrot.slane %v660, %v667
    %669 = vrot.lane.b32.xlu0 %v664, 32
    %v670 = vpop.permute.xlu0 %669
    %671 = vrot.lane.b32.xlu0 %v668, 32
    %v672 = vpop.permute.xlu0 %671
    %vm675 = vcmask 1040640
    %676 = vst.msk [vmem:[#allocation2 + $0x1] sm:$0x1] %vm675, %v670
    %vm677 = vcmask 253952
    %678 = vst.msk [vmem:[#allocation2 + $0x9] sm:$0x1] %vm677, %v670
    %679 = vst.msk [vmem:[#allocation2 + $0x11] sm:$0x1] %vm675, %v672
    %680 = vst.msk [vmem:[#allocation2 + $0x19] sm:$0x1] %vm677, %v672
    %v683 = vunpack.c.l.s4 1966171168
    %v684 = vunpack.c.0.s8 %v683
    %v685 = vlaneseq
    %v686 = vshrl.u32 %v685, 7
    %v687 = vsub.s32 %v684, %v686
    %v688 = vrot.slane %v630, %v687
    %v689 = vcombine.high %v688, %v688
    %v691 = vunpack.c.l.s4 1966171168
    %v692 = vunpack.c.0.s8 %v691
    %v693 = vlaneseq
    %v694 = vshrl.u32 %v693, 7
    %v695 = vsub.s32 %v692, %v694
    %v696 = vrot.slane %v688, %v695
    %v698 = vunpack.c.l.s4 1966171168
    %v699 = vunpack.c.0.s8 %v698
    %v700 = vlaneseq
    %v701 = vshrl.u32 %v700, 7
    %v702 = vsub.s32 %v699, %v701
    %v703 = vrot.slane %v689, %v702
    %v704 = vlaneseq
    %v705 = vshrl.u32 %v704, 7
    %v706 = vsub.s32 0, %v705
    %v707 = vrot.slane %v696, %v706
    %v708 = vlaneseq
    %v709 = vshrl.u32 %v708, 7
    %v710 = vsub.s32 0, %v709
    %v711 = vrot.slane %v703, %v710
    %712 = vrot.lane.b32.xlu0 %v707, 32
    %v713 = vpop.permute.xlu0 %712
    %714 = vrot.lane.b32.xlu0 %v711, 32
    %v715 = vpop.permute.xlu0 %714
    %718 = vst.msk [vmem:[#allocation2 + $0x2] sm:$0x1] %vm675, %v713
    %719 = vst.msk [vmem:[#allocation2 + $0xa] sm:$0x1] %vm677, %v713
    %720 = vst.msk [vmem:[#allocation2 + $0x12] sm:$0x1] %vm675, %v715
    %721 = vst.msk [vmem:[#allocation2 + $0x1a] sm:$0x1] %vm677, %v715
    %v724 = vunpack.c.l.s4 1966171168
    %v725 = vunpack.c.0.s8 %v724
    %v726 = vlaneseq
    %v727 = vshrl.u32 %v726, 7
    %v728 = vsub.s32 %v725, %v727
    %v729 = vrot.slane %v631, %v728
    %v730 = vcombine.high %v729, %v729
    %v732 = vunpack.c.l.s4 1966171168
    %v733 = vunpack.c.0.s8 %v732
    %v734 = vlaneseq
    %v735 = vshrl.u32 %v734, 7
    %v736 = vsub.s32 %v733, %v735
    %v737 = vrot.slane %v729, %v736
    %v739 = vunpack.c.l.s4 1966171168
    %v740 = vunpack.c.0.s8 %v739
    %v741 = vlaneseq
    %v742 = vshrl.u32 %v741, 7
    %v743 = vsub.s32 %v740, %v742
    %v744 = vrot.slane %v730, %v743
    %v745 = vlaneseq
    %v746 = vshrl.u32 %v745, 7
    %v747 = vsub.s32 0, %v746
    %v748 = vrot.slane %v737, %v747
    %v749 = vlaneseq
    %v750 = vshrl.u32 %v749, 7
    %v751 = vsub.s32 0, %v750
    %v752 = vrot.slane %v744, %v751
    %753 = vrot.lane.b32.xlu0 %v748, 32
    %v754 = vpop.permute.xlu0 %753
    %755 = vrot.lane.b32.xlu0 %v752, 32
    %v756 = vpop.permute.xlu0 %755
    %759 = vst.msk [vmem:[#allocation2 + $0x3] sm:$0x1] %vm675, %v754
    %760 = vst.msk [vmem:[#allocation2 + $0xb] sm:$0x1] %vm677, %v754
    %761 = vst.msk [vmem:[#allocation2 + $0x13] sm:$0x1] %vm675, %v756
    %762 = vst.msk [vmem:[#allocation2 + $0x1b] sm:$0x1] %vm677, %v756
    %v765 = vunpack.c.l.s4 1966171168
    %v766 = vunpack.c.0.s8 %v765
    %v767 = vlaneseq
    %v768 = vshrl.u32 %v767, 7
    %v769 = vsub.s32 %v766, %v768
    %v770 = vrot.slane %v632, %v769
    %v771 = vcombine.high %v770, %v770
    %v773 = vunpack.c.l.s4 1966171168
    %v774 = vunpack.c.0.s8 %v773
    %v775 = vlaneseq
    %v776 = vshrl.u32 %v775, 7
    %v777 = vsub.s32 %v774, %v776
    %v778 = vrot.slane %v770, %v777
    %v780 = vunpack.c.l.s4 1966171168
    %v781 = vunpack.c.0.s8 %v780
    %v782 = vlaneseq
    %v783 = vshrl.u32 %v782, 7
    %v784 = vsub.s32 %v781, %v783
    %v785 = vrot.slane %v771, %v784
    %v786 = vlaneseq
    %v787 = vshrl.u32 %v786, 7
    %v788 = vsub.s32 0, %v787
    %v789 = vrot.slane %v778, %v788
    %v790 = vlaneseq
    %v791 = vshrl.u32 %v790, 7
    %v792 = vsub.s32 0, %v791
    %v793 = vrot.slane %v785, %v792
    %794 = vrot.lane.b32.xlu0 %v789, 32
    %v795 = vpop.permute.xlu0 %794
    %796 = vrot.lane.b32.xlu0 %v793, 32
    %v797 = vpop.permute.xlu0 %796
    %800 = vst.msk [vmem:[#allocation2 + $0x4] sm:$0x1] %vm675, %v795
    %801 = vst.msk [vmem:[#allocation2 + $0xc] sm:$0x1] %vm677, %v795
    %802 = vst.msk [vmem:[#allocation2 + $0x14] sm:$0x1] %vm675, %v797
    %803 = vst.msk [vmem:[#allocation2 + $0x1c] sm:$0x1] %vm677, %v797
    %v804 = vld [vmem:[#allocation2] sm:$0xf]
    %v805 = vld [vmem:[#allocation2 + $0x8] sm:$0xf]
    %v806 = vld [vmem:[#allocation2 + $0x10] sm:$0xf]
    %v807 = vld [vmem:[#allocation2 + $0x18] sm:$0xf]
    %v812 = vcombine.low %v804, %v805
    %v813 = vcombine.low %v806, %v807
    %v814 = vld [vmem:[#allocation2] sm:$0x1e]
    %v815 = vld [vmem:[#allocation2 + $0x8] sm:$0x1e]
    %v816 = vld [vmem:[#allocation2 + $0x10] sm:$0x1e]
    %v817 = vld [vmem:[#allocation2 + $0x18] sm:$0x1e]
    %v822 = vcombine.low %v814, %v815
    %v823 = vcombine.high %v814, %v815
    %v824 = vcombine.low %v816, %v817
    %v825 = vcombine.high %v816, %v817
    %vm826 = vcmask 1042432
    %vm827 = vcmask 1046532
    %vm828 = vmor %vm826, %vm827
    %v829 = vrot.slane %v822, 5
    %v830 = vrot.slane %v829, 4
    %v831 = vrot.slane %v823, 5
    %v832 = vsel %vm828, %v830, %v831
    %v833 = vrot.slane %v824, 5
    %v834 = vrot.slane %v833, 4
    %v835 = vrot.slane %v825, 5
    %v836 = vsel %vm828, %v834, %v835
    %v837 = vld [vmem:[#allocation2] sm:$0x3c]
    %v838 = vld [vmem:[#allocation2 + $0x8] sm:$0x3c]
    %v839 = vld [vmem:[#allocation2 + $0x10] sm:$0x3c]
    %v840 = vld [vmem:[#allocation2 + $0x18] sm:$0x3c]
    %v845 = vcombine.low %v837, %v838
    %v846 = vcombine.high %v837, %v838
    %v847 = vcombine.low %v839, %v840
    %v848 = vcombine.high %v839, %v840
    %vm849 = vcmask 1045508
    %vm850 = vmor %vm427, %vm849
    %v851 = vrot.slane %v845, 6
    %v852 = vrot.slane %v851, 4
    %v853 = vrot.slane %v846, 6
    %v854 = vsel %vm850, %v852, %v853
    %v855 = vrot.slane %v847, 6
    %v856 = vrot.slane %v855, 4
    %v857 = vrot.slane %v848, 6
    %v858 = vsel %vm850, %v856, %v857
    %v859 = vcombine.low %v812, %v813
    %v860 = vcombine.high %v812, %v813
    %v863 = vcombine.low %v832, %v836
    %v864 = vcombine.high %v832, %v836
    %865 = vrot.lane.b32.xlu0 %v863, 64
    %v866 = vpop.permute.xlu0 %865
    %867 = vrot.lane.b32.xlu0 %v864, 64
    %v868 = vpop.permute.xlu0 %867
    %vm869 = vcmask 523264
    %v870 = vsel %vm869, %v866, %v868
    %v873 = vcombine.low %v854, %v858
    %v874 = vcombine.high %v854, %v858
    %v877 = vsel %vm869, %v860, %v866
    %v878 = vpack.c.bf16 %v859, %v859
    %v879 = vpack.c.bf16 %v877, %v877
    %v880 = vpack.c.bf16 %v870, %v870
    %v881 = vpack.c.bf16 %v873, %v873
    %v882 = vpack.c.bf16 %v874, %v874
    %v883 = vld [vmem:[#allocation13] sm:$0xff]
    %v884 = vld [vmem:[#allocation13 + $0x8] sm:$0xff]
    %v885 = vld [vmem:[#allocation13 + $0x10] sm:$0xff]
    %v886 = vld [vmem:[#allocation13 + $0x18] sm:$0xff]
    %v887 = vld [vmem:[#allocation13 + $0x20] sm:$0xff]
    %v888 = vld [vmem:[#allocation13 + $0x28] sm:$0xff]
    %v889 = vld [vmem:[#allocation13 + $0x30] sm:$0xff]
    %v890 = vld [vmem:[#allocation13 + $0x38] sm:$0xff]
    %v891 = vld [vmem:[#allocation13 + $0x40] sm:$0xff]
    %v892 = vld [vmem:[#allocation13 + $0x48] sm:$0xff]
    %v893 = vld [vmem:[#allocation13 + $0x50] sm:$0xff]
    %v894 = vld [vmem:[#allocation13 + $0x58] sm:$0xff]
    %v895 = vld [vmem:[#allocation13 + $0x60] sm:$0xff]
    %v896 = vld [vmem:[#allocation13 + $0x68] sm:$0xff]
    %v897 = vld [vmem:[#allocation13 + $0x70] sm:$0xff]
    %v898 = vld [vmem:[#allocation13 + $0x78] sm:$0xff]
    %v899 = vld [vmem:[#allocation13 + $0x80] sm:$0xff]
    %v900 = vld [vmem:[#allocation13 + $0x88] sm:$0xff]
    %v901 = vld [vmem:[#allocation13 + $0x90] sm:$0xff]
    %v902 = vld [vmem:[#allocation13 + $0x98] sm:$0xff]
    %v903 = vld [vmem:[#allocation13 + $0xa0] sm:$0xff]
    %v904 = vld [vmem:[#allocation13 + $0xa8] sm:$0xff]
    %v905 = vld [vmem:[#allocation13 + $0xb0] sm:$0xff]
    %v906 = vld [vmem:[#allocation13 + $0xb8] sm:$0xff]
    %v907 = vld [vmem:[#allocation13 + $0xc0] sm:$0xff]
    %v908 = vld [vmem:[#allocation13 + $0xc8] sm:$0xff]
    %v909 = vld [vmem:[#allocation13 + $0xd0] sm:$0xff]
    %v910 = vld [vmem:[#allocation13 + $0xd8] sm:$0xff]
    %v911 = vld [vmem:[#allocation13 + $0xe0] sm:$0xff]
    %v912 = vld [vmem:[#allocation13 + $0xe8] sm:$0xff]
    %v913 = vld [vmem:[#allocation13 + $0xf0] sm:$0xff]
    %v914 = vld [vmem:[#allocation13 + $0xf8] sm:$0xff]
    %v915 = vld [vmem:[#allocation13 + $0x100] sm:$0xff]
    %v916 = vld [vmem:[#allocation13 + $0x108] sm:$0xff]
    %v917 = vld [vmem:[#allocation13 + $0x110] sm:$0xff]
    %v918 = vld [vmem:[#allocation13 + $0x118] sm:$0xff]
    %v919 = vld [vmem:[#allocation13 + $0x120] sm:$0xff]
    %v920 = vld [vmem:[#allocation13 + $0x128] sm:$0xff]
    %v921 = vld [vmem:[#allocation13 + $0x130] sm:$0xff]
    %v922 = vld [vmem:[#allocation13 + $0x138] sm:$0xff]
    %v923 = vld [vmem:[#allocation13 + $0x140] sm:$0xff]
    %v924 = vld [vmem:[#allocation13 + $0x148] sm:$0xff]
    %v925 = vld [vmem:[#allocation13 + $0x150] sm:$0xff]
    %v926 = vld [vmem:[#allocation13 + $0x158] sm:$0xff]
    %v927 = vld [vmem:[#allocation13 + $0x160] sm:$0xff]
    %v928 = vld [vmem:[#allocation13 + $0x168] sm:$0xff]
    %v929 = vld [vmem:[#allocation13 + $0x170] sm:$0xff]
    %v930 = vld [vmem:[#allocation13 + $0x178] sm:$0xff]
    %v931 = vld [vmem:[#allocation13 + $0x180] sm:$0xff]
    %v932 = vld [vmem:[#allocation13 + $0x188] sm:$0xff]
    %v933 = vld [vmem:[#allocation13 + $0x190] sm:$0xff]
    %v934 = vld [vmem:[#allocation13 + $0x198] sm:$0xff]
    %v935 = vld [vmem:[#allocation13 + $0x1a0] sm:$0xff]
    %v936 = vld [vmem:[#allocation13 + $0x1a8] sm:$0xff]
    %v937 = vld [vmem:[#allocation13 + $0x1b0] sm:$0xff]
    %v938 = vld [vmem:[#allocation13 + $0x1b8] sm:$0xff]
    %v939 = vld [vmem:[#allocation13 + $0x1c0] sm:$0xff]
    %v940 = vld [vmem:[#allocation13 + $0x1c8] sm:$0xff]
    %v941 = vld [vmem:[#allocation13 + $0x1d0] sm:$0xff]
    %v942 = vld [vmem:[#allocation13 + $0x1d8] sm:$0xff]
    %v943 = vld [vmem:[#allocation13 + $0x1e0] sm:$0xff]
    %v944 = vld [vmem:[#allocation13 + $0x1e8] sm:$0xff]
    %v945 = vld [vmem:[#allocation13 + $0x1f0] sm:$0xff]
    %v946 = vld [vmem:[#allocation13 + $0x1f8] sm:$0xff]
    %v947 = vld [vmem:[#allocation13 + $0x200] sm:$0xff]
    %v948 = vld [vmem:[#allocation13 + $0x208] sm:$0xff]
    %v949 = vld [vmem:[#allocation13 + $0x210] sm:$0xff]
    %v950 = vld [vmem:[#allocation13 + $0x218] sm:$0xff]
    %v951 = vld [vmem:[#allocation13 + $0x220] sm:$0xff]
    %v952 = vld [vmem:[#allocation13 + $0x228] sm:$0xff]
    %v953 = vld [vmem:[#allocation13 + $0x230] sm:$0xff]
    %v954 = vld [vmem:[#allocation13 + $0x238] sm:$0xff]
    %v955 = vld [vmem:[#allocation15] sm:$0x3]
    %v957 = vlaneseq
    %v958 = vshrl.u32 %v957, 7
    %v959 = vsub.s32 0, %v958
    %v960 = vrot.slane %v955, %v959
    %v961 = vlaneseq
    %v962 = vshrl.u32 %v961, 7
    %v963 = vsub.s32 1, %v962
    %v964 = vrot.slane %v955, %v963
    %v1039 = vunpack.c.l.b16 %v883
    %v1040 = vunpack.c.h.b16 %v883
    %v1041 = vunpack.c.l.b16 %v884
    %v1042 = vunpack.c.h.b16 %v884
    %v1043 = vunpack.c.l.b16 %v885
    %v1044 = vunpack.c.h.b16 %v885
    %v1045 = vunpack.c.l.b16 %v886
    %v1046 = vunpack.c.h.b16 %v886
    %v1047 = vunpack.c.l.b16 %v887
    %v1048 = vunpack.c.h.b16 %v887
    %v1049 = vunpack.c.l.b16 %v888
    %v1050 = vunpack.c.h.b16 %v888
    %v1051 = vunpack.c.l.b16 %v889
    %v1052 = vunpack.c.h.b16 %v889
    %v1053 = vunpack.c.l.b16 %v890
    %v1054 = vunpack.c.h.b16 %v890
    %v1055 = vunpack.c.l.b16 %v891
    %v1056 = vunpack.c.h.b16 %v891
    %v1057 = vunpack.c.l.b16 %v892
    %v1058 = vunpack.c.h.b16 %v892
    %v1059 = vunpack.c.l.b16 %v893
    %v1060 = vunpack.c.h.b16 %v893
    %v1061 = vunpack.c.l.b16 %v894
    %v1062 = vunpack.c.h.b16 %v894
    %v1063 = vunpack.c.l.b16 %v895
    %v1064 = vunpack.c.h.b16 %v895
    %v1065 = vunpack.c.l.b16 %v896
    %v1066 = vunpack.c.h.b16 %v896
    %v1067 = vunpack.c.l.b16 %v897
    %v1068 = vunpack.c.h.b16 %v897
    %v1069 = vunpack.c.l.b16 %v898
    %v1070 = vunpack.c.h.b16 %v898
    %v1071 = vunpack.c.l.b16 %v899
    %v1072 = vunpack.c.h.b16 %v899
    %v1073 = vunpack.c.l.b16 %v900
    %v1074 = vunpack.c.h.b16 %v900
    %v1075 = vunpack.c.l.b16 %v901
    %v1076 = vunpack.c.h.b16 %v901
    %v1077 = vunpack.c.l.b16 %v902
    %v1078 = vunpack.c.h.b16 %v902
    %v1079 = vunpack.c.l.b16 %v903
    %v1080 = vunpack.c.h.b16 %v903
    %v1081 = vunpack.c.l.b16 %v904
    %v1082 = vunpack.c.h.b16 %v904
    %v1083 = vunpack.c.l.b16 %v905
    %v1084 = vunpack.c.h.b16 %v905
    %v1085 = vunpack.c.l.b16 %v906
    %v1086 = vunpack.c.h.b16 %v906
    %v1087 = vunpack.c.l.b16 %v907
    %v1088 = vunpack.c.h.b16 %v907
    %v1089 = vunpack.c.l.b16 %v908
    %v1090 = vunpack.c.h.b16 %v908
    %v1091 = vunpack.c.l.b16 %v909
    %v1092 = vunpack.c.h.b16 %v909
    %v1093 = vunpack.c.l.b16 %v910
    %v1094 = vunpack.c.h.b16 %v910
    %v1095 = vunpack.c.l.b16 %v911
    %v1096 = vunpack.c.h.b16 %v911
    %v1097 = vunpack.c.l.b16 %v912
    %v1098 = vunpack.c.h.b16 %v912
    %v1099 = vunpack.c.l.b16 %v913
    %v1100 = vunpack.c.h.b16 %v913
    %v1101 = vunpack.c.l.b16 %v914
    %v1102 = vunpack.c.h.b16 %v914
    %v1103 = vunpack.c.l.b16 %v915
    %v1104 = vunpack.c.h.b16 %v915
    %v1105 = vunpack.c.l.b16 %v916
    %v1106 = vunpack.c.h.b16 %v916
    %v1107 = vunpack.c.l.b16 %v917
    %v1108 = vunpack.c.h.b16 %v917
    %v1109 = vunpack.c.l.b16 %v918
    %v1110 = vunpack.c.h.b16 %v918
    %v1111 = vunpack.c.l.b16 %v919
    %v1112 = vunpack.c.h.b16 %v919
    %v1113 = vunpack.c.l.b16 %v920
    %v1114 = vunpack.c.h.b16 %v920
    %v1115 = vunpack.c.l.b16 %v921
    %v1116 = vunpack.c.h.b16 %v921
    %v1117 = vunpack.c.l.b16 %v922
    %v1118 = vunpack.c.h.b16 %v922
    %v1119 = vunpack.c.l.b16 %v923
    %v1120 = vunpack.c.h.b16 %v923
    %v1121 = vunpack.c.l.b16 %v924
    %v1122 = vunpack.c.h.b16 %v924
    %v1123 = vunpack.c.l.b16 %v925
    %v1124 = vunpack.c.h.b16 %v925
    %v1125 = vunpack.c.l.b16 %v926
    %v1126 = vunpack.c.h.b16 %v926
    %v1127 = vunpack.c.l.b16 %v927
    %v1128 = vunpack.c.h.b16 %v927
    %v1129 = vunpack.c.l.b16 %v928
    %v1130 = vunpack.c.h.b16 %v928
    %v1131 = vunpack.c.l.b16 %v929
    %v1132 = vunpack.c.h.b16 %v929
    %v1133 = vunpack.c.l.b16 %v930
    %v1134 = vunpack.c.h.b16 %v930
    %v1135 = vunpack.c.l.b16 %v931
    %v1136 = vunpack.c.h.b16 %v931
    %v1137 = vunpack.c.l.b16 %v932
    %v1138 = vunpack.c.h.b16 %v932
    %v1139 = vunpack.c.l.b16 %v933
    %v1140 = vunpack.c.h.b16 %v933
    %v1141 = vunpack.c.l.b16 %v934
    %v1142 = vunpack.c.h.b16 %v934
    %v1143 = vunpack.c.l.b16 %v935
    %v1144 = vunpack.c.h.b16 %v935
    %v1145 = vunpack.c.l.b16 %v936
    %v1146 = vunpack.c.h.b16 %v936
    %v1147 = vunpack.c.l.b16 %v937
    %v1148 = vunpack.c.h.b16 %v937
    %v1149 = vunpack.c.l.b16 %v938
    %v1150 = vunpack.c.h.b16 %v938
    %v1151 = vunpack.c.l.b16 %v939
    %v1152 = vunpack.c.h.b16 %v939
    %v1153 = vunpack.c.l.b16 %v940
    %v1154 = vunpack.c.h.b16 %v940
    %v1155 = vunpack.c.l.b16 %v941
    %v1156 = vunpack.c.h.b16 %v941
    %v1157 = vunpack.c.l.b16 %v942
    %v1158 = vunpack.c.h.b16 %v942
    %v1159 = vunpack.c.l.b16 %v943
    %v1160 = vunpack.c.h.b16 %v943
    %v1161 = vunpack.c.l.b16 %v944
    %v1162 = vunpack.c.h.b16 %v944
    %v1163 = vunpack.c.l.b16 %v945
    %v1164 = vunpack.c.h.b16 %v945
    %v1165 = vunpack.c.l.b16 %v946
    %v1166 = vunpack.c.h.b16 %v946
    %v1167 = vunpack.c.l.b16 %v947
    %v1168 = vunpack.c.h.b16 %v947
    %v1169 = vunpack.c.l.b16 %v948
    %v1170 = vunpack.c.h.b16 %v948
    %v1171 = vunpack.c.l.b16 %v949
    %v1172 = vunpack.c.h.b16 %v949
    %v1173 = vunpack.c.l.b16 %v950
    %v1174 = vunpack.c.h.b16 %v950
    %v1175 = vunpack.c.l.b16 %v951
    %v1176 = vunpack.c.h.b16 %v951
    %v1177 = vunpack.c.l.b16 %v952
    %v1178 = vunpack.c.h.b16 %v952
    %v1179 = vunpack.c.l.b16 %v953
    %v1180 = vunpack.c.h.b16 %v953
    %v1181 = vunpack.c.l.b16 %v954
    %v1182 = vunpack.c.h.b16 %v954
    %v1183 = vpack.c.b16 %v1041, %v1039
    %v1184 = vpack.c.b16 %v1042, %v1040
    %v1185 = vpack.c.b16 %v1045, %v1043
    %v1186 = vpack.c.b16 %v1046, %v1044
    %v1187 = vpack.c.b16 %v1049, %v1047
    %v1188 = vpack.c.b16 %v1050, %v1048
    %v1189 = vpack.c.b16 %v1053, %v1051
    %v1190 = vpack.c.b16 %v1054, %v1052
    %v1191 = vpack.c.b16 %v1057, %v1055
    %v1192 = vpack.c.b16 %v1058, %v1056
    %v1193 = vpack.c.b16 %v1061, %v1059
    %v1194 = vpack.c.b16 %v1062, %v1060
    %v1195 = vpack.c.b16 %v1065, %v1063
    %v1196 = vpack.c.b16 %v1066, %v1064
    %v1197 = vpack.c.b16 %v1069, %v1067
    %v1198 = vpack.c.b16 %v1070, %v1068
    %v1199 = vpack.c.b16 %v1073, %v1071
    %v1200 = vpack.c.b16 %v1074, %v1072
    %v1201 = vpack.c.b16 %v1077, %v1075
    %v1202 = vpack.c.b16 %v1078, %v1076
    %v1203 = vpack.c.b16 %v1081, %v1079
    %v1204 = vpack.c.b16 %v1082, %v1080
    %v1205 = vpack.c.b16 %v1085, %v1083
    %v1206 = vpack.c.b16 %v1086, %v1084
    %v1207 = vpack.c.b16 %v1089, %v1087
    %v1208 = vpack.c.b16 %v1090, %v1088
    %v1209 = vpack.c.b16 %v1093, %v1091
    %v1210 = vpack.c.b16 %v1094, %v1092
    %v1211 = vpack.c.b16 %v1097, %v1095
    %v1212 = vpack.c.b16 %v1098, %v1096
    %v1213 = vpack.c.b16 %v1101, %v1099
    %v1214 = vpack.c.b16 %v1102, %v1100
    %v1215 = vpack.c.b16 %v1105, %v1103
    %v1216 = vpack.c.b16 %v1106, %v1104
    %v1217 = vpack.c.b16 %v1109, %v1107
    %v1218 = vpack.c.b16 %v1110, %v1108
    %v1219 = vpack.c.b16 %v1113, %v1111
    %v1220 = vpack.c.b16 %v1114, %v1112
    %v1221 = vpack.c.b16 %v1117, %v1115
    %v1222 = vpack.c.b16 %v1118, %v1116
    %v1223 = vpack.c.b16 %v1121, %v1119
    %v1224 = vpack.c.b16 %v1122, %v1120
    %v1225 = vpack.c.b16 %v1125, %v1123
    %v1226 = vpack.c.b16 %v1126, %v1124
    %v1227 = vpack.c.b16 %v1129, %v1127
    %v1228 = vpack.c.b16 %v1130, %v1128
    %v1229 = vpack.c.b16 %v1133, %v1131
    %v1230 = vpack.c.b16 %v1134, %v1132
    %v1231 = vpack.c.b16 %v1137, %v1135
    %v1232 = vpack.c.b16 %v1138, %v1136
    %v1233 = vpack.c.b16 %v1141, %v1139
    %v1234 = vpack.c.b16 %v1142, %v1140
    %v1235 = vpack.c.b16 %v1145, %v1143
    %v1236 = vpack.c.b16 %v1146, %v1144
    %v1237 = vpack.c.b16 %v1149, %v1147
    %v1238 = vpack.c.b16 %v1150, %v1148
    %v1239 = vpack.c.b16 %v1153, %v1151
    %v1240 = vpack.c.b16 %v1154, %v1152
    %v1241 = vpack.c.b16 %v1157, %v1155
    %v1242 = vpack.c.b16 %v1158, %v1156
    %v1243 = vpack.c.b16 %v1161, %v1159
    %v1244 = vpack.c.b16 %v1162, %v1160
    %v1245 = vpack.c.b16 %v1165, %v1163
    %v1246 = vpack.c.b16 %v1166, %v1164
    %v1247 = vpack.c.b16 %v1169, %v1167
    %v1248 = vpack.c.b16 %v1170, %v1168
    %v1249 = vpack.c.b16 %v1173, %v1171
    %v1250 = vpack.c.b16 %v1174, %v1172
    %v1251 = vpack.c.b16 %v1177, %v1175
    %v1252 = vpack.c.b16 %v1178, %v1176
    %v1253 = vpack.c.b16 %v1181, %v1179
    %v1254 = vpack.c.b16 %v1182, %v1180
    %v1328 = vsel %vm869, %v882, 0
    %1330 = vmatprep.subr.bf16.mxu0 %v1198
    %1331 = vmatpush1.bf16.msra.mxu0 %v1197
    %1332 = vmatprep.subr.bf16.mxu0 %v1196
    %1333 = vmatpush1.bf16.msra.mxu0 %v1195
    %1334 = vmatprep.subr.bf16.mxu0 %v1194
    %1335 = vmatpush1.bf16.msra.mxu0 %v1193
    %1336 = vmatprep.subr.bf16.mxu0 %v1192
    %1337 = vmatpush1.bf16.msra.mxu0 %v1191
    %1338 = vmatprep.subr.bf16.mxu0 %v1190
    %1339 = vmatpush1.bf16.msra.mxu0 %v1189
    %1340 = vmatprep.subr.bf16.mxu0 %v1188
    %1341 = vmatpush1.bf16.msra.mxu0 %v1187
    %1342 = vmatprep.subr.bf16.mxu0 %v1186
    %1343 = vmatpush1.bf16.msra.mxu0 %v1185
    %1344 = vmatprep.subr.bf16.mxu0 %v1184
    %1345 = vmatpush1.bf16.msra.mxu0 %v1183
    %1346 = vmatprep.subr.bf16.mxu0 %v1214
    %1347 = vmatpush2.bf16.msra.mxu0 %v1213
    %1348 = vmatprep.subr.bf16.mxu0 %v1212
    %1349 = vmatpush2.bf16.msra.mxu0 %v1211
    %1350 = vmatprep.subr.bf16.mxu0 %v1210
    %1351 = vmatpush2.bf16.msra.mxu0 %v1209
    %1352 = vmatprep.subr.bf16.mxu0 %v1208
    %1353 = vmatpush2.bf16.msra.mxu0 %v1207
    %1354 = vmatprep.subr.bf16.mxu0 %v1206
    %1355 = vmatpush2.bf16.msra.mxu0 %v1205
    %1356 = vmatprep.subr.bf16.mxu0 %v1204
    %1357 = vmatpush2.bf16.msra.mxu0 %v1203
    %1358 = vmatprep.subr.bf16.mxu0 %v1202
    %1359 = vmatpush2.bf16.msra.mxu0 %v1201
    %1360 = vmatprep.subr.bf16.mxu0 %v1200
    %1361 = vmatpush2.bf16.msra.mxu0 %v1199
    %1362 = vmatprep.mubr.bf16.mxu0 %v879
    %1363 = vmatmul.mubr.bf16.gmra.mxu0 %v878
    %v1364 = vpop.f32.mrf.mxu0
    %v1365 = vadd.f32 %v960, %v1364
    %v1366 = vpop.f32.mrf.mxu0
    %v1367 = vadd.f32 %v964, %v1366
    %v1368 = vpop.f32.mrf.mxu0
    %v1369 = vpop.f32.mrf.mxu0
    %1370 = vdwg.mxu0
    %1371 = vmatprep.subr.bf16.mxu0 %v1230
    %1372 = vmatpush1.bf16.msra.mxu0 %v1229
    %1373 = vmatprep.subr.bf16.mxu0 %v1228
    %1374 = vmatpush1.bf16.msra.mxu0 %v1227
    %1375 = vmatprep.subr.bf16.mxu0 %v1226
    %1376 = vmatpush1.bf16.msra.mxu0 %v1225
    %1377 = vmatprep.subr.bf16.mxu0 %v1224
    %1378 = vmatpush1.bf16.msra.mxu0 %v1223
    %1379 = vmatprep.subr.bf16.mxu0 %v1222
    %1380 = vmatpush1.bf16.msra.mxu0 %v1221
    %1381 = vmatprep.subr.bf16.mxu0 %v1220
    %1382 = vmatpush1.bf16.msra.mxu0 %v1219
    %1383 = vmatprep.subr.bf16.mxu0 %v1218
    %1384 = vmatpush1.bf16.msra.mxu0 %v1217
    %1385 = vmatprep.subr.bf16.mxu0 %v1216
    %1386 = vmatpush1.bf16.msra.mxu0 %v1215
    %1387 = vmatprep.subr.bf16.mxu0 %v1246
    %1388 = vmatpush2.bf16.msra.mxu0 %v1245
    %1389 = vmatprep.subr.bf16.mxu0 %v1244
    %1390 = vmatpush2.bf16.msra.mxu0 %v1243
    %1391 = vmatprep.subr.bf16.mxu0 %v1242
    %1392 = vmatpush2.bf16.msra.mxu0 %v1241
    %1393 = vmatprep.subr.bf16.mxu0 %v1240
    %1394 = vmatpush2.bf16.msra.mxu0 %v1239
    %1395 = vmatprep.subr.bf16.mxu0 %v1238
    %1396 = vmatpush2.bf16.msra.mxu0 %v1237
    %1397 = vmatprep.subr.bf16.mxu0 %v1236
    %1398 = vmatpush2.bf16.msra.mxu0 %v1235
    %1399 = vmatprep.subr.bf16.mxu0 %v1234
    %1400 = vmatpush2.bf16.msra.mxu0 %v1233
    %1401 = vmatprep.subr.bf16.mxu0 %v1232
    %1402 = vmatpush2.bf16.msra.mxu0 %v1231
    %1403 = vmatprep.mubr.bf16.mxu0 %v881
    %1404 = vmatmul.mubr.bf16.gmra.mxu0 %v880
    %v1405 = vpop.f32.mrf.mxu0
    %v1406 = vadd.f32 %v1365, %v1405
    %v1407 = vpop.f32.mrf.mxu0
    %v1408 = vadd.f32 %v1367, %v1407
    %v1409 = vpop.f32.mrf.mxu0
    %v1410 = vpop.f32.mrf.mxu0
    %1411 = vdwg.mxu0
    %1412 = vmatprep.subr.bf16.mxu0 0
    %1413 = vmatpush1.bf16.msra.mxu0 0
    %1414 = vmatprep.subr.bf16.mxu0 0
    %1415 = vmatpush1.bf16.msra.mxu0 0
    %1416 = vmatprep.subr.bf16.mxu0 0
    %1417 = vmatpush1.bf16.msra.mxu0 0
    %1418 = vmatprep.subr.bf16.mxu0 0
    %1419 = vmatpush1.bf16.msra.mxu0 0
    %1420 = vmatprep.subr.bf16.mxu0 %v1254
    %1421 = vmatpush1.bf16.msra.mxu0 %v1253
    %1422 = vmatprep.subr.bf16.mxu0 %v1252
    %1423 = vmatpush1.bf16.msra.mxu0 %v1251
    %1424 = vmatprep.subr.bf16.mxu0 %v1250
    %1425 = vmatpush1.bf16.msra.mxu0 %v1249
    %1426 = vmatprep.subr.bf16.mxu0 %v1248
    %1427 = vmatpush1.bf16.msra.mxu0 %v1247
    %1428 = vmatprep.subr.bf16.mxu0 0
    %1429 = vmatpush2.bf16.msra.mxu0 0
    %1430 = vmatprep.subr.bf16.mxu0 0
    %1431 = vmatpush2.bf16.msra.mxu0 0
    %1432 = vmatprep.subr.bf16.mxu0 0
    %1433 = vmatpush2.bf16.msra.mxu0 0
    %1434 = vmatprep.subr.bf16.mxu0 0
    %1435 = vmatpush2.bf16.msra.mxu0 0
    %1436 = vmatprep.subr.bf16.mxu0 0
    %1437 = vmatpush2.bf16.msra.mxu0 0
    %1438 = vmatprep.subr.bf16.mxu0 0
    %1439 = vmatpush2.bf16.msra.mxu0 0
    %1440 = vmatprep.subr.bf16.mxu0 0
    %1441 = vmatpush2.bf16.msra.mxu0 0
    %1442 = vmatprep.subr.bf16.mxu0 0
    %1443 = vmatpush2.bf16.msra.mxu0 0
    %1444 = vmatprep.mubr.bf16.mxu0 0
    %1445 = vmatmul.mubr.bf16.gmra.mxu0 %v1328
    %v1446 = vpop.f32.mrf.mxu0
    %v1447 = vadd.f32 %v1406, %v1446
    %v1448 = vpop.f32.mrf.mxu0
    %v1449 = vadd.f32 %v1408, %v1448
    %v1450 = vpop.f32.mrf.mxu0
    %v1451 = vpop.f32.mrf.mxu0
    %1452 = vdwg.mxu0
    %v1453 = vrot.slane %v1447, 4
    %v1454 = vadd.f32 %v1447, %v1453
    %v1455 = vrot.slane %v1454, 2
    %v1456 = vadd.f32 %v1454, %v1455
    %v1457 = vrot.slane %v1456, 1
    %v1458 = vadd.f32 %v1456, %v1457
    %v1459 = vrot.slane %v1449, 4
    %v1460 = vadd.f32 %v1449, %v1459
    %v1461 = vrot.slane %v1460, 2
    %v1462 = vadd.f32 %v1460, %v1461
    %v1463 = vrot.slane %v1462, 1
    %v1464 = vadd.f32 %v1462, %v1463
    %v1465 = vadd.f32 %v1458, %v1464
    %v1466 = vmul.f32 %v1447, %v1447
    %v1467 = vrot.slane %v1466, 4
    %v1468 = vadd.f32 %v1466, %v1467
    %v1469 = vrot.slane %v1468, 2
    %v1470 = vadd.f32 %v1468, %v1469
    %v1471 = vrot.slane %v1470, 1
    %v1472 = vadd.f32 %v1470, %v1471
    %v1473 = vmul.f32 %v1449, %v1449
    %v1474 = vrot.slane %v1473, 4
    %v1475 = vadd.f32 %v1473, %v1474
    %v1476 = vrot.slane %v1475, 2
    %v1477 = vadd.f32 %v1475, %v1476
    %v1478 = vrot.slane %v1477, 1
    %v1479 = vadd.f32 %v1477, %v1478
    %v1480 = vadd.f32 %v1472, %v1479
    %v1481 = vld [vmem:[%s9] sm:$0xff]
    %v1482 = vld [vmem:[%s9 + $0x8] sm:$0xff]
    %v1483 = vld [vmem:[%s9 + $0x10] sm:$0xff]
    %v1484 = vld [vmem:[%s9 + $0x18] sm:$0xff]
    %v1485 = vld [vmem:[%s9 + $0x20] sm:$0xff]
    %v1486 = vld [vmem:[%s9 + $0x28] sm:$0xff]
    %v1487 = vld [vmem:[%s9 + $0x30] sm:$0xff]
    %v1488 = vld [vmem:[%s9 + $0x38] sm:$0xff]
    %v1489 = vld [vmem:[%s9 + $0x40] sm:$0xff]
    %v1490 = vld [vmem:[%s9 + $0x48] sm:$0xff]
    %v1491 = vld [vmem:[%s9 + $0x50] sm:$0xff]
    %v1492 = vld [vmem:[%s9 + $0x58] sm:$0xff]
    %v1493 = vld [vmem:[%s9 + $0x60] sm:$0xff]
    %v1494 = vld [vmem:[%s9 + $0x68] sm:$0xff]
    %v1495 = vld [vmem:[%s9 + $0x70] sm:$0xff]
    %v1496 = vld [vmem:[%s9 + $0x78] sm:$0xff]
    %1497 = vmatprep.subr.mxu0 0.0
    %1498 = vmatpush1.msra.mxu0 %v1496
    %1499 = vmatprep.subr.mxu0 0.0
    %1500 = vmatpush1.msra.mxu0 %v1495
    %1501 = vmatprep.subr.mxu0 0.0
    %1502 = vmatpush1.msra.mxu0 %v1494
    %1503 = vmatprep.subr.mxu0 0.0
    %1504 = vmatpush1.msra.mxu0 %v1493
    %1505 = vmatprep.subr.mxu0 0.0
    %1506 = vmatpush1.msra.mxu0 %v1492
    %1507 = vmatprep.subr.mxu0 0.0
    %1508 = vmatpush1.msra.mxu0 %v1491
    %1509 = vmatprep.subr.mxu0 0.0
    %1510 = vmatpush1.msra.mxu0 %v1490
    %1511 = vmatprep.subr.mxu0 0.0
    %1512 = vmatpush1.msra.mxu0 %v1489
    %1513 = vmatprep.subr.mxu0 0.0
    %1514 = vmatpush1.msra.mxu0 %v1488
    %1515 = vmatprep.subr.mxu0 0.0
    %1516 = vmatpush1.msra.mxu0 %v1487
    %1517 = vmatprep.subr.mxu0 0.0
    %1518 = vmatpush1.msra.mxu0 %v1486
    %1519 = vmatprep.subr.mxu0 0.0
    %1520 = vmatpush1.msra.mxu0 %v1485
    %1521 = vmatprep.subr.mxu0 0.0
    %1522 = vmatpush1.msra.mxu0 %v1484
    %1523 = vmatprep.subr.mxu0 0.0
    %1524 = vmatpush1.msra.mxu0 %v1483
    %1525 = vmatprep.subr.mxu0 0.0
    %1526 = vmatpush1.msra.mxu0 %v1482
    %1527 = vmatprep.subr.mxu0 0.0
    %1528 = vmatpush1.msra.mxu0 %v1481
    %1529 = vmatprep.subr.mxu0 0.0
    %1530 = vmatpush2.msra.mxu0 0.0
    %1531 = vmatprep.subr.mxu0 0.0
    %1532 = vmatpush2.msra.mxu0 0.0
    %1533 = vmatprep.subr.mxu0 0.0
    %1534 = vmatpush2.msra.mxu0 0.0
    %1535 = vmatprep.subr.mxu0 0.0
    %1536 = vmatpush2.msra.mxu0 0.0
    %1537 = vmatprep.subr.mxu0 0.0
    %1538 = vmatpush2.msra.mxu0 0.0
    %1539 = vmatprep.subr.mxu0 0.0
    %1540 = vmatpush2.msra.mxu0 0.0
    %1541 = vmatprep.subr.mxu0 0.0
    %1542 = vmatpush2.msra.mxu0 0.0
    %1543 = vmatprep.subr.mxu0 0.0
    %1544 = vmatpush2.msra.mxu0 0.0
    %1545 = vmatprep.subr.mxu0 0.0
    %1546 = vmatpush2.msra.mxu0 0.0
    %1547 = vmatprep.subr.mxu0 0.0
    %1548 = vmatpush2.msra.mxu0 0.0
    %1549 = vmatprep.subr.mxu0 0.0
    %1550 = vmatpush2.msra.mxu0 0.0
    %1551 = vmatprep.subr.mxu0 0.0
    %1552 = vmatpush2.msra.mxu0 0.0
    %1553 = vmatprep.subr.mxu0 0.0
    %1554 = vmatpush2.msra.mxu0 0.0
    %1555 = vmatprep.subr.mxu0 0.0
    %1556 = vmatpush2.msra.mxu0 0.0
    %1557 = vmatprep.subr.mxu0 0.0
    %1558 = vmatpush2.msra.mxu0 0.0
    %1559 = vmatprep.subr.mxu0 0.0
    %1560 = vmatpush2.msra.mxu0 0.0
    %1561 = vmatprep.mubr.f32.mxu0 0.0
    %1562 = vmatmul.mubr.f32.gmra.mxu0 %v1465
    %v1563 = vpop.f32.mrf.mxu0
    %v1564 = vadd.f32 0.0, %v1563
    %v1565 = vpop.f32.mrf.mxu0
    %1566 = vdwg.mxu0
    %v1567 = vrcp.pop 128.0
    %v1568 = vmul.f32 %v1564, %v1567
    %1569 = vmatprep.subr.mxu0 0.0
    %1570 = vmatpush1.msra.mxu0 %v1496
    %1571 = vmatprep.subr.mxu0 0.0
    %1572 = vmatpush1.msra.mxu0 %v1495
    %1573 = vmatprep.subr.mxu0 0.0
    %1574 = vmatpush1.msra.mxu0 %v1494
    %1575 = vmatprep.subr.mxu0 0.0
    %1576 = vmatpush1.msra.mxu0 %v1493
    %1577 = vmatprep.subr.mxu0 0.0
    %1578 = vmatpush1.msra.mxu0 %v1492
    %1579 = vmatprep.subr.mxu0 0.0
    %1580 = vmatpush1.msra.mxu0 %v1491
    %1581 = vmatprep.subr.mxu0 0.0
    %1582 = vmatpush1.msra.mxu0 %v1490
    %1583 = vmatprep.subr.mxu0 0.0
    %1584 = vmatpush1.msra.mxu0 %v1489
    %1585 = vmatprep.subr.mxu0 0.0
    %1586 = vmatpush1.msra.mxu0 %v1488
    %1587 = vmatprep.subr.mxu0 0.0
    %1588 = vmatpush1.msra.mxu0 %v1487
    %1589 = vmatprep.subr.mxu0 0.0
    %1590 = vmatpush1.msra.mxu0 %v1486
    %1591 = vmatprep.subr.mxu0 0.0
    %1592 = vmatpush1.msra.mxu0 %v1485
    %1593 = vmatprep.subr.mxu0 0.0
    %1594 = vmatpush1.msra.mxu0 %v1484
    %1595 = vmatprep.subr.mxu0 0.0
    %1596 = vmatpush1.msra.mxu0 %v1483
    %1597 = vmatprep.subr.mxu0 0.0
    %1598 = vmatpush1.msra.mxu0 %v1482
    %1599 = vmatprep.subr.mxu0 0.0
    %1600 = vmatpush1.msra.mxu0 %v1481
    %1601 = vmatprep.subr.mxu0 0.0
    %1602 = vmatpush2.msra.mxu0 0.0
    %1603 = vmatprep.subr.mxu0 0.0
    %1604 = vmatpush2.msra.mxu0 0.0
    %1605 = vmatprep.subr.mxu0 0.0
    %1606 = vmatpush2.msra.mxu0 0.0
    %1607 = vmatprep.subr.mxu0 0.0
    %1608 = vmatpush2.msra.mxu0 0.0
    %1609 = vmatprep.subr.mxu0 0.0
    %1610 = vmatpush2.msra.mxu0 0.0
    %1611 = vmatprep.subr.mxu0 0.0
    %1612 = vmatpush2.msra.mxu0 0.0
    %1613 = vmatprep.subr.mxu0 0.0
    %1614 = vmatpush2.msra.mxu0 0.0
    %1615 = vmatprep.subr.mxu0 0.0
    %1616 = vmatpush2.msra.mxu0 0.0
    %1617 = vmatprep.subr.mxu0 0.0
    %1618 = vmatpush2.msra.mxu0 0.0
    %1619 = vmatprep.subr.mxu0 0.0
    %1620 = vmatpush2.msra.mxu0 0.0
    %1621 = vmatprep.subr.mxu0 0.0
    %1622 = vmatpush2.msra.mxu0 0.0
    %1623 = vmatprep.subr.mxu0 0.0
    %1624 = vmatpush2.msra.mxu0 0.0
    %1625 = vmatprep.subr.mxu0 0.0
    %1626 = vmatpush2.msra.mxu0 0.0
    %1627 = vmatprep.subr.mxu0 0.0
    %1628 = vmatpush2.msra.mxu0 0.0
    %1629 = vmatprep.subr.mxu0 0.0
    %1630 = vmatpush2.msra.mxu0 0.0
    %1631 = vmatprep.subr.mxu0 0.0
    %1632 = vmatpush2.msra.mxu0 0.0
    %1633 = vmatprep.mubr.f32.mxu0 0.0
    %1634 = vmatmul.mubr.f32.gmra.mxu0 %v1480
    %v1635 = vpop.f32.mrf.mxu0
    %v1636 = vadd.f32 0.0, %v1635
    %v1637 = vpop.f32.mrf.mxu0
    %1638 = vdwg.mxu0
    %v1639 = vmul.f32 %v1636, %v1567
    %v1640 = vmul.f32 %v1568, %v1568
    %v1641 = vsub.f32 %v1639, %v1640
    %v1642 = vld [vmem:[#allocation16] sm:$0x1]
    %v1643 = vadd.f32 %v1641, 1e-05
    %v1644 = vrsqrt.pop %v1643
    %v1645 = vmul.f32 %v1642, %v1644
    %v1646 = vld [vmem:[#allocation18] sm:$0x1]
    %v1647 = vmul.f32 %v1568, %v1645
    %v1648 = vsub.f32 %v1646, %v1647
    %v1649 = vld [vmem:[#allocation19] sm:$0xff]
    %v1650 = vld [vmem:[#allocation19 + $0x8] sm:$0xff]
    %vm1651 = vcmask 130048
    %v1653 = vsel %vm1651, %v1645, 0
    %1655 = vmatprep.subr.mxu0 0.0
    %1656 = vmatpush1.msra.mxu0 0.0
    %1657 = vmatprep.subr.mxu0 0.0
    %1658 = vmatpush1.msra.mxu0 0.0
    %1659 = vmatprep.subr.mxu0 0.0
    %1660 = vmatpush1.msra.mxu0 0.0
    %1661 = vmatprep.subr.mxu0 0.0
    %1662 = vmatpush1.msra.mxu0 0.0
    %1663 = vmatprep.subr.mxu0 0.0
    %1664 = vmatpush1.msra.mxu0 0.0
    %1665 = vmatprep.subr.mxu0 0.0
    %1666 = vmatpush1.msra.mxu0 0.0
    %1667 = vmatprep.subr.mxu0 0.0
    %1668 = vmatpush1.msra.mxu0 0.0
    %1669 = vmatprep.subr.mxu0 0.0
    %1670 = vmatpush1.msra.mxu0 0.0
    %1671 = vmatprep.subr.mxu0 0.0
    %1672 = vmatpush1.msra.mxu0 0.0
    %1673 = vmatprep.subr.mxu0 0.0
    %1674 = vmatpush1.msra.mxu0 0.0
    %1675 = vmatprep.subr.mxu0 0.0
    %1676 = vmatpush1.msra.mxu0 0.0
    %1677 = vmatprep.subr.mxu0 0.0
    %1678 = vmatpush1.msra.mxu0 0.0
    %1679 = vmatprep.subr.mxu0 0.0
    %1680 = vmatpush1.msra.mxu0 0.0
    %1681 = vmatprep.subr.mxu0 0.0
    %1682 = vmatpush1.msra.mxu0 0.0
    %1683 = vmatprep.subr.mxu0 0.0
    %1684 = vmatpush1.msra.mxu0 %v1650
    %1685 = vmatprep.subr.mxu0 0.0
    %1686 = vmatpush1.msra.mxu0 %v1649
    %1687 = vmatprep.subr.mxu0 0.0
    %1688 = vmatpush2.msra.mxu0 0.0
    %1689 = vmatprep.subr.mxu0 0.0
    %1690 = vmatpush2.msra.mxu0 0.0
    %1691 = vmatprep.subr.mxu0 0.0
    %1692 = vmatpush2.msra.mxu0 0.0
    %1693 = vmatprep.subr.mxu0 0.0
    %1694 = vmatpush2.msra.mxu0 0.0
    %1695 = vmatprep.subr.mxu0 0.0
    %1696 = vmatpush2.msra.mxu0 0.0
    %1697 = vmatprep.subr.mxu0 0.0
    %1698 = vmatpush2.msra.mxu0 0.0
    %1699 = vmatprep.subr.mxu0 0.0
    %1700 = vmatpush2.msra.mxu0 0.0
    %1701 = vmatprep.subr.mxu0 0.0
    %1702 = vmatpush2.msra.mxu0 0.0
    %1703 = vmatprep.subr.mxu0 0.0
    %1704 = vmatpush2.msra.mxu0 0.0
    %1705 = vmatprep.subr.mxu0 0.0
    %1706 = vmatpush2.msra.mxu0 0.0
    %1707 = vmatprep.subr.mxu0 0.0
    %1708 = vmatpush2.msra.mxu0 0.0
    %1709 = vmatprep.subr.mxu0 0.0
    %1710 = vmatpush2.msra.mxu0 0.0
    %1711 = vmatprep.subr.mxu0 0.0
    %1712 = vmatpush2.msra.mxu0 0.0
    %1713 = vmatprep.subr.mxu0 0.0
    %1714 = vmatpush2.msra.mxu0 0.0
    %1715 = vmatprep.subr.mxu0 0.0
    %1716 = vmatpush2.msra.mxu0 0.0
    %1717 = vmatprep.subr.mxu0 0.0
    %1718 = vmatpush2.msra.mxu0 0.0
    %1719 = vmatprep.mubr.f32.mxu0 0.0
    %1720 = vmatmul.mubr.f32.gmra.mxu0 %v1653
    %v1721 = vpop.f32.mrf.mxu0
    %v1722 = vadd.f32 0.0, %v1721
    %v1723 = vpop.f32.mrf.mxu0
    %1724 = vdwg.mxu0
    %v1726 = vsel %vm1651, %v1648, 0
    %1728 = vmatprep.subr.mxu0 0.0
    %1729 = vmatpush1.msra.mxu0 0.0
    %1730 = vmatprep.subr.mxu0 0.0
    %1731 = vmatpush1.msra.mxu0 0.0
    %1732 = vmatprep.subr.mxu0 0.0
    %1733 = vmatpush1.msra.mxu0 0.0
    %1734 = vmatprep.subr.mxu0 0.0
    %1735 = vmatpush1.msra.mxu0 0.0
    %1736 = vmatprep.subr.mxu0 0.0
    %1737 = vmatpush1.msra.mxu0 0.0
    %1738 = vmatprep.subr.mxu0 0.0
    %1739 = vmatpush1.msra.mxu0 0.0
    %1740 = vmatprep.subr.mxu0 0.0
    %1741 = vmatpush1.msra.mxu0 0.0
    %1742 = vmatprep.subr.mxu0 0.0
    %1743 = vmatpush1.msra.mxu0 0.0
    %1744 = vmatprep.subr.mxu0 0.0
    %1745 = vmatpush1.msra.mxu0 0.0
    %1746 = vmatprep.subr.mxu0 0.0
    %1747 = vmatpush1.msra.mxu0 0.0
    %1748 = vmatprep.subr.mxu0 0.0
    %1749 = vmatpush1.msra.mxu0 0.0
    %1750 = vmatprep.subr.mxu0 0.0
    %1751 = vmatpush1.msra.mxu0 0.0
    %1752 = vmatprep.subr.mxu0 0.0
    %1753 = vmatpush1.msra.mxu0 0.0
    %1754 = vmatprep.subr.mxu0 0.0
    %1755 = vmatpush1.msra.mxu0 0.0
    %1756 = vmatprep.subr.mxu0 0.0
    %1757 = vmatpush1.msra.mxu0 %v1650
    %1758 = vmatprep.subr.mxu0 0.0
    %1759 = vmatpush1.msra.mxu0 %v1649
    %1760 = vmatprep.subr.mxu0 0.0
    %1761 = vmatpush2.msra.mxu0 0.0
    %1762 = vmatprep.subr.mxu0 0.0
    %1763 = vmatpush2.msra.mxu0 0.0
    %1764 = vmatprep.subr.mxu0 0.0
    %1765 = vmatpush2.msra.mxu0 0.0
    %1766 = vmatprep.subr.mxu0 0.0
    %1767 = vmatpush2.msra.mxu0 0.0
    %1768 = vmatprep.subr.mxu0 0.0
    %1769 = vmatpush2.msra.mxu0 0.0
    %1770 = vmatprep.subr.mxu0 0.0
    %1771 = vmatpush2.msra.mxu0 0.0
    %1772 = vmatprep.subr.mxu0 0.0
    %1773 = vmatpush2.msra.mxu0 0.0
    %1774 = vmatprep.subr.mxu0 0.0
    %1775 = vmatpush2.msra.mxu0 0.0
    %1776 = vmatprep.subr.mxu0 0.0
    %1777 = vmatpush2.msra.mxu0 0.0
    %1778 = vmatprep.subr.mxu0 0.0
    %1779 = vmatpush2.msra.mxu0 0.0
    %1780 = vmatprep.subr.mxu0 0.0
    %1781 = vmatpush2.msra.mxu0 0.0
    %1782 = vmatprep.subr.mxu0 0.0
    %1783 = vmatpush2.msra.mxu0 0.0
    %1784 = vmatprep.subr.mxu0 0.0
    %1785 = vmatpush2.msra.mxu0 0.0
    %1786 = vmatprep.subr.mxu0 0.0
    %1787 = vmatpush2.msra.mxu0 0.0
    %1788 = vmatprep.subr.mxu0 0.0
    %1789 = vmatpush2.msra.mxu0 0.0
    %1790 = vmatprep.subr.mxu0 0.0
    %1791 = vmatpush2.msra.mxu0 0.0
    %1792 = vmatprep.mubr.f32.mxu0 0.0
    %1793 = vmatmul.mubr.f32.gmra.mxu0 %v1726
    %v1794 = vpop.f32.mrf.mxu0
    %v1795 = vadd.f32 0.0, %v1794
    %v1796 = vpop.f32.mrf.mxu0
    %1797 = vdwg.mxu0
    %v1798 = vlaneseq
    %v1799 = vshrl.u32 %v1798, 7
    %v1800 = vsub.s32 0, %v1799
    %v1801 = vrot.slane %v1722, %v1800
    %v1802 = vmul.f32 %v1447, %v1801
    %v1803 = vlaneseq
    %v1804 = vshrl.u32 %v1803, 7
    %v1805 = vsub.s32 0, %v1804
    %v1806 = vrot.slane %v1795, %v1805
    %v1807 = vadd.f32 %v1802, %v1806
    %v1808 = vmax.f32 %v1807, 0.0
    %v1809 = vmul.f32 %v1449, %v1801
    %v1810 = vadd.f32 %v1809, %v1806
    %v1811 = vmax.f32 %v1810, 0.0
    %v1813 = vcombine.high %v1808, %v1808
    %v1815 = vcombine.high %v1811, %v1811
    %1816 = vst [vmem:[#allocation3] sm:$0xff] 0.0
    %vm1817 = vcmask 261120
    %1818 = vst.msk [vmem:[#allocation3 + $0x8] sm:$0xff] %vm1817, 0.0
    %1819 = vst [vmem:[#allocation3 + $0x10] sm:$0x3] 0.0
    %vm1820 = vcmask 254976
    %1821 = vst.msk [vmem:[#allocation3 + $0x18] sm:$0x3] %vm1820, 0.0
    %1822 = vst [vmem:[#allocation3 + $0x20] sm:$0xff] 0.0
    %1823 = vst.msk [vmem:[#allocation3 + $0x28] sm:$0xff] %vm1817, 0.0
    %1824 = vst [vmem:[#allocation3 + $0x30] sm:$0x3] 0.0
    %1825 = vst.msk [vmem:[#allocation3 + $0x38] sm:$0x3] %vm1820, 0.0
    %v1826 = vlaneseq
    %v1827 = vshrl.u32 %v1826, 7
    %v1828 = vsub.s32 0, %v1827
    %v1829 = vrot.slane %v1808, %v1828
    %v1830 = vlaneseq
    %v1831 = vshrl.u32 %v1830, 7
    %v1832 = vsub.s32 0, %v1831
    %v1833 = vrot.slane %v1813, %v1832
    %1834 = vrot.lane.b32.xlu0 %v1829, 16
    %v1835 = vpop.permute.xlu0 %1834
    %1836 = vrot.lane.b32.xlu0 %v1833, 16
    %v1837 = vpop.permute.xlu0 %1836
    %vm1840 = vcmask 1040512
    %1841 = vst.msk [vmem:[#allocation3 + $0x1] sm:$0x1] %vm1840, %v1835
    %vm1842 = vcmask 122880
    %1843 = vst.msk [vmem:[#allocation3 + $0x9] sm:$0x1] %vm1842, %v1835
    %1844 = vst.msk [vmem:[#allocation3 + $0x21] sm:$0x1] %vm1840, %v1837
    %1845 = vst.msk [vmem:[#allocation3 + $0x29] sm:$0x1] %vm1842, %v1837
    %v1846 = vlaneseq
    %v1847 = vshrl.u32 %v1846, 7
    %v1848 = vsub.s32 0, %v1847
    %v1849 = vrot.slane %v1811, %v1848
    %v1850 = vlaneseq
    %v1851 = vshrl.u32 %v1850, 7
    %v1852 = vsub.s32 0, %v1851
    %v1853 = vrot.slane %v1815, %v1852
    %1854 = vrot.lane.b32.xlu0 %v1849, 16
    %v1855 = vpop.permute.xlu0 %1854
    %1856 = vrot.lane.b32.xlu0 %v1853, 16
    %v1857 = vpop.permute.xlu0 %1856
    %1860 = vst.msk [vmem:[#allocation3 + $0x2] sm:$0x1] %vm1840, %v1855
    %1861 = vst.msk [vmem:[#allocation3 + $0xa] sm:$0x1] %vm1842, %v1855
    %1862 = vst.msk [vmem:[#allocation3 + $0x22] sm:$0x1] %vm1840, %v1857
    %1863 = vst.msk [vmem:[#allocation3 + $0x2a] sm:$0x1] %vm1842, %v1857
    %v1864 = vlaneseq
    %v1865 = vshrl.u32 %v1864, 7
    %v1866 = vsub.s32 1, %v1865
    %v1867 = vrot.slane %v1808, %v1866
    %v1868 = vlaneseq
    %v1869 = vshrl.u32 %v1868, 7
    %v1870 = vsub.s32 1, %v1869
    %v1871 = vrot.slane %v1813, %v1870
    %1872 = vrot.lane.b32.xlu0 %v1867, 16
    %v1873 = vpop.permute.xlu0 %1872
    %1874 = vrot.lane.b32.xlu0 %v1871, 16
    %v1875 = vpop.permute.xlu0 %1874
    %1878 = vst.msk [vmem:[#allocation3 + $0x3] sm:$0x1] %vm1840, %v1873
    %1879 = vst.msk [vmem:[#allocation3 + $0xb] sm:$0x1] %vm1842, %v1873
    %1880 = vst.msk [vmem:[#allocation3 + $0x23] sm:$0x1] %vm1840, %v1875
    %1881 = vst.msk [vmem:[#allocation3 + $0x2b] sm:$0x1] %vm1842, %v1875
    %v1882 = vlaneseq
    %v1883 = vshrl.u32 %v1882, 7
    %v1884 = vsub.s32 1, %v1883
    %v1885 = vrot.slane %v1811, %v1884
    %v1886 = vlaneseq
    %v1887 = vshrl.u32 %v1886, 7
    %v1888 = vsub.s32 1, %v1887
    %v1889 = vrot.slane %v1815, %v1888
    %1890 = vrot.lane.b32.xlu0 %v1885, 16
    %v1891 = vpop.permute.xlu0 %1890
    %1892 = vrot.lane.b32.xlu0 %v1889, 16
    %v1893 = vpop.permute.xlu0 %1892
    %1896 = vst.msk [vmem:[#allocation3 + $0x4] sm:$0x1] %vm1840, %v1891
    %1897 = vst.msk [vmem:[#allocation3 + $0xc] sm:$0x1] %vm1842, %v1891
    %1898 = vst.msk [vmem:[#allocation3 + $0x24] sm:$0x1] %vm1840, %v1893
    %1899 = vst.msk [vmem:[#allocation3 + $0x2c] sm:$0x1] %vm1842, %v1893
    %v1900 = vlaneseq
    %v1901 = vshrl.u32 %v1900, 7
    %v1902 = vsub.s32 2, %v1901
    %v1903 = vrot.slane %v1808, %v1902
    %v1904 = vlaneseq
    %v1905 = vshrl.u32 %v1904, 7
    %v1906 = vsub.s32 2, %v1905
    %v1907 = vrot.slane %v1813, %v1906
    %1908 = vrot.lane.b32.xlu0 %v1903, 16
    %v1909 = vpop.permute.xlu0 %1908
    %1910 = vrot.lane.b32.xlu0 %v1907, 16
    %v1911 = vpop.permute.xlu0 %1910
    %1914 = vst.msk [vmem:[#allocation3 + $0x5] sm:$0x1] %vm1840, %v1909
    %1915 = vst.msk [vmem:[#allocation3 + $0xd] sm:$0x1] %vm1842, %v1909
    %1916 = vst.msk [vmem:[#allocation3 + $0x25] sm:$0x1] %vm1840, %v1911
    %1917 = vst.msk [vmem:[#allocation3 + $0x2d] sm:$0x1] %vm1842, %v1911
    %v1918 = vlaneseq
    %v1919 = vshrl.u32 %v1918, 7
    %v1920 = vsub.s32 2, %v1919
    %v1921 = vrot.slane %v1811, %v1920
    %v1922 = vlaneseq
    %v1923 = vshrl.u32 %v1922, 7
    %v1924 = vsub.s32 2, %v1923
    %v1925 = vrot.slane %v1815, %v1924
    %1926 = vrot.lane.b32.xlu0 %v1921, 16
    %v1927 = vpop.permute.xlu0 %1926
    %1928 = vrot.lane.b32.xlu0 %v1925, 16
    %v1929 = vpop.permute.xlu0 %1928
    %1932 = vst.msk [vmem:[#allocation3 + $0x6] sm:$0x1] %vm1840, %v1927
    %1933 = vst.msk [vmem:[#allocation3 + $0xe] sm:$0x1] %vm1842, %v1927
    %1934 = vst.msk [vmem:[#allocation3 + $0x26] sm:$0x1] %vm1840, %v1929
    %1935 = vst.msk [vmem:[#allocation3 + $0x2e] sm:$0x1] %vm1842, %v1929
    %v1936 = vlaneseq
    %v1937 = vshrl.u32 %v1936, 7
    %v1938 = vsub.s32 3, %v1937
    %v1939 = vrot.slane %v1808, %v1938
    %v1940 = vlaneseq
    %v1941 = vshrl.u32 %v1940, 7
    %v1942 = vsub.s32 3, %v1941
    %v1943 = vrot.slane %v1813, %v1942
    %1944 = vrot.lane.b32.xlu0 %v1939, 16
    %v1945 = vpop.permute.xlu0 %1944
    %1946 = vrot.lane.b32.xlu0 %v1943, 16
    %v1947 = vpop.permute.xlu0 %1946
    %1950 = vst.msk [vmem:[#allocation3 + $0x7] sm:$0x1] %vm1840, %v1945
    %1951 = vst.msk [vmem:[#allocation3 + $0xf] sm:$0x1] %vm1842, %v1945
    %1952 = vst.msk [vmem:[#allocation3 + $0x27] sm:$0x1] %vm1840, %v1947
    %1953 = vst.msk [vmem:[#allocation3 + $0x2f] sm:$0x1] %vm1842, %v1947
    %v1954 = vlaneseq
    %v1955 = vshrl.u32 %v1954, 7
    %v1956 = vsub.s32 3, %v1955
    %v1957 = vrot.slane %v1811, %v1956
    %v1958 = vlaneseq
    %v1959 = vshrl.u32 %v1958, 7
    %v1960 = vsub.s32 3, %v1959
    %v1961 = vrot.slane %v1815, %v1960
    %1962 = vrot.lane.b32.xlu0 %v1957, 16
    %v1963 = vpop.permute.xlu0 %1962
    %1964 = vrot.lane.b32.xlu0 %v1961, 16
    %v1965 = vpop.permute.xlu0 %1964
    %1968 = vst.msk [vmem:[#allocation3 + $0x10] sm:$0x1] %vm1840, %v1963
    %1969 = vst.msk [vmem:[#allocation3 + $0x18] sm:$0x1] %vm1842, %v1963
    %1970 = vst.msk [vmem:[#allocation3 + $0x30] sm:$0x1] %vm1840, %v1965
    %1971 = vst.msk [vmem:[#allocation3 + $0x38] sm:$0x1] %vm1842, %v1965
    %v1972 = vld [vmem:[#allocation3] sm:$0xff]
    %v1973 = vld [vmem:[#allocation3 + $0x8] sm:$0xff]
    %v1974 = vld [vmem:[#allocation3 + $0x20] sm:$0xff]
    %v1975 = vld [vmem:[#allocation3 + $0x28] sm:$0xff]
    %v1976 = vld [vmem:[#allocation3] sm:$0xfe]
    %v1977 = vld [vmem:[#allocation3 + $0x8] sm:$0xfe]
    %v1978 = vld [vmem:[#allocation3 + $0x10] sm:$0x1]
    %v1979 = vld [vmem:[#allocation3 + $0x18] sm:$0x1]
    %v1980 = vld [vmem:[#allocation3 + $0x20] sm:$0xfe]
    %v1981 = vld [vmem:[#allocation3 + $0x28] sm:$0xfe]
    %v1982 = vld [vmem:[#allocation3 + $0x30] sm:$0x1]
    %v1983 = vld [vmem:[#allocation3 + $0x38] sm:$0x1]
    %vm1992 = vcmask 1046528
    %v1993 = vrot.slane %v1976, 1
    %v1994 = vrot.slane %v1978, 1
    %v1995 = vsel %vm1992, %v1993, %v1994
    %v1996 = vrot.slane %v1977, 1
    %v1997 = vrot.slane %v1979, 1
    %v1998 = vsel %vm1992, %v1996, %v1997
    %v1999 = vrot.slane %v1980, 1
    %v2000 = vrot.slane %v1982, 1
    %v2001 = vsel %vm1992, %v1999, %v2000
    %v2002 = vrot.slane %v1981, 1
    %v2003 = vrot.slane %v1983, 1
    %v2004 = vsel %vm1992, %v2002, %v2003
    %v2005 = vld [vmem:[#allocation3] sm:$0xfc]
    %v2006 = vld [vmem:[#allocation3 + $0x8] sm:$0xfc]
    %v2007 = vld [vmem:[#allocation3 + $0x10] sm:$0x3]
    %v2008 = vld [vmem:[#allocation3 + $0x18] sm:$0x3]
    %v2009 = vld [vmem:[#allocation3 + $0x20] sm:$0xfc]
    %v2010 = vld [vmem:[#allocation3 + $0x28] sm:$0xfc]
    %v2011 = vld [vmem:[#allocation3 + $0x30] sm:$0x3]
    %v2012 = vld [vmem:[#allocation3 + $0x38] sm:$0x3]
    %vm2021 = vcmask 1045504
    %v2022 = vrot.slane %v2005, 2
    %v2023 = vrot.slane %v2007, 2
    %v2024 = vsel %vm2021, %v2022, %v2023
    %v2025 = vrot.slane %v2006, 2
    %v2026 = vrot.slane %v2008, 2
    %v2027 = vsel %vm2021, %v2025, %v2026
    %v2028 = vrot.slane %v2009, 2
    %v2029 = vrot.slane %v2011, 2
    %v2030 = vsel %vm2021, %v2028, %v2029
    %v2031 = vrot.slane %v2010, 2
    %v2032 = vrot.slane %v2012, 2
    %v2033 = vsel %vm2021, %v2031, %v2032
    %2034 = vrot.lane.b32.xlu0 %v1995, 32
    %v2035 = vpop.permute.xlu0 %2034
    %2036 = vrot.lane.b32.xlu0 %v1998, 32
    %v2037 = vpop.permute.xlu0 %2036
    %2038 = vrot.lane.b32.xlu0 %v2001, 32
    %v2039 = vpop.permute.xlu0 %2038
    %2040 = vrot.lane.b32.xlu0 %v2004, 32
    %v2041 = vpop.permute.xlu0 %2040
    %v2042 = vsel %vm1817, %v2035, %v2037
    %v2043 = vsel %vm1817, %v2039, %v2041
    %2048 = vrot.lane.b32.xlu0 %v2024, 64
    %v2049 = vpop.permute.xlu0 %2048
    %2050 = vrot.lane.b32.xlu0 %v2027, 64
    %v2051 = vpop.permute.xlu0 %2050
    %2052 = vrot.lane.b32.xlu0 %v2030, 64
    %v2053 = vpop.permute.xlu0 %2052
    %2054 = vrot.lane.b32.xlu0 %v2033, 64
    %v2055 = vpop.permute.xlu0 %2054
    %v2056 = vsel %vm869, %v2049, %v2051
    %v2057 = vsel %vm869, %v2053, %v2055
    %v2062 = vsel %vm1817, %v1973, %v2035
    %v2063 = vsel %vm1817, %v1975, %v2039
    %v2064 = vsel %vm869, %v2042, %v2049
    %v2065 = vsel %vm869, %v2043, %v2053
    %v2066 = vpack.c.bf16 %v1974, %v1972
    %v2067 = vpack.c.bf16 %v2063, %v2062
    %v2068 = vpack.c.bf16 %v2065, %v2064
    %v2069 = vpack.c.bf16 %v2057, %v2056
    %v2070 = vld [vmem:[#allocation21] sm:$0xff]
    %v2071 = vld [vmem:[#allocation21 + $0x8] sm:$0xff]
    %v2072 = vld [vmem:[#allocation21 + $0x10] sm:$0xff]
    %v2073 = vld [vmem:[#allocation21 + $0x18] sm:$0xff]
    %v2074 = vld [vmem:[#allocation21 + $0x20] sm:$0xff]
    %v2075 = vld [vmem:[#allocation21 + $0x28] sm:$0xff]
    %v2076 = vld [vmem:[#allocation21 + $0x30] sm:$0xff]
    %v2077 = vld [vmem:[#allocation21 + $0x38] sm:$0xff]
    %v2078 = vld [vmem:[#allocation21 + $0x40] sm:$0xff]
    %v2079 = vld [vmem:[#allocation21 + $0x48] sm:$0xff]
    %v2080 = vld [vmem:[#allocation21 + $0x50] sm:$0xff]
    %v2081 = vld [vmem:[#allocation21 + $0x58] sm:$0xff]
    %v2082 = vld [vmem:[#allocation21 + $0x60] sm:$0xff]
    %v2083 = vld [vmem:[#allocation21 + $0x68] sm:$0xff]
    %v2084 = vld [vmem:[#allocation21 + $0x70] sm:$0xff]
    %v2085 = vld [vmem:[#allocation21 + $0x78] sm:$0xff]
    %v2086 = vld [vmem:[#allocation21 + $0x80] sm:$0xff]
    %v2087 = vld [vmem:[#allocation21 + $0x88] sm:$0xff]
    %v2088 = vld [vmem:[#allocation21 + $0x90] sm:$0xff]
    %v2089 = vld [vmem:[#allocation21 + $0x98] sm:$0xff]
    %v2090 = vld [vmem:[#allocation21 + $0xa0] sm:$0xff]
    %v2091 = vld [vmem:[#allocation21 + $0xa8] sm:$0xff]
    %v2092 = vld [vmem:[#allocation21 + $0xb0] sm:$0xff]
    %v2093 = vld [vmem:[#allocation21 + $0xb8] sm:$0xff]
    %v2094 = vld [vmem:[#allocation21 + $0xc0] sm:$0xff]
    %v2095 = vld [vmem:[#allocation21 + $0xc8] sm:$0xff]
    %v2096 = vld [vmem:[#allocation21 + $0xd0] sm:$0xff]
    %v2097 = vld [vmem:[#allocation21 + $0xd8] sm:$0xff]
    %v2098 = vld [vmem:[#allocation21 + $0xe0] sm:$0xff]
    %v2099 = vld [vmem:[#allocation21 + $0xe8] sm:$0xff]
    %v2100 = vld [vmem:[#allocation21 + $0xf0] sm:$0xff]
    %v2101 = vld [vmem:[#allocation21 + $0xf8] sm:$0xff]
    %v2102 = vld [vmem:[#allocation21 + $0x100] sm:$0xff]
    %v2103 = vld [vmem:[#allocation21 + $0x108] sm:$0xff]
    %v2104 = vld [vmem:[#allocation21 + $0x110] sm:$0xff]
    %v2105 = vld [vmem:[#allocation21 + $0x118] sm:$0xff]
    %v2106 = vld [vmem:[#allocation21 + $0x120] sm:$0xff]
    %v2107 = vld [vmem:[#allocation21 + $0x128] sm:$0xff]
    %v2108 = vld [vmem:[#allocation21 + $0x130] sm:$0xff]
    %v2109 = vld [vmem:[#allocation21 + $0x138] sm:$0xff]
    %v2110 = vld [vmem:[#allocation21 + $0x140] sm:$0xff]
    %v2111 = vld [vmem:[#allocation21 + $0x148] sm:$0xff]
    %v2112 = vld [vmem:[#allocation21 + $0x150] sm:$0xff]
    %v2113 = vld [vmem:[#allocation21 + $0x158] sm:$0xff]
    %v2114 = vld [vmem:[#allocation21 + $0x160] sm:$0xff]
    %v2115 = vld [vmem:[#allocation21 + $0x168] sm:$0xff]
    %v2116 = vld [vmem:[#allocation21 + $0x170] sm:$0xff]
    %v2117 = vld [vmem:[#allocation21 + $0x178] sm:$0xff]
    %v2118 = vld [vmem:[#allocation21 + $0x180] sm:$0xff]
    %v2119 = vld [vmem:[#allocation21 + $0x188] sm:$0xff]
    %v2120 = vld [vmem:[#allocation21 + $0x190] sm:$0xff]
    %v2121 = vld [vmem:[#allocation21 + $0x198] sm:$0xff]
    %v2122 = vld [vmem:[#allocation21 + $0x1a0] sm:$0xff]
    %v2123 = vld [vmem:[#allocation21 + $0x1a8] sm:$0xff]
    %v2124 = vld [vmem:[#allocation21 + $0x1b0] sm:$0xff]
    %v2125 = vld [vmem:[#allocation21 + $0x1b8] sm:$0xff]
    %v2126 = vld [vmem:[#allocation21 + $0x1c0] sm:$0xff]
    %v2127 = vld [vmem:[#allocation21 + $0x1c8] sm:$0xff]
    %v2128 = vld [vmem:[#allocation21 + $0x1d0] sm:$0xff]
    %v2129 = vld [vmem:[#allocation21 + $0x1d8] sm:$0xff]
    %v2130 = vld [vmem:[#allocation22] sm:$0x3]
    %v2132 = vlaneseq
    %v2133 = vshrl.u32 %v2132, 7
    %v2134 = vsub.s32 0, %v2133
    %v2135 = vrot.slane %v2130, %v2134
    %v2136 = vlaneseq
    %v2137 = vshrl.u32 %v2136, 7
    %v2138 = vsub.s32 1, %v2137
    %v2139 = vrot.slane %v2130, %v2138
    %v2202 = vunpack.c.l.b16 %v2070
    %v2203 = vunpack.c.h.b16 %v2070
    %v2204 = vunpack.c.l.b16 %v2071
    %v2205 = vunpack.c.h.b16 %v2071
    %v2206 = vunpack.c.l.b16 %v2072
    %v2207 = vunpack.c.h.b16 %v2072
    %v2208 = vunpack.c.l.b16 %v2073
    %v2209 = vunpack.c.h.b16 %v2073
    %v2210 = vunpack.c.l.b16 %v2074
    %v2211 = vunpack.c.h.b16 %v2074
    %v2212 = vunpack.c.l.b16 %v2075
    %v2213 = vunpack.c.h.b16 %v2075
    %v2214 = vunpack.c.l.b16 %v2076
    %v2215 = vunpack.c.h.b16 %v2076
    %v2216 = vunpack.c.l.b16 %v2077
    %v2217 = vunpack.c.h.b16 %v2077
    %v2218 = vunpack.c.l.b16 %v2078
    %v2219 = vunpack.c.h.b16 %v2078
    %v2220 = vunpack.c.l.b16 %v2079
    %v2221 = vunpack.c.h.b16 %v2079
    %v2222 = vunpack.c.l.b16 %v2080
    %v2223 = vunpack.c.h.b16 %v2080
    %v2224 = vunpack.c.l.b16 %v2081
    %v2225 = vunpack.c.h.b16 %v2081
    %v2226 = vunpack.c.l.b16 %v2082
    %v2227 = vunpack.c.h.b16 %v2082
    %v2228 = vunpack.c.l.b16 %v2083
    %v2229 = vunpack.c.h.b16 %v2083
    %v2230 = vunpack.c.l.b16 %v2084
    %v2231 = vunpack.c.h.b16 %v2084
    %v2232 = vunpack.c.l.b16 %v2085
    %v2233 = vunpack.c.h.b16 %v2085
    %v2234 = vunpack.c.l.b16 %v2086
    %v2235 = vunpack.c.h.b16 %v2086
    %v2236 = vunpack.c.l.b16 %v2087
    %v2237 = vunpack.c.h.b16 %v2087
    %v2238 = vunpack.c.l.b16 %v2088
    %v2239 = vunpack.c.h.b16 %v2088
    %v2240 = vunpack.c.l.b16 %v2089
    %v2241 = vunpack.c.h.b16 %v2089
    %v2242 = vunpack.c.l.b16 %v2090
    %v2243 = vunpack.c.h.b16 %v2090
    %v2244 = vunpack.c.l.b16 %v2091
    %v2245 = vunpack.c.h.b16 %v2091
    %v2246 = vunpack.c.l.b16 %v2092
    %v2247 = vunpack.c.h.b16 %v2092
    %v2248 = vunpack.c.l.b16 %v2093
    %v2249 = vunpack.c.h.b16 %v2093
    %v2250 = vunpack.c.l.b16 %v2094
    %v2251 = vunpack.c.h.b16 %v2094
    %v2252 = vunpack.c.l.b16 %v2095
    %v2253 = vunpack.c.h.b16 %v2095
    %v2254 = vunpack.c.l.b16 %v2096
    %v2255 = vunpack.c.h.b16 %v2096
    %v2256 = vunpack.c.l.b16 %v2097
    %v2257 = vunpack.c.h.b16 %v2097
    %v2258 = vunpack.c.l.b16 %v2098
    %v2259 = vunpack.c.h.b16 %v2098
    %v2260 = vunpack.c.l.b16 %v2099
    %v2261 = vunpack.c.h.b16 %v2099
    %v2262 = vunpack.c.l.b16 %v2100
    %v2263 = vunpack.c.h.b16 %v2100
    %v2264 = vunpack.c.l.b16 %v2101
    %v2265 = vunpack.c.h.b16 %v2101
    %v2266 = vunpack.c.l.b16 %v2102
    %v2267 = vunpack.c.h.b16 %v2102
    %v2268 = vunpack.c.l.b16 %v2103
    %v2269 = vunpack.c.h.b16 %v2103
    %v2270 = vunpack.c.l.b16 %v2104
    %v2271 = vunpack.c.h.b16 %v2104
    %v2272 = vunpack.c.l.b16 %v2105
    %v2273 = vunpack.c.h.b16 %v2105
    %v2274 = vunpack.c.l.b16 %v2106
    %v2275 = vunpack.c.h.b16 %v2106
    %v2276 = vunpack.c.l.b16 %v2107
    %v2277 = vunpack.c.h.b16 %v2107
    %v2278 = vunpack.c.l.b16 %v2108
    %v2279 = vunpack.c.h.b16 %v2108
    %v2280 = vunpack.c.l.b16 %v2109
    %v2281 = vunpack.c.h.b16 %v2109
    %v2282 = vunpack.c.l.b16 %v2110
    %v2283 = vunpack.c.h.b16 %v2110
    %v2284 = vunpack.c.l.b16 %v2111
    %v2285 = vunpack.c.h.b16 %v2111
    %v2286 = vunpack.c.l.b16 %v2112
    %v2287 = vunpack.c.h.b16 %v2112
    %v2288 = vunpack.c.l.b16 %v2113
    %v2289 = vunpack.c.h.b16 %v2113
    %v2290 = vunpack.c.l.b16 %v2114
    %v2291 = vunpack.c.h.b16 %v2114
    %v2292 = vunpack.c.l.b16 %v2115
    %v2293 = vunpack.c.h.b16 %v2115
    %v2294 = vunpack.c.l.b16 %v2116
    %v2295 = vunpack.c.h.b16 %v2116
    %v2296 = vunpack.c.l.b16 %v2117
    %v2297 = vunpack.c.h.b16 %v2117
    %v2298 = vunpack.c.l.b16 %v2118
    %v2299 = vunpack.c.h.b16 %v2118
    %v2300 = vunpack.c.l.b16 %v2119
    %v2301 = vunpack.c.h.b16 %v2119
    %v2302 = vunpack.c.l.b16 %v2120
    %v2303 = vunpack.c.h.b16 %v2120
    %v2304 = vunpack.c.l.b16 %v2121
    %v2305 = vunpack.c.h.b16 %v2121
    %v2306 = vunpack.c.l.b16 %v2122
    %v2307 = vunpack.c.h.b16 %v2122
    %v2308 = vunpack.c.l.b16 %v2123
    %v2309 = vunpack.c.h.b16 %v2123
    %v2310 = vunpack.c.l.b16 %v2124
    %v2311 = vunpack.c.h.b16 %v2124
    %v2312 = vunpack.c.l.b16 %v2125
    %v2313 = vunpack.c.h.b16 %v2125
    %v2314 = vunpack.c.l.b16 %v2126
    %v2315 = vunpack.c.h.b16 %v2126
    %v2316 = vunpack.c.l.b16 %v2127
    %v2317 = vunpack.c.h.b16 %v2127
    %v2318 = vunpack.c.l.b16 %v2128
    %v2319 = vunpack.c.h.b16 %v2128
    %v2320 = vunpack.c.l.b16 %v2129
    %v2321 = vunpack.c.h.b16 %v2129
    %v2322 = vpack.c.b16 %v2204, %v2202
    %v2323 = vpack.c.b16 %v2205, %v2203
    %v2324 = vpack.c.b16 %v2208, %v2206
    %v2325 = vpack.c.b16 %v2209, %v2207
    %v2326 = vpack.c.b16 %v2212, %v2210
    %v2327 = vpack.c.b16 %v2213, %v2211
    %v2328 = vpack.c.b16 %v2216, %v2214
    %v2329 = vpack.c.b16 %v2217, %v2215
    %v2330 = vpack.c.b16 %v2220, %v2218
    %v2331 = vpack.c.b16 %v2221, %v2219
    %v2332 = vpack.c.b16 %v2224, %v2222
    %v2333 = vpack.c.b16 %v2225, %v2223
    %v2334 = vpack.c.b16 %v2228, %v2226
    %v2335 = vpack.c.b16 %v2229, %v2227
    %v2336 = vpack.c.b16 %v2232, %v2230
    %v2337 = vpack.c.b16 %v2233, %v2231
    %v2338 = vpack.c.b16 %v2236, %v2234
    %v2339 = vpack.c.b16 %v2237, %v2235
    %v2340 = vpack.c.b16 %v2240, %v2238
    %v2341 = vpack.c.b16 %v2241, %v2239
    %v2342 = vpack.c.b16 %v2244, %v2242
    %v2343 = vpack.c.b16 %v2245, %v2243
    %v2344 = vpack.c.b16 %v2248, %v2246
    %v2345 = vpack.c.b16 %v2249, %v2247
    %v2346 = vpack.c.b16 %v2252, %v2250
    %v2347 = vpack.c.b16 %v2253, %v2251
    %v2348 = vpack.c.b16 %v2256, %v2254
    %v2349 = vpack.c.b16 %v2257, %v2255
    %v2350 = vpack.c.b16 %v2260, %v2258
    %v2351 = vpack.c.b16 %v2261, %v2259
    %v2352 = vpack.c.b16 %v2264, %v2262
    %v2353 = vpack.c.b16 %v2265, %v2263
    %v2354 = vpack.c.b16 %v2268, %v2266
    %v2355 = vpack.c.b16 %v2269, %v2267
    %v2356 = vpack.c.b16 %v2272, %v2270
    %v2357 = vpack.c.b16 %v2273, %v2271
    %v2358 = vpack.c.b16 %v2276, %v2274
    %v2359 = vpack.c.b16 %v2277, %v2275
    %v2360 = vpack.c.b16 %v2280, %v2278
    %v2361 = vpack.c.b16 %v2281, %v2279
    %v2362 = vpack.c.b16 %v2284, %v2282
    %v2363 = vpack.c.b16 %v2285, %v2283
    %v2364 = vpack.c.b16 %v2288, %v2286
    %v2365 = vpack.c.b16 %v2289, %v2287
    %v2366 = vpack.c.b16 %v2292, %v2290
    %v2367 = vpack.c.b16 %v2293, %v2291
    %v2368 = vpack.c.b16 %v2296, %v2294
    %v2369 = vpack.c.b16 %v2297, %v2295
    %v2370 = vpack.c.b16 %v2300, %v2298
    %v2371 = vpack.c.b16 %v2301, %v2299
    %v2372 = vpack.c.b16 %v2304, %v2302
    %v2373 = vpack.c.b16 %v2305, %v2303
    %v2374 = vpack.c.b16 %v2308, %v2306
    %v2375 = vpack.c.b16 %v2309, %v2307
    %v2376 = vpack.c.b16 %v2312, %v2310
    %v2377 = vpack.c.b16 %v2313, %v2311
    %v2378 = vpack.c.b16 %v2316, %v2314
    %v2379 = vpack.c.b16 %v2317, %v2315
    %v2380 = vpack.c.b16 %v2320, %v2318
    %v2381 = vpack.c.b16 %v2321, %v2319
    %vm2442 = vcmask 785408
    %v2444 = vsel %vm2442, %v2069, 0
    %2446 = vmatprep.subr.bf16.mxu0 %v2337
    %2447 = vmatpush1.bf16.msra.mxu0 %v2336
    %2448 = vmatprep.subr.bf16.mxu0 %v2335
    %2449 = vmatpush1.bf16.msra.mxu0 %v2334
    %2450 = vmatprep.subr.bf16.mxu0 %v2333
    %2451 = vmatpush1.bf16.msra.mxu0 %v2332
    %2452 = vmatprep.subr.bf16.mxu0 %v2331
    %2453 = vmatpush1.bf16.msra.mxu0 %v2330
    %2454 = vmatprep.subr.bf16.mxu0 %v2329
    %2455 = vmatpush1.bf16.msra.mxu0 %v2328
    %2456 = vmatprep.subr.bf16.mxu0 %v2327
    %2457 = vmatpush1.bf16.msra.mxu0 %v2326
    %2458 = vmatprep.subr.bf16.mxu0 %v2325
    %2459 = vmatpush1.bf16.msra.mxu0 %v2324
    %2460 = vmatprep.subr.bf16.mxu0 %v2323
    %2461 = vmatpush1.bf16.msra.mxu0 %v2322
    %2462 = vmatprep.subr.bf16.mxu0 %v2353
    %2463 = vmatpush2.bf16.msra.mxu0 %v2352
    %2464 = vmatprep.subr.bf16.mxu0 %v2351
    %2465 = vmatpush2.bf16.msra.mxu0 %v2350
    %2466 = vmatprep.subr.bf16.mxu0 %v2349
    %2467 = vmatpush2.bf16.msra.mxu0 %v2348
    %2468 = vmatprep.subr.bf16.mxu0 %v2347
    %2469 = vmatpush2.bf16.msra.mxu0 %v2346
    %2470 = vmatprep.subr.bf16.mxu0 %v2345
    %2471 = vmatpush2.bf16.msra.mxu0 %v2344
    %2472 = vmatprep.subr.bf16.mxu0 %v2343
    %2473 = vmatpush2.bf16.msra.mxu0 %v2342
    %2474 = vmatprep.subr.bf16.mxu0 %v2341
    %2475 = vmatpush2.bf16.msra.mxu0 %v2340
    %2476 = vmatprep.subr.bf16.mxu0 %v2339
    %2477 = vmatpush2.bf16.msra.mxu0 %v2338
    %2478 = vmatprep.mubr.bf16.mxu0 %v2067
    %2479 = vmatmul.mubr.bf16.gmra.mxu0 %v2066
    %v2480 = vpop.f32.mrf.mxu0
    %v2481 = vadd.f32 %v2135, %v2480
    %v2482 = vpop.f32.mrf.mxu0
    %v2483 = vadd.f32 %v2139, %v2482
    %v2484 = vpop.f32.mrf.mxu0
    %v2485 = vadd.f32 %v2135, %v2484
    %v2486 = vpop.f32.mrf.mxu0
    %v2487 = vadd.f32 %v2139, %v2486
    %2488 = vdwg.mxu0
    %2489 = vmatprep.subr.bf16.mxu0 %v2369
    %2490 = vmatpush1.bf16.msra.mxu0 %v2368
    %2491 = vmatprep.subr.bf16.mxu0 %v2367
    %2492 = vmatpush1.bf16.msra.mxu0 %v2366
    %2493 = vmatprep.subr.bf16.mxu0 %v2365
    %2494 = vmatpush1.bf16.msra.mxu0 %v2364
    %2495 = vmatprep.subr.bf16.mxu0 %v2363
    %2496 = vmatpush1.bf16.msra.mxu0 %v2362
    %2497 = vmatprep.subr.bf16.mxu0 %v2361
    %2498 = vmatpush1.bf16.msra.mxu0 %v2360
    %2499 = vmatprep.subr.bf16.mxu0 %v2359
    %2500 = vmatpush1.bf16.msra.mxu0 %v2358
    %2501 = vmatprep.subr.bf16.mxu0 %v2357
    %2502 = vmatpush1.bf16.msra.mxu0 %v2356
    %2503 = vmatprep.subr.bf16.mxu0 %v2355
    %2504 = vmatpush1.bf16.msra.mxu0 %v2354
    %2505 = vmatprep.subr.bf16.mxu0 0
    %2506 = vmatpush2.bf16.msra.mxu0 0
    %2507 = vmatprep.subr.bf16.mxu0 0
    %2508 = vmatpush2.bf16.msra.mxu0 0
    %2509 = vmatprep.subr.bf16.mxu0 %v2381
    %2510 = vmatpush2.bf16.msra.mxu0 %v2380
    %2511 = vmatprep.subr.bf16.mxu0 %v2379
    %2512 = vmatpush2.bf16.msra.mxu0 %v2378
    %2513 = vmatprep.subr.bf16.mxu0 %v2377
    %2514 = vmatpush2.bf16.msra.mxu0 %v2376
    %2515 = vmatprep.subr.bf16.mxu0 %v2375
    %2516 = vmatpush2.bf16.msra.mxu0 %v2374
    %2517 = vmatprep.subr.bf16.mxu0 %v2373
    %2518 = vmatpush2.bf16.msra.mxu0 %v2372
    %2519 = vmatprep.subr.bf16.mxu0 %v2371
    %2520 = vmatpush2.bf16.msra.mxu0 %v2370
    %2521 = vmatprep.mubr.bf16.mxu0 %v2444
    %2522 = vmatmul.mubr.bf16.gmra.mxu0 %v2068
    %v2523 = vpop.f32.mrf.mxu0
    %v2524 = vadd.f32 %v2481, %v2523
    %v2525 = vpop.f32.mrf.mxu0
    %v2526 = vadd.f32 %v2483, %v2525
    %v2527 = vpop.f32.mrf.mxu0
    %v2528 = vadd.f32 %v2485, %v2527
    %v2529 = vpop.f32.mrf.mxu0
    %v2530 = vadd.f32 %v2487, %v2529
    %2531 = vdwg.mxu0
    %v2532 = vadd.f32 %v2524, %v2528
    %v2533 = vrot.slane %v2532, 4
    %v2534 = vadd.f32 %v2532, %v2533
    %v2535 = vrot.slane %v2534, 2
    %v2536 = vadd.f32 %v2534, %v2535
    %v2537 = vrot.slane %v2536, 1
    %v2538 = vadd.f32 %v2536, %v2537
    %v2539 = vadd.f32 %v2526, %v2530
    %v2540 = vrot.slane %v2539, 4
    %v2541 = vadd.f32 %v2539, %v2540
    %v2542 = vrot.slane %v2541, 2
    %v2543 = vadd.f32 %v2541, %v2542
    %v2544 = vrot.slane %v2543, 1
    %v2545 = vadd.f32 %v2543, %v2544
    %v2546 = vadd.f32 %v2538, %v2545
    %v2547 = vmul.f32 %v2524, %v2524
    %v2548 = vmul.f32 %v2528, %v2528
    %v2549 = vadd.f32 %v2547, %v2548
    %v2550 = vrot.slane %v2549, 4
    %v2551 = vadd.f32 %v2549, %v2550
    %v2552 = vrot.slane %v2551, 2
    %v2553 = vadd.f32 %v2551, %v2552
    %v2554 = vrot.slane %v2553, 1
    %v2555 = vadd.f32 %v2553, %v2554
    %v2556 = vmul.f32 %v2526, %v2526
    %v2557 = vmul.f32 %v2530, %v2530
    %v2558 = vadd.f32 %v2556, %v2557
    %v2559 = vrot.slane %v2558, 4
    %v2560 = vadd.f32 %v2558, %v2559
    %v2561 = vrot.slane %v2560, 2
    %v2562 = vadd.f32 %v2560, %v2561
    %v2563 = vrot.slane %v2562, 1
    %v2564 = vadd.f32 %v2562, %v2563
    %v2565 = vadd.f32 %v2555, %v2564
    %v2566 = vld [vmem:[%s15] sm:$0xff]
    %v2567 = vld [vmem:[%s15 + $0x8] sm:$0xff]
    %v2568 = vld [vmem:[%s15 + $0x10] sm:$0xff]
    %v2569 = vld [vmem:[%s15 + $0x18] sm:$0xff]
    %v2570 = vld [vmem:[%s15 + $0x20] sm:$0xff]
    %v2571 = vld [vmem:[%s15 + $0x28] sm:$0xff]
    %v2572 = vld [vmem:[%s15 + $0x30] sm:$0xff]
    %v2573 = vld [vmem:[%s15 + $0x38] sm:$0xff]
    %v2574 = vld [vmem:[%s15 + $0x40] sm:$0xff]
    %v2575 = vld [vmem:[%s15 + $0x48] sm:$0xff]
    %v2576 = vld [vmem:[%s15 + $0x50] sm:$0xff]
    %v2577 = vld [vmem:[%s15 + $0x58] sm:$0xff]
    %v2578 = vld [vmem:[%s15 + $0x60] sm:$0xff]
    %v2579 = vld [vmem:[%s15 + $0x68] sm:$0xff]
    %v2580 = vld [vmem:[%s15 + $0x70] sm:$0xff]
    %v2581 = vld [vmem:[%s15 + $0x78] sm:$0xff]
    %2582 = vmatprep.subr.mxu0 0.0
    %2583 = vmatpush1.msra.mxu0 %v2581
    %2584 = vmatprep.subr.mxu0 0.0
    %2585 = vmatpush1.msra.mxu0 %v2580
    %2586 = vmatprep.subr.mxu0 0.0
    %2587 = vmatpush1.msra.mxu0 %v2579
    %2588 = vmatprep.subr.mxu0 0.0
    %2589 = vmatpush1.msra.mxu0 %v2578
    %2590 = vmatprep.subr.mxu0 0.0
    %2591 = vmatpush1.msra.mxu0 %v2577
    %2592 = vmatprep.subr.mxu0 0.0
    %2593 = vmatpush1.msra.mxu0 %v2576
    %2594 = vmatprep.subr.mxu0 0.0
    %2595 = vmatpush1.msra.mxu0 %v2575
    %2596 = vmatprep.subr.mxu0 0.0
    %2597 = vmatpush1.msra.mxu0 %v2574
    %2598 = vmatprep.subr.mxu0 0.0
    %2599 = vmatpush1.msra.mxu0 %v2573
    %2600 = vmatprep.subr.mxu0 0.0
    %2601 = vmatpush1.msra.mxu0 %v2572
    %2602 = vmatprep.subr.mxu0 0.0
    %2603 = vmatpush1.msra.mxu0 %v2571
    %2604 = vmatprep.subr.mxu0 0.0
    %2605 = vmatpush1.msra.mxu0 %v2570
    %2606 = vmatprep.subr.mxu0 0.0
    %2607 = vmatpush1.msra.mxu0 %v2569
    %2608 = vmatprep.subr.mxu0 0.0
    %2609 = vmatpush1.msra.mxu0 %v2568
    %2610 = vmatprep.subr.mxu0 0.0
    %2611 = vmatpush1.msra.mxu0 %v2567
    %2612 = vmatprep.subr.mxu0 0.0
    %2613 = vmatpush1.msra.mxu0 %v2566
    %2614 = vmatprep.subr.mxu0 0.0
    %2615 = vmatpush2.msra.mxu0 0.0
    %2616 = vmatprep.subr.mxu0 0.0
    %2617 = vmatpush2.msra.mxu0 0.0
    %2618 = vmatprep.subr.mxu0 0.0
    %2619 = vmatpush2.msra.mxu0 0.0
    %2620 = vmatprep.subr.mxu0 0.0
    %2621 = vmatpush2.msra.mxu0 0.0
    %2622 = vmatprep.subr.mxu0 0.0
    %2623 = vmatpush2.msra.mxu0 0.0
    %2624 = vmatprep.subr.mxu0 0.0
    %2625 = vmatpush2.msra.mxu0 0.0
    %2626 = vmatprep.subr.mxu0 0.0
    %2627 = vmatpush2.msra.mxu0 0.0
    %2628 = vmatprep.subr.mxu0 0.0
    %2629 = vmatpush2.msra.mxu0 0.0
    %2630 = vmatprep.subr.mxu0 0.0
    %2631 = vmatpush2.msra.mxu0 0.0
    %2632 = vmatprep.subr.mxu0 0.0
    %2633 = vmatpush2.msra.mxu0 0.0
    %2634 = vmatprep.subr.mxu0 0.0
    %2635 = vmatpush2.msra.mxu0 0.0
    %2636 = vmatprep.subr.mxu0 0.0
    %2637 = vmatpush2.msra.mxu0 0.0
    %2638 = vmatprep.subr.mxu0 0.0
    %2639 = vmatpush2.msra.mxu0 0.0
    %2640 = vmatprep.subr.mxu0 0.0
    %2641 = vmatpush2.msra.mxu0 0.0
    %2642 = vmatprep.subr.mxu0 0.0
    %2643 = vmatpush2.msra.mxu0 0.0
    %2644 = vmatprep.subr.mxu0 0.0
    %2645 = vmatpush2.msra.mxu0 0.0
    %2646 = vmatprep.mubr.f32.mxu0 0.0
    %2647 = vmatmul.mubr.f32.gmra.mxu0 %v2546
    %v2648 = vpop.f32.mrf.mxu0
    %v2649 = vadd.f32 0.0, %v2648
    %v2650 = vpop.f32.mrf.mxu0
    %2651 = vdwg.mxu0
    %v2652 = vrcp.pop 512.0
    %v2653 = vmul.f32 %v2649, %v2652
    %2654 = vmatprep.subr.mxu0 0.0
    %2655 = vmatpush1.msra.mxu0 %v2581
    %2656 = vmatprep.subr.mxu0 0.0
    %2657 = vmatpush1.msra.mxu0 %v2580
    %2658 = vmatprep.subr.mxu0 0.0
    %2659 = vmatpush1.msra.mxu0 %v2579
    %2660 = vmatprep.subr.mxu0 0.0
    %2661 = vmatpush1.msra.mxu0 %v2578
    %2662 = vmatprep.subr.mxu0 0.0
    %2663 = vmatpush1.msra.mxu0 %v2577
    %2664 = vmatprep.subr.mxu0 0.0
    %2665 = vmatpush1.msra.mxu0 %v2576
    %2666 = vmatprep.subr.mxu0 0.0
    %2667 = vmatpush1.msra.mxu0 %v2575
    %2668 = vmatprep.subr.mxu0 0.0
    %2669 = vmatpush1.msra.mxu0 %v2574
    %2670 = vmatprep.subr.mxu0 0.0
    %2671 = vmatpush1.msra.mxu0 %v2573
    %2672 = vmatprep.subr.mxu0 0.0
    %2673 = vmatpush1.msra.mxu0 %v2572
    %2674 = vmatprep.subr.mxu0 0.0
    %2675 = vmatpush1.msra.mxu0 %v2571
    %2676 = vmatprep.subr.mxu0 0.0
    %2677 = vmatpush1.msra.mxu0 %v2570
    %2678 = vmatprep.subr.mxu0 0.0
    %2679 = vmatpush1.msra.mxu0 %v2569
    %2680 = vmatprep.subr.mxu0 0.0
    %2681 = vmatpush1.msra.mxu0 %v2568
    %2682 = vmatprep.subr.mxu0 0.0
    %2683 = vmatpush1.msra.mxu0 %v2567
    %2684 = vmatprep.subr.mxu0 0.0
    %2685 = vmatpush1.msra.mxu0 %v2566
    %2686 = vmatprep.subr.mxu0 0.0
    %2687 = vmatpush2.msra.mxu0 0.0
    %2688 = vmatprep.subr.mxu0 0.0
    %2689 = vmatpush2.msra.mxu0 0.0
    %2690 = vmatprep.subr.mxu0 0.0
    %2691 = vmatpush2.msra.mxu0 0.0
    %2692 = vmatprep.subr.mxu0 0.0
    %2693 = vmatpush2.msra.mxu0 0.0
    %2694 = vmatprep.subr.mxu0 0.0
    %2695 = vmatpush2.msra.mxu0 0.0
    %2696 = vmatprep.subr.mxu0 0.0
    %2697 = vmatpush2.msra.mxu0 0.0
    %2698 = vmatprep.subr.mxu0 0.0
    %2699 = vmatpush2.msra.mxu0 0.0
    %2700 = vmatprep.subr.mxu0 0.0
    %2701 = vmatpush2.msra.mxu0 0.0
    %2702 = vmatprep.subr.mxu0 0.0
    %2703 = vmatpush2.msra.mxu0 0.0
    %2704 = vmatprep.subr.mxu0 0.0
    %2705 = vmatpush2.msra.mxu0 0.0
    %2706 = vmatprep.subr.mxu0 0.0
    %2707 = vmatpush2.msra.mxu0 0.0
    %2708 = vmatprep.subr.mxu0 0.0
    %2709 = vmatpush2.msra.mxu0 0.0
    %2710 = vmatprep.subr.mxu0 0.0
    %2711 = vmatpush2.msra.mxu0 0.0
    %2712 = vmatprep.subr.mxu0 0.0
    %2713 = vmatpush2.msra.mxu0 0.0
    %2714 = vmatprep.subr.mxu0 0.0
    %2715 = vmatpush2.msra.mxu0 0.0
    %2716 = vmatprep.subr.mxu0 0.0
    %2717 = vmatpush2.msra.mxu0 0.0
    %2718 = vmatprep.mubr.f32.mxu0 0.0
    %2719 = vmatmul.mubr.f32.gmra.mxu0 %v2565
    %v2720 = vpop.f32.mrf.mxu0
    %v2721 = vadd.f32 0.0, %v2720
    %v2722 = vpop.f32.mrf.mxu0
    %2723 = vdwg.mxu0
    %v2724 = vmul.f32 %v2721, %v2652
    %v2725 = vmul.f32 %v2653, %v2653
    %v2726 = vsub.f32 %v2724, %v2725
    %v2727 = vld [vmem:[#allocation24] sm:$0x1]
    %v2728 = vadd.f32 %v2726, 1e-05
    %v2729 = vrsqrt.pop %v2728
    %v2730 = vmul.f32 %v2727, %v2729
    %v2731 = vld [vmem:[#allocation25] sm:$0x1]
    %v2732 = vmul.f32 %v2653, %v2730
    %v2733 = vsub.f32 %v2731, %v2732
    %v2734 = vld [vmem:[#allocation27] sm:$0xff]
    %v2736 = vsel %vm281, %v2730, 0
    %2738 = vmatprep.subr.mxu0 0.0
    %2739 = vmatpush1.msra.mxu0 0.0
    %2740 = vmatprep.subr.mxu0 0.0
    %2741 = vmatpush1.msra.mxu0 0.0
    %2742 = vmatprep.subr.mxu0 0.0
    %2743 = vmatpush1.msra.mxu0 0.0
    %2744 = vmatprep.subr.mxu0 0.0
    %2745 = vmatpush1.msra.mxu0 0.0
    %2746 = vmatprep.subr.mxu0 0.0
    %2747 = vmatpush1.msra.mxu0 0.0
    %2748 = vmatprep.subr.mxu0 0.0
    %2749 = vmatpush1.msra.mxu0 0.0
    %2750 = vmatprep.subr.mxu0 0.0
    %2751 = vmatpush1.msra.mxu0 0.0
    %2752 = vmatprep.subr.mxu0 0.0
    %2753 = vmatpush1.msra.mxu0 0.0
    %2754 = vmatprep.subr.mxu0 0.0
    %2755 = vmatpush1.msra.mxu0 0.0
    %2756 = vmatprep.subr.mxu0 0.0
    %2757 = vmatpush1.msra.mxu0 0.0
    %2758 = vmatprep.subr.mxu0 0.0
    %2759 = vmatpush1.msra.mxu0 0.0
    %2760 = vmatprep.subr.mxu0 0.0
    %2761 = vmatpush1.msra.mxu0 0.0
    %2762 = vmatprep.subr.mxu0 0.0
    %2763 = vmatpush1.msra.mxu0 0.0
    %2764 = vmatprep.subr.mxu0 0.0
    %2765 = vmatpush1.msra.mxu0 0.0
    %2766 = vmatprep.subr.mxu0 0.0
    %2767 = vmatpush1.msra.mxu0 0.0
    %2768 = vmatprep.subr.mxu0 0.0
    %2769 = vmatpush1.msra.mxu0 %v2734
    %2770 = vmatprep.subr.mxu0 0.0
    %2771 = vmatpush2.msra.mxu0 0.0
    %2772 = vmatprep.subr.mxu0 0.0
    %2773 = vmatpush2.msra.mxu0 0.0
    %2774 = vmatprep.subr.mxu0 0.0
    %2775 = vmatpush2.msra.mxu0 0.0
    %2776 = vmatprep.subr.mxu0 0.0
    %2777 = vmatpush2.msra.mxu0 0.0
    %2778 = vmatprep.subr.mxu0 0.0
    %2779 = vmatpush2.msra.mxu0 0.0
    %2780 = vmatprep.subr.mxu0 0.0
    %2781 = vmatpush2.msra.mxu0 0.0
    %2782 = vmatprep.subr.mxu0 0.0
    %2783 = vmatpush2.msra.mxu0 0.0
    %2784 = vmatprep.subr.mxu0 0.0
    %2785 = vmatpush2.msra.mxu0 0.0
    %2786 = vmatprep.subr.mxu0 0.0
    %2787 = vmatpush2.msra.mxu0 0.0
    %2788 = vmatprep.subr.mxu0 0.0
    %2789 = vmatpush2.msra.mxu0 0.0
    %2790 = vmatprep.subr.mxu0 0.0
    %2791 = vmatpush2.msra.mxu0 0.0
    %2792 = vmatprep.subr.mxu0 0.0
    %2793 = vmatpush2.msra.mxu0 0.0
    %2794 = vmatprep.subr.mxu0 0.0
    %2795 = vmatpush2.msra.mxu0 0.0
    %2796 = vmatprep.subr.mxu0 0.0
    %2797 = vmatpush2.msra.mxu0 0.0
    %2798 = vmatprep.subr.mxu0 0.0
    %2799 = vmatpush2.msra.mxu0 0.0
    %2800 = vmatprep.subr.mxu0 0.0
    %2801 = vmatpush2.msra.mxu0 0.0
    %2802 = vmatprep.mubr.f32.mxu0 0.0
    %2803 = vmatmul.mubr.f32.gmra.mxu0 %v2736
    %v2804 = vpop.f32.mrf.mxu0
    %v2805 = vadd.f32 0.0, %v2804
    %v2806 = vpop.f32.mrf.mxu0
    %2807 = vdwg.mxu0
    %v2809 = vsel %vm281, %v2733, 0
    %2811 = vmatprep.subr.mxu0 0.0
    %2812 = vmatpush1.msra.mxu0 0.0
    %2813 = vmatprep.subr.mxu0 0.0
    %2814 = vmatpush1.msra.mxu0 0.0
    %2815 = vmatprep.subr.mxu0 0.0
    %2816 = vmatpush1.msra.mxu0 0.0
    %2817 = vmatprep.subr.mxu0 0.0
    %2818 = vmatpush1.msra.mxu0 0.0
    %2819 = vmatprep.subr.mxu0 0.0
    %2820 = vmatpush1.msra.mxu0 0.0
    %2821 = vmatprep.subr.mxu0 0.0
    %2822 = vmatpush1.msra.mxu0 0.0
    %2823 = vmatprep.subr.mxu0 0.0
    %2824 = vmatpush1.msra.mxu0 0.0
    %2825 = vmatprep.subr.mxu0 0.0
    %2826 = vmatpush1.msra.mxu0 0.0
    %2827 = vmatprep.subr.mxu0 0.0
    %2828 = vmatpush1.msra.mxu0 0.0
    %2829 = vmatprep.subr.mxu0 0.0
    %2830 = vmatpush1.msra.mxu0 0.0
    %2831 = vmatprep.subr.mxu0 0.0
    %2832 = vmatpush1.msra.mxu0 0.0
    %2833 = vmatprep.subr.mxu0 0.0
    %2834 = vmatpush1.msra.mxu0 0.0
    %2835 = vmatprep.subr.mxu0 0.0
    %2836 = vmatpush1.msra.mxu0 0.0
    %2837 = vmatprep.subr.mxu0 0.0
    %2838 = vmatpush1.msra.mxu0 0.0
    %2839 = vmatprep.subr.mxu0 0.0
    %2840 = vmatpush1.msra.mxu0 0.0
    %2841 = vmatprep.subr.mxu0 0.0
    %2842 = vmatpush1.msra.mxu0 %v2734
    %2843 = vmatprep.subr.mxu0 0.0
    %2844 = vmatpush2.msra.mxu0 0.0
    %2845 = vmatprep.subr.mxu0 0.0
    %2846 = vmatpush2.msra.mxu0 0.0
    %2847 = vmatprep.subr.mxu0 0.0
    %2848 = vmatpush2.msra.mxu0 0.0
    %2849 = vmatprep.subr.mxu0 0.0
    %2850 = vmatpush2.msra.mxu0 0.0
    %2851 = vmatprep.subr.mxu0 0.0
    %2852 = vmatpush2.msra.mxu0 0.0
    %2853 = vmatprep.subr.mxu0 0.0
    %2854 = vmatpush2.msra.mxu0 0.0
    %2855 = vmatprep.subr.mxu0 0.0
    %2856 = vmatpush2.msra.mxu0 0.0
    %2857 = vmatprep.subr.mxu0 0.0
    %2858 = vmatpush2.msra.mxu0 0.0
    %2859 = vmatprep.subr.mxu0 0.0
    %2860 = vmatpush2.msra.mxu0 0.0
    %2861 = vmatprep.subr.mxu0 0.0
    %2862 = vmatpush2.msra.mxu0 0.0
    %2863 = vmatprep.subr.mxu0 0.0
    %2864 = vmatpush2.msra.mxu0 0.0
    %2865 = vmatprep.subr.mxu0 0.0
    %2866 = vmatpush2.msra.mxu0 0.0
    %2867 = vmatprep.subr.mxu0 0.0
    %2868 = vmatpush2.msra.mxu0 0.0
    %2869 = vmatprep.subr.mxu0 0.0
    %2870 = vmatpush2.msra.mxu0 0.0
    %2871 = vmatprep.subr.mxu0 0.0
    %2872 = vmatpush2.msra.mxu0 0.0
    %2873 = vmatprep.subr.mxu0 0.0
    %2874 = vmatpush2.msra.mxu0 0.0
    %2875 = vmatprep.mubr.f32.mxu0 0.0
    %2876 = vmatmul.mubr.f32.gmra.mxu0 %v2809
    %v2877 = vpop.f32.mrf.mxu0
    %v2878 = vadd.f32 0.0, %v2877
    %v2879 = vpop.f32.mrf.mxu0
    %2880 = vdwg.mxu0
    %v2881 = vlaneseq
    %v2882 = vshrl.u32 %v2881, 7
    %v2883 = vsub.s32 0, %v2882
    %v2884 = vrot.slane %v2805, %v2883
    %v2885 = vmul.f32 %v2524, %v2884
    %v2886 = vmul.f32 %v2528, %v2884
    %v2887 = vlaneseq
    %v2888 = vshrl.u32 %v2887, 7
    %v2889 = vsub.s32 0, %v2888
    %v2890 = vrot.slane %v2878, %v2889
    %v2891 = vadd.f32 %v2885, %v2890
    %v2892 = vadd.f32 %v2886, %v2890
    %v2893 = vmax.f32 %v2891, 0.0
    %v2894 = vmax.f32 %v2892, 0.0
    %v2895 = vmul.f32 %v2526, %v2884
    %v2896 = vmul.f32 %v2530, %v2884
    %v2897 = vadd.f32 %v2895, %v2890
    %v2898 = vadd.f32 %v2896, %v2890
    %v2899 = vmax.f32 %v2897, 0.0
    %v2900 = vmax.f32 %v2898, 0.0
    %2901 = vst [vmem:[#allocation4] sm:$0xff] 0.0
    %2902 = vst.msk [vmem:[#allocation4 + $0x8] sm:$0xff] %vm1651, 0.0
    %2903 = vst [vmem:[#allocation4 + $0x10] sm:$0xff] 0.0
    %2904 = vst.msk [vmem:[#allocation4 + $0x18] sm:$0xff] %vm1651, 0.0
    %2905 = vst [vmem:[#allocation4 + $0x20] sm:$0x3] 0.0
    %vm2906 = vcmask 123904
    %2907 = vst.msk [vmem:[#allocation4 + $0x28] sm:$0x3] %vm2906, 0.0
    %2908 = vst [vmem:[#allocation4 + $0x30] sm:$0xff] 0.0
    %2909 = vst.msk [vmem:[#allocation4 + $0x38] sm:$0xff] %vm1651, 0.0
    %2910 = vst [vmem:[#allocation4 + $0x40] sm:$0xff] 0.0
    %2911 = vst.msk [vmem:[#allocation4 + $0x48] sm:$0xff] %vm1651, 0.0
    %2912 = vst [vmem:[#allocation4 + $0x50] sm:$0x3] 0.0
    %2913 = vst.msk [vmem:[#allocation4 + $0x58] sm:$0x3] %vm2906, 0.0
    %2916 = vrot.lane.b32.xlu0 %v2893, 8
    %v2917 = vpop.permute.xlu0 %2916
    %2918 = vrot.lane.b32.xlu0 %v2894, 8
    %v2919 = vpop.permute.xlu0 %2918
    %vm2922 = vcmask 1040448
    %2923 = vst.msk [vmem:[#allocation4 + $0x1] sm:$0x1] %vm2922, %v2917
    %vm2924 = vcmask 57344
    %2925 = vst.msk [vmem:[#allocation4 + $0x9] sm:$0x1] %vm2924, %v2917
    %2926 = vst.msk [vmem:[#allocation4 + $0x31] sm:$0x1] %vm2922, %v2919
    %2927 = vst.msk [vmem:[#allocation4 + $0x39] sm:$0x1] %vm2924, %v2919
    %2930 = vrot.lane.b32.xlu0 %v2899, 8
    %v2931 = vpop.permute.xlu0 %2930
    %2932 = vrot.lane.b32.xlu0 %v2900, 8
    %v2933 = vpop.permute.xlu0 %2932
    %2936 = vst.msk [vmem:[#allocation4 + $0x2] sm:$0x1] %vm2922, %v2931
    %2937 = vst.msk [vmem:[#allocation4 + $0xa] sm:$0x1] %vm2924, %v2931
    %2938 = vst.msk [vmem:[#allocation4 + $0x32] sm:$0x1] %vm2922, %v2933
    %2939 = vst.msk [vmem:[#allocation4 + $0x3a] sm:$0x1] %vm2924, %v2933
    %v2940 = vrot.slane %v2893, 1
    %v2941 = vrot.slane %v2894, 1
    %2942 = vrot.lane.b32.xlu0 %v2940, 8
    %v2943 = vpop.permute.xlu0 %2942
    %2944 = vrot.lane.b32.xlu0 %v2941, 8
    %v2945 = vpop.permute.xlu0 %2944
    %2948 = vst.msk [vmem:[#allocation4 + $0x3] sm:$0x1] %vm2922, %v2943
    %2949 = vst.msk [vmem:[#allocation4 + $0xb] sm:$0x1] %vm2924, %v2943
    %2950 = vst.msk [vmem:[#allocation4 + $0x33] sm:$0x1] %vm2922, %v2945
    %2951 = vst.msk [vmem:[#allocation4 + $0x3b] sm:$0x1] %vm2924, %v2945
    %v2952 = vrot.slane %v2899, 1
    %v2953 = vrot.slane %v2900, 1
    %2954 = vrot.lane.b32.xlu0 %v2952, 8
    %v2955 = vpop.permute.xlu0 %2954
    %2956 = vrot.lane.b32.xlu0 %v2953, 8
    %v2957 = vpop.permute.xlu0 %2956
    %2960 = vst.msk [vmem:[#allocation4 + $0x4] sm:$0x1] %vm2922, %v2955
    %2961 = vst.msk [vmem:[#allocation4 + $0xc] sm:$0x1] %vm2924, %v2955
    %2962 = vst.msk [vmem:[#allocation4 + $0x34] sm:$0x1] %vm2922, %v2957
    %2963 = vst.msk [vmem:[#allocation4 + $0x3c] sm:$0x1] %vm2924, %v2957
    %v2964 = vrot.slane %v2893, 2
    %v2965 = vrot.slane %v2894, 2
    %2966 = vrot.lane.b32.xlu0 %v2964, 8
    %v2967 = vpop.permute.xlu0 %2966
    %2968 = vrot.lane.b32.xlu0 %v2965, 8
    %v2969 = vpop.permute.xlu0 %2968
    %2972 = vst.msk [vmem:[#allocation4 + $0x5] sm:$0x1] %vm2922, %v2967
    %2973 = vst.msk [vmem:[#allocation4 + $0xd] sm:$0x1] %vm2924, %v2967
    %2974 = vst.msk [vmem:[#allocation4 + $0x35] sm:$0x1] %vm2922, %v2969
    %2975 = vst.msk [vmem:[#allocation4 + $0x3d] sm:$0x1] %vm2924, %v2969
    %v2976 = vrot.slane %v2899, 2
    %v2977 = vrot.slane %v2900, 2
    %2978 = vrot.lane.b32.xlu0 %v2976, 8
    %v2979 = vpop.permute.xlu0 %2978
    %2980 = vrot.lane.b32.xlu0 %v2977, 8
    %v2981 = vpop.permute.xlu0 %2980
    %2984 = vst.msk [vmem:[#allocation4 + $0x6] sm:$0x1] %vm2922, %v2979
    %2985 = vst.msk [vmem:[#allocation4 + $0xe] sm:$0x1] %vm2924, %v2979
    %2986 = vst.msk [vmem:[#allocation4 + $0x36] sm:$0x1] %vm2922, %v2981
    %2987 = vst.msk [vmem:[#allocation4 + $0x3e] sm:$0x1] %vm2924, %v2981
    %v2988 = vrot.slane %v2893, 3
    %v2989 = vrot.slane %v2894, 3
    %2990 = vrot.lane.b32.xlu0 %v2988, 8
    %v2991 = vpop.permute.xlu0 %2990
    %2992 = vrot.lane.b32.xlu0 %v2989, 8
    %v2993 = vpop.permute.xlu0 %2992
    %2996 = vst.msk [vmem:[#allocation4 + $0x7] sm:$0x1] %vm2922, %v2991
    %2997 = vst.msk [vmem:[#allocation4 + $0xf] sm:$0x1] %vm2924, %v2991
    %2998 = vst.msk [vmem:[#allocation4 + $0x37] sm:$0x1] %vm2922, %v2993
    %2999 = vst.msk [vmem:[#allocation4 + $0x3f] sm:$0x1] %vm2924, %v2993
    %v3000 = vrot.slane %v2899, 3
    %v3001 = vrot.slane %v2900, 3
    %3002 = vrot.lane.b32.xlu0 %v3000, 8
    %v3003 = vpop.permute.xlu0 %3002
    %3004 = vrot.lane.b32.xlu0 %v3001, 8
    %v3005 = vpop.permute.xlu0 %3004
    %3008 = vst.msk [vmem:[#allocation4 + $0x10] sm:$0x1] %vm2922, %v3003
    %3009 = vst.msk [vmem:[#allocation4 + $0x18] sm:$0x1] %vm2924, %v3003
    %3010 = vst.msk [vmem:[#allocation4 + $0x40] sm:$0x1] %vm2922, %v3005
    %3011 = vst.msk [vmem:[#allocation4 + $0x48] sm:$0x1] %vm2924, %v3005
    %v3012 = vrot.slane %v2893, 4
    %v3013 = vrot.slane %v2894, 4
    %3014 = vrot.lane.b32.xlu0 %v3012, 8
    %v3015 = vpop.permute.xlu0 %3014
    %3016 = vrot.lane.b32.xlu0 %v3013, 8
    %v3017 = vpop.permute.xlu0 %3016
    %3020 = vst.msk [vmem:[#allocation4 + $0x11] sm:$0x1] %vm2922, %v3015
    %3021 = vst.msk [vmem:[#allocation4 + $0x19] sm:$0x1] %vm2924, %v3015
    %3022 = vst.msk [vmem:[#allocation4 + $0x41] sm:$0x1] %vm2922, %v3017
    %3023 = vst.msk [vmem:[#allocation4 + $0x49] sm:$0x1] %vm2924, %v3017
    %v3024 = vrot.slane %v2899, 4
    %v3025 = vrot.slane %v2900, 4
    %3026 = vrot.lane.b32.xlu0 %v3024, 8
    %v3027 = vpop.permute.xlu0 %3026
    %3028 = vrot.lane.b32.xlu0 %v3025, 8
    %v3029 = vpop.permute.xlu0 %3028
    %3032 = vst.msk [vmem:[#allocation4 + $0x12] sm:$0x1] %vm2922, %v3027
    %3033 = vst.msk [vmem:[#allocation4 + $0x1a] sm:$0x1] %vm2924, %v3027
    %3034 = vst.msk [vmem:[#allocation4 + $0x42] sm:$0x1] %vm2922, %v3029
    %3035 = vst.msk [vmem:[#allocation4 + $0x4a] sm:$0x1] %vm2924, %v3029
    %v3036 = vrot.slane %v2893, 5
    %v3037 = vrot.slane %v2894, 5
    %3038 = vrot.lane.b32.xlu0 %v3036, 8
    %v3039 = vpop.permute.xlu0 %3038
    %3040 = vrot.lane.b32.xlu0 %v3037, 8
    %v3041 = vpop.permute.xlu0 %3040
    %3044 = vst.msk [vmem:[#allocation4 + $0x13] sm:$0x1] %vm2922, %v3039
    %3045 = vst.msk [vmem:[#allocation4 + $0x1b] sm:$0x1] %vm2924, %v3039
    %3046 = vst.msk [vmem:[#allocation4 + $0x43] sm:$0x1] %vm2922, %v3041
    %3047 = vst.msk [vmem:[#allocation4 + $0x4b] sm:$0x1] %vm2924, %v3041
    %v3048 = vrot.slane %v2899, 5
    %v3049 = vrot.slane %v2900, 5
    %3050 = vrot.lane.b32.xlu0 %v3048, 8
    %v3051 = vpop.permute.xlu0 %3050
    %3052 = vrot.lane.b32.xlu0 %v3049, 8
    %v3053 = vpop.permute.xlu0 %3052
    %3056 = vst.msk [vmem:[#allocation4 + $0x14] sm:$0x1] %vm2922, %v3051
    %3057 = vst.msk [vmem:[#allocation4 + $0x1c] sm:$0x1] %vm2924, %v3051
    %3058 = vst.msk [vmem:[#allocation4 + $0x44] sm:$0x1] %vm2922, %v3053
    %3059 = vst.msk [vmem:[#allocation4 + $0x4c] sm:$0x1] %vm2924, %v3053
    %v3060 = vrot.slane %v2893, 6
    %v3061 = vrot.slane %v2894, 6
    %3062 = vrot.lane.b32.xlu0 %v3060, 8
    %v3063 = vpop.permute.xlu0 %3062
    %3064 = vrot.lane.b32.xlu0 %v3061, 8
    %v3065 = vpop.permute.xlu0 %3064
    %3068 = vst.msk [vmem:[#allocation4 + $0x15] sm:$0x1] %vm2922, %v3063
    %3069 = vst.msk [vmem:[#allocation4 + $0x1d] sm:$0x1] %vm2924, %v3063
    %3070 = vst.msk [vmem:[#allocation4 + $0x45] sm:$0x1] %vm2922, %v3065
    %3071 = vst.msk [vmem:[#allocation4 + $0x4d] sm:$0x1] %vm2924, %v3065
    %v3072 = vrot.slane %v2899, 6
    %v3073 = vrot.slane %v2900, 6
    %3074 = vrot.lane.b32.xlu0 %v3072, 8
    %v3075 = vpop.permute.xlu0 %3074
    %3076 = vrot.lane.b32.xlu0 %v3073, 8
    %v3077 = vpop.permute.xlu0 %3076
    %3080 = vst.msk [vmem:[#allocation4 + $0x16] sm:$0x1] %vm2922, %v3075
    %3081 = vst.msk [vmem:[#allocation4 + $0x1e] sm:$0x1] %vm2924, %v3075
    %3082 = vst.msk [vmem:[#allocation4 + $0x46] sm:$0x1] %vm2922, %v3077
    %3083 = vst.msk [vmem:[#allocation4 + $0x4e] sm:$0x1] %vm2924, %v3077
    %v3084 = vrot.slane %v2893, 7
    %v3085 = vrot.slane %v2894, 7
    %3086 = vrot.lane.b32.xlu0 %v3084, 8
    %v3087 = vpop.permute.xlu0 %3086
    %3088 = vrot.lane.b32.xlu0 %v3085, 8
    %v3089 = vpop.permute.xlu0 %3088
    %3092 = vst.msk [vmem:[#allocation4 + $0x17] sm:$0x1] %vm2922, %v3087
    %3093 = vst.msk [vmem:[#allocation4 + $0x1f] sm:$0x1] %vm2924, %v3087
    %3094 = vst.msk [vmem:[#allocation4 + $0x47] sm:$0x1] %vm2922, %v3089
    %3095 = vst.msk [vmem:[#allocation4 + $0x4f] sm:$0x1] %vm2924, %v3089
    %v3096 = vrot.slane %v2899, 7
    %v3097 = vrot.slane %v2900, 7
    %3098 = vrot.lane.b32.xlu0 %v3096, 8
    %v3099 = vpop.permute.xlu0 %3098
    %3100 = vrot.lane.b32.xlu0 %v3097, 8
    %v3101 = vpop.permute.xlu0 %3100
    %3104 = vst.msk [vmem:[#allocation4 + $0x20] sm:$0x1] %vm2922, %v3099
    %3105 = vst.msk [vmem:[#allocation4 + $0x28] sm:$0x1] %vm2924, %v3099
    %3106 = vst.msk [vmem:[#allocation4 + $0x50] sm:$0x1] %vm2922, %v3101
    %3107 = vst.msk [vmem:[#allocation4 + $0x58] sm:$0x1] %vm2924, %v3101
    %v3108 = vld [vmem:[#allocation4] sm:$0xff]
    %v3109 = vld [vmem:[#allocation4 + $0x8] sm:$0xff]
    %v3110 = vld [vmem:[#allocation4 + $0x10] sm:$0xff]
    %v3111 = vld [vmem:[#allocation4 + $0x18] sm:$0xff]
    %v3112 = vld [vmem:[#allocation4 + $0x30] sm:$0xff]
    %v3113 = vld [vmem:[#allocation4 + $0x38] sm:$0xff]
    %v3114 = vld [vmem:[#allocation4 + $0x40] sm:$0xff]
    %v3115 = vld [vmem:[#allocation4 + $0x48] sm:$0xff]
    %v3116 = vld [vmem:[#allocation4] sm:$0xfe]
    %v3117 = vld [vmem:[#allocation4 + $0x8] sm:$0xfe]
    %v3118 = vld [vmem:[#allocation4 + $0x20] sm:$0x1]
    %v3119 = vld [vmem:[#allocation4 + $0x28] sm:$0x1]
    %v3120 = vld [vmem:[#allocation4 + $0x30] sm:$0xfe]
    %v3121 = vld [vmem:[#allocation4 + $0x38] sm:$0xfe]
    %v3122 = vld [vmem:[#allocation4 + $0x50] sm:$0x1]
    %v3123 = vld [vmem:[#allocation4 + $0x58] sm:$0x1]
    %v3136 = vrot.slane %v3116, 1
    %v3137 = vrot.slane %v3110, 1
    %v3138 = vsel %vm1992, %v3136, %v3137
    %v3139 = vrot.slane %v3117, 1
    %v3140 = vrot.slane %v3111, 1
    %v3141 = vsel %vm1992, %v3139, %v3140
    %v3142 = vrot.slane %v3118, 1
    %v3143 = vsel %vm1992, %v3137, %v3142
    %v3144 = vrot.slane %v3119, 1
    %v3145 = vsel %vm1992, %v3140, %v3144
    %v3146 = vrot.slane %v3120, 1
    %v3147 = vrot.slane %v3114, 1
    %v3148 = vsel %vm1992, %v3146, %v3147
    %v3149 = vrot.slane %v3121, 1
    %v3150 = vrot.slane %v3115, 1
    %v3151 = vsel %vm1992, %v3149, %v3150
    %v3152 = vrot.slane %v3122, 1
    %v3153 = vsel %vm1992, %v3147, %v3152
    %v3154 = vrot.slane %v3123, 1
    %v3155 = vsel %vm1992, %v3150, %v3154
    %v3156 = vld [vmem:[#allocation4] sm:$0xfc]
    %v3157 = vld [vmem:[#allocation4 + $0x8] sm:$0xfc]
    %v3158 = vld [vmem:[#allocation4 + $0x20] sm:$0x3]
    %v3159 = vld [vmem:[#allocation4 + $0x28] sm:$0x3]
    %v3160 = vld [vmem:[#allocation4 + $0x30] sm:$0xfc]
    %v3161 = vld [vmem:[#allocation4 + $0x38] sm:$0xfc]
    %v3162 = vld [vmem:[#allocation4 + $0x50] sm:$0x3]
    %v3163 = vld [vmem:[#allocation4 + $0x58] sm:$0x3]
    %v3172 = vrot.slane %v3156, 2
    %v3173 = vrot.slane %v3110, 2
    %v3174 = vsel %vm2021, %v3172, %v3173
    %v3175 = vrot.slane %v3157, 2
    %v3176 = vrot.slane %v3111, 2
    %v3177 = vsel %vm2021, %v3175, %v3176
    %v3178 = vrot.slane %v3158, 2
    %v3179 = vsel %vm2021, %v3173, %v3178
    %v3180 = vrot.slane %v3159, 2
    %v3181 = vsel %vm2021, %v3176, %v3180
    %v3182 = vrot.slane %v3160, 2
    %v3183 = vrot.slane %v3114, 2
    %v3184 = vsel %vm2021, %v3182, %v3183
    %v3185 = vrot.slane %v3161, 2
    %v3186 = vrot.slane %v3115, 2
    %v3187 = vsel %vm2021, %v3185, %v3186
    %v3188 = vrot.slane %v3162, 2
    %v3189 = vsel %vm2021, %v3183, %v3188
    %v3190 = vrot.slane %v3163, 2
    %v3191 = vsel %vm2021, %v3186, %v3190
    %3192 = vrot.lane.b32.xlu0 %v3138, 16
    %v3193 = vpop.permute.xlu0 %3192
    %3194 = vrot.lane.b32.xlu0 %v3141, 16
    %v3195 = vpop.permute.xlu0 %3194
    %3196 = vrot.lane.b32.xlu0 %v3143, 16
    %v3197 = vpop.permute.xlu0 %3196
    %3198 = vrot.lane.b32.xlu0 %v3145, 16
    %v3199 = vpop.permute.xlu0 %3198
    %3200 = vrot.lane.b32.xlu0 %v3148, 16
    %v3201 = vpop.permute.xlu0 %3200
    %3202 = vrot.lane.b32.xlu0 %v3151, 16
    %v3203 = vpop.permute.xlu0 %3202
    %3204 = vrot.lane.b32.xlu0 %v3153, 16
    %v3205 = vpop.permute.xlu0 %3204
    %3206 = vrot.lane.b32.xlu0 %v3155, 16
    %v3207 = vpop.permute.xlu0 %3206
    %v3208 = vsel %vm1651, %v3193, %v3195
    %v3209 = vsel %vm1651, %v3197, %v3199
    %v3210 = vsel %vm1651, %v3201, %v3203
    %v3211 = vsel %vm1651, %v3205, %v3207
    %3220 = vrot.lane.b32.xlu0 %v3174, 32
    %v3221 = vpop.permute.xlu0 %3220
    %3222 = vrot.lane.b32.xlu0 %v3177, 32
    %v3223 = vpop.permute.xlu0 %3222
    %3224 = vrot.lane.b32.xlu0 %v3179, 32
    %v3225 = vpop.permute.xlu0 %3224
    %3226 = vrot.lane.b32.xlu0 %v3181, 32
    %v3227 = vpop.permute.xlu0 %3226
    %3228 = vrot.lane.b32.xlu0 %v3184, 32
    %v3229 = vpop.permute.xlu0 %3228
    %3230 = vrot.lane.b32.xlu0 %v3187, 32
    %v3231 = vpop.permute.xlu0 %3230
    %3232 = vrot.lane.b32.xlu0 %v3189, 32
    %v3233 = vpop.permute.xlu0 %3232
    %3234 = vrot.lane.b32.xlu0 %v3191, 32
    %v3235 = vpop.permute.xlu0 %3234
    %v3236 = vsel %vm1817, %v3221, %v3223
    %v3237 = vsel %vm1817, %v3225, %v3227
    %v3238 = vsel %vm1817, %v3229, %v3231
    %v3239 = vsel %vm1817, %v3233, %v3235
    %v3248 = vsel %vm1651, %v3109, %v3193
    %v3249 = vsel %vm1651, %v3111, %v3197
    %v3250 = vsel %vm1651, %v3113, %v3201
    %v3251 = vsel %vm1651, %v3115, %v3205
    %v3252 = vsel %vm1817, %v3208, %v3221
    %v3253 = vsel %vm1817, %v3209, %v3225
    %v3254 = vsel %vm1817, %v3210, %v3229
    %v3255 = vsel %vm1817, %v3211, %v3233
    %v3256 = vpack.c.bf16 %v3110, %v3108
    %v3257 = vpack.c.bf16 %v3249, %v3248
    %v3258 = vpack.c.bf16 %v3253, %v3252
    %v3259 = vpack.c.bf16 %v3237, %v3236
    %v3260 = vpack.c.bf16 %v3114, %v3112
    %v3261 = vpack.c.bf16 %v3251, %v3250
    %v3262 = vpack.c.bf16 %v3255, %v3254
    %v3263 = vpack.c.bf16 %v3239, %v3238
    %v3264 = vld [vmem:[%s17] sm:$0xff]
    %v3265 = vld [vmem:[%s17 + $0x8] sm:$0xff]
    %v3266 = vld [vmem:[%s17 + $0x10] sm:$0xff]
    %v3267 = vld [vmem:[%s17 + $0x18] sm:$0xff]
    %v3268 = vld [vmem:[%s17 + $0x20] sm:$0xff]
    %v3269 = vld [vmem:[%s17 + $0x28] sm:$0xff]
    %v3270 = vld [vmem:[%s17 + $0x30] sm:$0xff]
    %v3271 = vld [vmem:[%s17 + $0x38] sm:$0xff]
    %v3272 = vld [vmem:[%s17 + $0x40] sm:$0xff]
    %v3273 = vld [vmem:[%s17 + $0x48] sm:$0xff]
    %v3274 = vld [vmem:[%s17 + $0x50] sm:$0xff]
    %v3275 = vld [vmem:[%s17 + $0x58] sm:$0xff]
    %v3276 = vld [vmem:[%s17 + $0x60] sm:$0xff]
    %v3277 = vld [vmem:[%s17 + $0x68] sm:$0xff]
    %v3278 = vld [vmem:[%s17 + $0x70] sm:$0xff]
    %v3279 = vld [vmem:[%s17 + $0x78] sm:$0xff]
    %v3280 = vld [vmem:[%s17 + $0x80] sm:$0xff]
    %v3281 = vld [vmem:[%s17 + $0x88] sm:$0xff]
    %v3282 = vld [vmem:[%s17 + $0x90] sm:$0xff]
    %v3283 = vld [vmem:[%s17 + $0x98] sm:$0xff]
    %v3284 = vld [vmem:[%s17 + $0xa0] sm:$0xff]
    %v3285 = vld [vmem:[%s17 + $0xa8] sm:$0xff]
    %v3286 = vld [vmem:[%s17 + $0xb0] sm:$0xff]
    %v3287 = vld [vmem:[%s17 + $0xb8] sm:$0xff]
    %v3288 = vld [vmem:[%s17 + $0xc0] sm:$0xff]
    %v3289 = vld [vmem:[%s17 + $0xc8] sm:$0xff]
    %v3290 = vld [vmem:[%s17 + $0xd0] sm:$0xff]
    %v3291 = vld [vmem:[%s17 + $0xd8] sm:$0xff]
    %v3292 = vld [vmem:[%s17 + $0xe0] sm:$0xff]
    %v3293 = vld [vmem:[%s17 + $0xe8] sm:$0xff]
    %v3294 = vld [vmem:[%s17 + $0xf0] sm:$0xff]
    %v3295 = vld [vmem:[%s17 + $0xf8] sm:$0xff]
    %v3296 = vld [vmem:[%s17 + $0x100] sm:$0xff]
    %v3297 = vld [vmem:[%s17 + $0x108] sm:$0xff]
    %v3298 = vld [vmem:[%s17 + $0x110] sm:$0xff]
    %v3299 = vld [vmem:[%s17 + $0x118] sm:$0xff]
    %v3300 = vld [vmem:[%s17 + $0x120] sm:$0xff]
    %v3301 = vld [vmem:[%s17 + $0x128] sm:$0xff]
    %v3302 = vld [vmem:[%s17 + $0x130] sm:$0xff]
    %v3303 = vld [vmem:[%s17 + $0x138] sm:$0xff]
    %v3304 = vld [vmem:[%s17 + $0x140] sm:$0xff]
    %v3305 = vld [vmem:[%s17 + $0x148] sm:$0xff]
    %v3306 = vld [vmem:[%s17 + $0x150] sm:$0xff]
    %v3307 = vld [vmem:[%s17 + $0x158] sm:$0xff]
    %v3308 = vld [vmem:[%s17 + $0x160] sm:$0xff]
    %v3309 = vld [vmem:[%s17 + $0x168] sm:$0xff]
    %v3310 = vld [vmem:[%s17 + $0x170] sm:$0xff]
    %v3311 = vld [vmem:[%s17 + $0x178] sm:$0xff]
    %v3312 = vld [vmem:[%s17 + $0x180] sm:$0xff]
    %v3313 = vld [vmem:[%s17 + $0x188] sm:$0xff]
    %v3314 = vld [vmem:[%s17 + $0x190] sm:$0xff]
    %v3315 = vld [vmem:[%s17 + $0x198] sm:$0xff]
    %v3316 = vld [vmem:[%s17 + $0x1a0] sm:$0xff]
    %v3317 = vld [vmem:[%s17 + $0x1a8] sm:$0xff]
    %v3318 = vld [vmem:[#allocation28] sm:$0x3]
    %v3320 = vlaneseq
    %v3321 = vshrl.u32 %v3320, 7
    %v3322 = vsub.s32 0, %v3321
    %v3323 = vrot.slane %v3318, %v3322
    %v3324 = vlaneseq
    %v3325 = vshrl.u32 %v3324, 7
    %v3326 = vsub.s32 1, %v3325
    %v3327 = vrot.slane %v3318, %v3326
    %v3384 = vunpack.c.l.b16 %v3264
    %v3385 = vunpack.c.h.b16 %v3264
    %v3386 = vunpack.c.l.b16 %v3265
    %v3387 = vunpack.c.h.b16 %v3265
    %v3388 = vunpack.c.l.b16 %v3266
    %v3389 = vunpack.c.h.b16 %v3266
    %v3390 = vunpack.c.l.b16 %v3267
    %v3391 = vunpack.c.h.b16 %v3267
    %v3392 = vunpack.c.l.b16 %v3268
    %v3393 = vunpack.c.h.b16 %v3268
    %v3394 = vunpack.c.l.b16 %v3269
    %v3395 = vunpack.c.h.b16 %v3269
    %v3396 = vunpack.c.l.b16 %v3270
    %v3397 = vunpack.c.h.b16 %v3270
    %v3398 = vunpack.c.l.b16 %v3271
    %v3399 = vunpack.c.h.b16 %v3271
    %v3400 = vunpack.c.l.b16 %v3272
    %v3401 = vunpack.c.h.b16 %v3272
    %v3402 = vunpack.c.l.b16 %v3273
    %v3403 = vunpack.c.h.b16 %v3273
    %v3404 = vunpack.c.l.b16 %v3274
    %v3405 = vunpack.c.h.b16 %v3274
    %v3406 = vunpack.c.l.b16 %v3275
    %v3407 = vunpack.c.h.b16 %v3275
    %v3408 = vunpack.c.l.b16 %v3276
    %v3409 = vunpack.c.h.b16 %v3276
    %v3410 = vunpack.c.l.b16 %v3277
    %v3411 = vunpack.c.h.b16 %v3277
    %v3412 = vunpack.c.l.b16 %v3278
    %v3413 = vunpack.c.h.b16 %v3278
    %v3414 = vunpack.c.l.b16 %v3279
    %v3415 = vunpack.c.h.b16 %v3279
    %v3416 = vunpack.c.l.b16 %v3280
    %v3417 = vunpack.c.h.b16 %v3280
    %v3418 = vunpack.c.l.b16 %v3281
    %v3419 = vunpack.c.h.b16 %v3281
    %v3420 = vunpack.c.l.b16 %v3282
    %v3421 = vunpack.c.h.b16 %v3282
    %v3422 = vunpack.c.l.b16 %v3283
    %v3423 = vunpack.c.h.b16 %v3283
    %v3424 = vunpack.c.l.b16 %v3284
    %v3425 = vunpack.c.h.b16 %v3284
    %v3426 = vunpack.c.l.b16 %v3285
    %v3427 = vunpack.c.h.b16 %v3285
    %v3428 = vunpack.c.l.b16 %v3286
    %v3429 = vunpack.c.h.b16 %v3286
    %v3430 = vunpack.c.l.b16 %v3287
    %v3431 = vunpack.c.h.b16 %v3287
    %v3432 = vunpack.c.l.b16 %v3288
    %v3433 = vunpack.c.h.b16 %v3288
    %v3434 = vunpack.c.l.b16 %v3289
    %v3435 = vunpack.c.h.b16 %v3289
    %v3436 = vunpack.c.l.b16 %v3290
    %v3437 = vunpack.c.h.b16 %v3290
    %v3438 = vunpack.c.l.b16 %v3291
    %v3439 = vunpack.c.h.b16 %v3291
    %v3440 = vunpack.c.l.b16 %v3292
    %v3441 = vunpack.c.h.b16 %v3292
    %v3442 = vunpack.c.l.b16 %v3293
    %v3443 = vunpack.c.h.b16 %v3293
    %v3444 = vunpack.c.l.b16 %v3294
    %v3445 = vunpack.c.h.b16 %v3294
    %v3446 = vunpack.c.l.b16 %v3295
    %v3447 = vunpack.c.h.b16 %v3295
    %v3448 = vunpack.c.l.b16 %v3296
    %v3449 = vunpack.c.h.b16 %v3296
    %v3450 = vunpack.c.l.b16 %v3297
    %v3451 = vunpack.c.h.b16 %v3297
    %v3452 = vunpack.c.l.b16 %v3298
    %v3453 = vunpack.c.h.b16 %v3298
    %v3454 = vunpack.c.l.b16 %v3299
    %v3455 = vunpack.c.h.b16 %v3299
    %v3456 = vunpack.c.l.b16 %v3300
    %v3457 = vunpack.c.h.b16 %v3300
    %v3458 = vunpack.c.l.b16 %v3301
    %v3459 = vunpack.c.h.b16 %v3301
    %v3460 = vunpack.c.l.b16 %v3302
    %v3461 = vunpack.c.h.b16 %v3302
    %v3462 = vunpack.c.l.b16 %v3303
    %v3463 = vunpack.c.h.b16 %v3303
    %v3464 = vunpack.c.l.b16 %v3304
    %v3465 = vunpack.c.h.b16 %v3304
    %v3466 = vunpack.c.l.b16 %v3305
    %v3467 = vunpack.c.h.b16 %v3305
    %v3468 = vunpack.c.l.b16 %v3306
    %v3469 = vunpack.c.h.b16 %v3306
    %v3470 = vunpack.c.l.b16 %v3307
    %v3471 = vunpack.c.h.b16 %v3307
    %v3472 = vunpack.c.l.b16 %v3308
    %v3473 = vunpack.c.h.b16 %v3308
    %v3474 = vunpack.c.l.b16 %v3309
    %v3475 = vunpack.c.h.b16 %v3309
    %v3476 = vunpack.c.l.b16 %v3310
    %v3477 = vunpack.c.h.b16 %v3310
    %v3478 = vunpack.c.l.b16 %v3311
    %v3479 = vunpack.c.h.b16 %v3311
    %v3480 = vunpack.c.l.b16 %v3312
    %v3481 = vunpack.c.h.b16 %v3312
    %v3482 = vunpack.c.l.b16 %v3313
    %v3483 = vunpack.c.h.b16 %v3313
    %v3484 = vunpack.c.l.b16 %v3314
    %v3485 = vunpack.c.h.b16 %v3314
    %v3486 = vunpack.c.l.b16 %v3315
    %v3487 = vunpack.c.h.b16 %v3315
    %v3488 = vunpack.c.l.b16 %v3316
    %v3489 = vunpack.c.h.b16 %v3316
    %v3490 = vunpack.c.l.b16 %v3317
    %v3491 = vunpack.c.h.b16 %v3317
    %v3492 = vpack.c.b16 %v3386, %v3384
    %v3493 = vpack.c.b16 %v3387, %v3385
    %v3494 = vpack.c.b16 %v3390, %v3388
    %v3495 = vpack.c.b16 %v3391, %v3389
    %v3496 = vpack.c.b16 %v3394, %v3392
    %v3497 = vpack.c.b16 %v3395, %v3393
    %v3498 = vpack.c.b16 %v3398, %v3396
    %v3499 = vpack.c.b16 %v3399, %v3397
    %v3500 = vpack.c.b16 %v3402, %v3400
    %v3501 = vpack.c.b16 %v3403, %v3401
    %v3502 = vpack.c.b16 %v3406, %v3404
    %v3503 = vpack.c.b16 %v3407, %v3405
    %v3504 = vpack.c.b16 %v3410, %v3408
    %v3505 = vpack.c.b16 %v3411, %v3409
    %v3506 = vpack.c.b16 %v3414, %v3412
    %v3507 = vpack.c.b16 %v3415, %v3413
    %v3508 = vpack.c.b16 %v3418, %v3416
    %v3509 = vpack.c.b16 %v3419, %v3417
    %v3510 = vpack.c.b16 %v3422, %v3420
    %v3511 = vpack.c.b16 %v3423, %v3421
    %v3512 = vpack.c.b16 %v3426, %v3424
    %v3513 = vpack.c.b16 %v3427, %v3425
    %v3514 = vpack.c.b16 %v3430, %v3428
    %v3515 = vpack.c.b16 %v3431, %v3429
    %v3516 = vpack.c.b16 %v3434, %v3432
    %v3517 = vpack.c.b16 %v3435, %v3433
    %v3518 = vpack.c.b16 %v3438, %v3436
    %v3519 = vpack.c.b16 %v3439, %v3437
    %v3520 = vpack.c.b16 %v3442, %v3440
    %v3521 = vpack.c.b16 %v3443, %v3441
    %v3522 = vpack.c.b16 %v3446, %v3444
    %v3523 = vpack.c.b16 %v3447, %v3445
    %v3524 = vpack.c.b16 %v3450, %v3448
    %v3525 = vpack.c.b16 %v3451, %v3449
    %v3526 = vpack.c.b16 %v3454, %v3452
    %v3527 = vpack.c.b16 %v3455, %v3453
    %v3528 = vpack.c.b16 %v3458, %v3456
    %v3529 = vpack.c.b16 %v3459, %v3457
    %v3530 = vpack.c.b16 %v3462, %v3460
    %v3531 = vpack.c.b16 %v3463, %v3461
    %v3532 = vpack.c.b16 %v3466, %v3464
    %v3533 = vpack.c.b16 %v3467, %v3465
    %v3534 = vpack.c.b16 %v3470, %v3468
    %v3535 = vpack.c.b16 %v3471, %v3469
    %v3536 = vpack.c.b16 %v3474, %v3472
    %v3537 = vpack.c.b16 %v3475, %v3473
    %v3538 = vpack.c.b16 %v3478, %v3476
    %v3539 = vpack.c.b16 %v3479, %v3477
    %v3540 = vpack.c.b16 %v3482, %v3480
    %v3541 = vpack.c.b16 %v3483, %v3481
    %v3542 = vpack.c.b16 %v3486, %v3484
    %v3543 = vpack.c.b16 %v3487, %v3485
    %v3544 = vpack.c.b16 %v3490, %v3488
    %v3545 = vpack.c.b16 %v3491, %v3489
    %vm3600 = vcmask 392192
    %v3602 = vsel %vm3600, %v3259, 0
    %v3605 = vsel %vm3600, %v3263, 0
    %3607 = vmatprep.subr.bf16.mxu0 %v3507
    %3608 = vmatpush1.bf16.msra.mxu0 %v3506
    %3609 = vmatprep.subr.bf16.mxu0 %v3505
    %3610 = vmatpush1.bf16.msra.mxu0 %v3504
    %3611 = vmatprep.subr.bf16.mxu0 %v3503
    %3612 = vmatpush1.bf16.msra.mxu0 %v3502
    %3613 = vmatprep.subr.bf16.mxu0 %v3501
    %3614 = vmatpush1.bf16.msra.mxu0 %v3500
    %3615 = vmatprep.subr.bf16.mxu0 %v3499
    %3616 = vmatpush1.bf16.msra.mxu0 %v3498
    %3617 = vmatprep.subr.bf16.mxu0 %v3497
    %3618 = vmatpush1.bf16.msra.mxu0 %v3496
    %3619 = vmatprep.subr.bf16.mxu0 %v3495
    %3620 = vmatpush1.bf16.msra.mxu0 %v3494
    %3621 = vmatprep.subr.bf16.mxu0 %v3493
    %3622 = vmatpush1.bf16.msra.mxu0 %v3492
    %3623 = vmatprep.subr.bf16.mxu0 %v3523
    %3624 = vmatpush2.bf16.msra.mxu0 %v3522
    %3625 = vmatprep.subr.bf16.mxu0 %v3521
    %3626 = vmatpush2.bf16.msra.mxu0 %v3520
    %3627 = vmatprep.subr.bf16.mxu0 %v3519
    %3628 = vmatpush2.bf16.msra.mxu0 %v3518
    %3629 = vmatprep.subr.bf16.mxu0 %v3517
    %3630 = vmatpush2.bf16.msra.mxu0 %v3516
    %3631 = vmatprep.subr.bf16.mxu0 %v3515
    %3632 = vmatpush2.bf16.msra.mxu0 %v3514
    %3633 = vmatprep.subr.bf16.mxu0 %v3513
    %3634 = vmatpush2.bf16.msra.mxu0 %v3512
    %3635 = vmatprep.subr.bf16.mxu0 %v3511
    %3636 = vmatpush2.bf16.msra.mxu0 %v3510
    %3637 = vmatprep.subr.bf16.mxu0 %v3509
    %3638 = vmatpush2.bf16.msra.mxu0 %v3508
    %3639 = vmatprep.mubr.bf16.mxu0 %v3257
    %3640 = vmatmul.mubr.bf16.gmra.mxu0 %v3256
    %v3641 = vpop.f32.mrf.mxu0
    %v3642 = vadd.f32 %v3323, %v3641
    %v3643 = vpop.f32.mrf.mxu0
    %v3644 = vadd.f32 %v3327, %v3643
    %v3645 = vpop.f32.mrf.mxu0
    %v3646 = vadd.f32 %v3323, %v3645
    %v3647 = vpop.f32.mrf.mxu0
    %v3648 = vadd.f32 %v3327, %v3647
    %3649 = vmatprep.mubr.bf16.mxu0 %v3261
    %3650 = vmatmul.mubr.bf16.gmra.mxu0 %v3260
    %v3651 = vpop.f32.mrf.mxu0
    %v3652 = vadd.f32 %v3323, %v3651
    %v3653 = vpop.f32.mrf.mxu0
    %v3654 = vadd.f32 %v3327, %v3653
    %v3655 = vpop.f32.mrf.mxu0
    %v3656 = vadd.f32 %v3323, %v3655
    %v3657 = vpop.f32.mrf.mxu0
    %v3658 = vadd.f32 %v3327, %v3657
    %3659 = vdwg.mxu0
    %3660 = vmatprep.subr.bf16.mxu0 %v3539
    %3661 = vmatpush1.bf16.msra.mxu0 %v3538
    %3662 = vmatprep.subr.bf16.mxu0 %v3537
    %3663 = vmatpush1.bf16.msra.mxu0 %v3536
    %3664 = vmatprep.subr.bf16.mxu0 %v3535
    %3665 = vmatpush1.bf16.msra.mxu0 %v3534
    %3666 = vmatprep.subr.bf16.mxu0 %v3533
    %3667 = vmatpush1.bf16.msra.mxu0 %v3532
    %3668 = vmatprep.subr.bf16.mxu0 %v3531
    %3669 = vmatpush1.bf16.msra.mxu0 %v3530
    %3670 = vmatprep.subr.bf16.mxu0 %v3529
    %3671 = vmatpush1.bf16.msra.mxu0 %v3528
    %3672 = vmatprep.subr.bf16.mxu0 %v3527
    %3673 = vmatpush1.bf16.msra.mxu0 %v3526
    %3674 = vmatprep.subr.bf16.mxu0 %v3525
    %3675 = vmatpush1.bf16.msra.mxu0 %v3524
    %3676 = vmatprep.subr.bf16.mxu0 0
    %3677 = vmatpush2.bf16.msra.mxu0 0
    %3678 = vmatprep.subr.bf16.mxu0 0
    %3679 = vmatpush2.bf16.msra.mxu0 0
    %3680 = vmatprep.subr.bf16.mxu0 0
    %3681 = vmatpush2.bf16.msra.mxu0 0
    %3682 = vmatprep.subr.bf16.mxu0 0
    %3683 = vmatpush2.bf16.msra.mxu0 0
    %3684 = vmatprep.subr.bf16.mxu0 0
    %3685 = vmatpush2.bf16.msra.mxu0 0
    %3686 = vmatprep.subr.bf16.mxu0 %v3545
    %3687 = vmatpush2.bf16.msra.mxu0 %v3544
    %3688 = vmatprep.subr.bf16.mxu0 %v3543
    %3689 = vmatpush2.bf16.msra.mxu0 %v3542
    %3690 = vmatprep.subr.bf16.mxu0 %v3541
    %3691 = vmatpush2.bf16.msra.mxu0 %v3540
    %3692 = vmatprep.mubr.bf16.mxu0 %v3602
    %3693 = vmatmul.mubr.bf16.gmra.mxu0 %v3258
    %v3694 = vpop.f32.mrf.mxu0
    %v3695 = vadd.f32 %v3642, %v3694
    %v3696 = vpop.f32.mrf.mxu0
    %v3697 = vadd.f32 %v3644, %v3696
    %v3698 = vpop.f32.mrf.mxu0
    %v3699 = vadd.f32 %v3646, %v3698
    %v3700 = vpop.f32.mrf.mxu0
    %v3701 = vadd.f32 %v3648, %v3700
    %3702 = vmatprep.mubr.bf16.mxu0 %v3605
    %3703 = vmatmul.mubr.bf16.gmra.mxu0 %v3262
    %v3704 = vpop.f32.mrf.mxu0
    %v3705 = vadd.f32 %v3652, %v3704
    %v3706 = vpop.f32.mrf.mxu0
    %v3707 = vadd.f32 %v3654, %v3706
    %v3708 = vpop.f32.mrf.mxu0
    %v3709 = vadd.f32 %v3656, %v3708
    %v3710 = vpop.f32.mrf.mxu0
    %v3711 = vadd.f32 %v3658, %v3710
    %3712 = vdwg.mxu0
    %v3713 = vtanh.pop %v3695
    %v3714 = vtanh.pop %v3699
    %v3715 = vtanh.pop %v3705
    %v3716 = vtanh.pop %v3709
    %3717 = vst.msk [vmem:[%s19] sm:$0xff] %vm2442, %v3713
    %3718 = vst.msk [vmem:[%s19 + $0x8] sm:$0xff] %vm2442, %v3714
    %3719 = vst.msk [vmem:[%s19 + $0x10] sm:$0xff] %vm2442, %v3715
    %3720 = vst.msk [vmem:[%s19 + $0x18] sm:$0xff] %vm2442, %v3716
    %v3721 = vtanh.pop %v3697
    %v3722 = vtanh.pop %v3701
    %v3723 = vtanh.pop %v3707
    %v3724 = vtanh.pop %v3711
    %3733 = vrot.lane.b32.xlu0 %v3713, 32
    %v3734 = vpop.permute.xlu0 %3733
    %3735 = vrot.lane.b32.xlu0 %v3721, 32
    %v3736 = vpop.permute.xlu0 %3735
    %3737 = vrot.lane.b32.xlu0 %v3714, 32
    %v3738 = vpop.permute.xlu0 %3737
    %3739 = vrot.lane.b32.xlu0 %v3722, 32
    %v3740 = vpop.permute.xlu0 %3739
    %3741 = vrot.lane.b32.xlu0 %v3715, 32
    %v3742 = vpop.permute.xlu0 %3741
    %3743 = vrot.lane.b32.xlu0 %v3723, 32
    %v3744 = vpop.permute.xlu0 %3743
    %3745 = vrot.lane.b32.xlu0 %v3716, 32
    %v3746 = vpop.permute.xlu0 %3745
    %3747 = vrot.lane.b32.xlu0 %v3724, 32
    %v3748 = vpop.permute.xlu0 %3747
    %v3749 = vsel %vm1817, %v3734, %v3736
    %v3750 = vsel %vm1817, %v3738, %v3740
    %v3751 = vsel %vm1817, %v3742, %v3744
    %v3752 = vsel %vm1817, %v3746, %v3748
    %s3757 = scalar_lea.vmem %s19, 32
    %3758 = vst.msk [vmem:[%s3757] sm:$0xff] %vm2442, %v3749
    %3759 = vst.msk [vmem:[%s3757 + $0x8] sm:$0xff] %vm2442, %v3750
    %3760 = vst.msk [vmem:[%s3757 + $0x10] sm:$0xff] %vm2442, %v3751
    %3761 = vst.msk [vmem:[%s3757 + $0x18] sm:$0xff] %vm2442, %v3752
    // Predicated region
    $region142: #{generator_forward.1} parent=1 // pred_check
      _
    $region143: #{generator_forward.1} parent=1 // pred_check_branch
      %3763 = sbr.rel (0) target = $region145
    $region144: #{generator_forward.1} parent=1 // pred_region
      _
    $region145: #{generator_forward.1} parent=1 // pred_fallthru
      _
    // Predicated region
    $region146: #{generator_forward.1} parent=1 // pred_check
      _
    $region147: #{generator_forward.1} parent=1 // pred_check_branch
      %3765 = sbr.rel (0) target = $region149
    $region148: #{generator_forward.1} parent=1 // pred_region
      _
    $region149: #{generator_forward.1} parent=1 // pred_fallthru
      _
    %3766 = vsyncpa [#allocation6], 1
    %3767 = vsyncpa [#allocation8], 1
    %3768 = vsyncpa [#allocation11], 1
    %3769 = vsyncpa [#allocation14], 1
    %3770 = vsyncpa [#allocation17], 1
    %3771 = vsyncpa [#allocation20], 1
    %3772 = vsyncpa [#allocation23], 1
    %3773 = vsyncpa [#allocation26], 1
    %3774 = vsyncpa [#allocation29], 1

</llo_original>
